<compile_context>
chip_gen: v5e
topology: v5e:2x2
jax: 0.10.0
libtpu: 0.0.40
codegen_flags: <defaults>
</compile_context>

<pallas_src>
import functools

import jax
import jax.numpy as jnp
from jax import lax
from jax.experimental import pallas as pl
from jax.experimental.pallas import tpu as pltpu


def _pairwise_kernel(xr_ref, xc_ref, lr_ref, lc_ref, selc_ref,
                     pos_ref, neg_ref, *, inv_temp, tr, tc):
    """One (row-tile i, col-tile j) step of the masked pairwise-exp sums.

    The score tile is built transposed — shape (tc, tr) with the *output*
    point index r in the lane dimension — so the per-r reductions land
    directly in lane-dense (1, tr) output blocks (accumulated in place
    across the j reduction axis)."""
    i = pl.program_id(0)
    j = pl.program_id(1)

    # pos/neg output blocks are resident across the j (reduction) axis.
    @pl.when(j == 0)
    def _():
        pos_ref[...] = jnp.zeros_like(pos_ref)
        neg_ref[...] = jnp.zeros_like(neg_ref)

    xi = xr_ref[...]                       # (tr, C) bf16, unit-norm rows
    xj = xc_ref[...]                       # (tc, C) bf16, unit-norm rows

    # s[c, r] = <x_c, x_r>  (cosine similarity; inputs already normalized).
    s = lax.dot_general(xj, xi, (((1,), (1,)), ((), ())),
                        preferred_element_type=jnp.float32)        # (tc, tr)

    # exp(sim / temp); unselected / padded columns are zeroed by the mask.
    e = jnp.exp(s * inv_temp) * selc_ref[...]                      # (tc, tr)

    def _accum(ev):
        eq = lc_ref[...] == lr_ref[...]                            # (tc, tr)
        pos_ref[...] += jnp.sum(jnp.where(eq, ev, 0.0), axis=0, keepdims=True)
        neg_ref[...] += jnp.sum(ev, axis=0, keepdims=True)

    # The global diagonal only crosses blocks whose row / col ranges
    # intersect; only those blocks pay for the iota / compare / mask work.
    diag_hit = jnp.logical_and(i * tr < (j + 1) * tc, j * tc < (i + 1) * tr)

    @pl.when(diag_hit)
    def _():
        c_ids = j * tc + lax.broadcasted_iota(jnp.int32, (tc, tr), 0)
        r_ids = i * tr + lax.broadcasted_iota(jnp.int32, (tc, tr), 1)
        _accum(jnp.where(c_ids != r_ids, e, 0.0))

    @pl.when(jnp.logical_not(diag_hit))
    def _():
        _accum(e)


def _pairwise_sums(xn, labels, sel, temperature, tr, tc):
    """Per-point sums of masked exp(similarity/temp): (positives, negatives)."""
    t_pad, c = xn.shape
    grid = (t_pad // tr, t_pad // tc)

    lab_row = labels.reshape(1, t_pad).astype(jnp.int32)   # r labels (lanes)
    lab_col = labels.reshape(t_pad, 1).astype(jnp.int32)   # c labels (sublanes)
    sel_col = sel.reshape(t_pad, 1).astype(jnp.float32)    # c keep mask

    kernel = functools.partial(_pairwise_kernel,
                               inv_temp=1.0 / float(temperature), tr=tr, tc=tc)

    pos, neg = pl.pallas_call(
        kernel,
        out_shape=(jax.ShapeDtypeStruct((1, t_pad), jnp.float32),
                   jax.ShapeDtypeStruct((1, t_pad), jnp.float32)),
        grid_spec=pltpu.PrefetchScalarGridSpec(
            num_scalar_prefetch=0,
            grid=grid,
            in_specs=[
                pl.BlockSpec((tr, c), lambda i, j: (i, 0)),   # r tile of Xn
                pl.BlockSpec((tc, c), lambda i, j: (j, 0)),   # c tile of Xn
                pl.BlockSpec((1, tr), lambda i, j: (0, i)),   # r labels
                pl.BlockSpec((tc, 1), lambda i, j: (j, 0)),   # c labels
                pl.BlockSpec((tc, 1), lambda i, j: (j, 0)),   # c keep mask
            ],
            out_specs=[
                pl.BlockSpec((1, tr), lambda i, j: (0, i)),   # positives
                pl.BlockSpec((1, tr), lambda i, j: (0, i)),   # negatives
            ],
        ),
        compiler_params=pltpu.CompilerParams(
            dimension_semantics=("parallel", "arbitrary"),
            vmem_limit_bytes=64 * 1024 * 1024),
    )(xn, xn, lab_row, lab_col, sel_col)

    return pos[0], neg[0]


@functools.partial(jax.jit, static_argnames=("temperature", "num_classes"))
def contrast_loss_point_cloud_intra_batch(features_in, labels_in, key,
                                          temperature=0.07, num_classes=8):
    """Forward pass of Contrast_loss_point_cloud_inetra_batch."""
    b, c, n = features_in.shape
    t = b * n

    # features.view(C, B*N).T  (reshape of contiguous == torch .view)
    x = features_in.reshape(c, t).T.astype(jnp.float32)          # (T, C)
    labels = labels_in.reshape(-1).astype(jnp.int32)             # (T,)

    # per-class keep probability: min(400 / (count + 1), 1)
    counts = jnp.bincount(labels, length=num_classes)
    dist = jnp.minimum(400.0 / (counts.astype(jnp.float32) + 1.0), 1.0)
    stats = dist[labels]
    sel = jax.random.bernoulli(key, stats).astype(jnp.float32)   # (T,) keep mask

    # F.normalize(features, p=2, dim=1) — done once here; the kernel assumes
    # unit-norm rows.  bf16 feed to the MXU, f32 accumulation inside.
    norm = jnp.sqrt(jnp.sum(x * x, axis=1, keepdims=True))
    xn = (x / jnp.maximum(norm, 1e-12)).astype(jnp.bfloat16)

    # Tiles: 256 output points x 512 reduced points; pad T to a multiple of
    # 512 so both tile sizes divide it and the parallel row axis is even.
    tr, tc = 256, 512
    t_pad = max(tc, ((t + tc - 1) // tc) * tc)
    pad = t_pad - t
    xn_p = jnp.pad(xn, ((0, pad), (0, 0)))
    sel_p = jnp.pad(sel, (0, pad))                 # padded cols: sel = 0
    labels_p = jnp.pad(labels, (0, pad), constant_values=-1)

    pos, neg = _pairwise_sums(xn_p, labels_p, sel_p, temperature, tr, tc)
    pos, neg = pos[:t], neg[:t]

    # -log(pos/neg), mean over the bernoulli-selected points only.
    selb = sel > 0
    dev = -jnp.log(jnp.where(selb, pos, 1.0) / jnp.where(selb, neg, 1.0))
    n_sel = jnp.sum(sel)
    loss = jnp.sum(jnp.where(selb, dev, 0.0)) / n_sel
    # PyTorch module returns 0 on inf / nan loss
    return jnp.where(jnp.isfinite(loss), loss, jnp.float32(0.0))


if __name__ == "__main__":
    key = jax.random.PRNGKey(0)
    k_feat, k_lab, k_bern = jax.random.split(key, 3)

    B, C, N = 2, 32, 128          # T = B*N = 256 points, 32-dim features
    NUM_CLASSES = 4

    features_in = jax.random.normal(k_feat, (B, C, N), dtype=jnp.float32)
    labels_in = jax.random.randint(k_lab, (B, N), 0, NUM_CLASSES, dtype=jnp.int32)

    loss = contrast_loss_point_cloud_intra_batch(
        features_in, labels_in, k_bern, temperature=0.07,
        num_classes=NUM_CLASSES)
    jax.block_until_ready(loss)
    print("KERNEL_OK")
</pallas_src>

<mosaic_0001>
module attributes {stable_mosaic.version = 11 : i64} {
  func.func @_pairwise_kernel(%arg0: i32, %arg1: i32, %arg2: memref<256x32xbf16, #tpu.memory_space<vmem>>, %arg3: memref<512x32xbf16, #tpu.memory_space<vmem>>, %arg4: memref<1x256xi32, #tpu.memory_space<vmem>>, %arg5: memref<512x1xi32, #tpu.memory_space<vmem>>, %arg6: memref<512x1xf32, #tpu.memory_space<vmem>>, %arg7: memref<1x256xf32, #tpu.memory_space<vmem>>, %arg8: memref<1x256xf32, #tpu.memory_space<vmem>>) attributes {dimension_semantics = [#tpu.dimension_semantics<parallel>, #tpu.dimension_semantics<arbitrary>], iteration_bounds = array<i64: 2, 1>, scalar_prefetch = 0 : i64, scratch_operands = 0 : i64, tpu.core_type = #tpu.core_type<tc>, window_params = [{transform_indices = @transform_0, window_bounds = array<i64: 256, 32>}, {transform_indices = @transform_1, window_bounds = array<i64: 512, 32>}, {transform_indices = @transform_2, window_bounds = array<i64: 1, 256>}, {transform_indices = @transform_3, window_bounds = array<i64: 512, 1>}, {transform_indices = @transform_4, window_bounds = array<i64: 512, 1>}, {transform_indices = @transform_5, window_bounds = array<i64: 1, 256>}, {transform_indices = @transform_6, window_bounds = array<i64: 1, 256>}]} {
    %c0_i32 = arith.constant 0 : i32
    %0 = arith.cmpi eq, %arg1, %c0_i32 : i32
    %1 = arith.extui %0 : i1 to i32
    %c0_i32_0 = arith.constant 0 : i32
    %2 = arith.cmpi ne, %1, %c0_i32_0 : i32
    scf.if %2 {
      %cst_12 = arith.constant 0.000000e+00 : f32
      %26 = vector.broadcast %cst_12 : f32 to vector<1x256xf32>
      %c0_13 = arith.constant 0 : index
      %c0_14 = arith.constant 0 : index
      %27 = vector.load %arg7[%c0_13, %c0_14] : memref<1x256xf32, #tpu.memory_space<vmem>>, vector<1x256xf32>
      tpu.vector_store %arg7[%c0_13, %c0_14], %26 {strides = array<i32>} : memref<1x256xf32, #tpu.memory_space<vmem>>, vector<1x256xf32>,
      %cst_15 = arith.constant 0.000000e+00 : f32
      %28 = vector.broadcast %cst_15 : f32 to vector<1x256xf32>
      %c0_16 = arith.constant 0 : index
      %c0_17 = arith.constant 0 : index
      %29 = vector.load %arg8[%c0_16, %c0_17] : memref<1x256xf32, #tpu.memory_space<vmem>>, vector<1x256xf32>
      tpu.vector_store %arg8[%c0_16, %c0_17], %28 {strides = array<i32>} : memref<1x256xf32, #tpu.memory_space<vmem>>, vector<1x256xf32>,
    } else {
    }
    %c0 = arith.constant 0 : index
    %c0_1 = arith.constant 0 : index
    %3 = vector.load %arg2[%c0, %c0_1] : memref<256x32xbf16, #tpu.memory_space<vmem>>, vector<256x32xbf16>
    %c0_2 = arith.constant 0 : index
    %c0_3 = arith.constant 0 : index
    %4 = vector.load %arg3[%c0_2, %c0_3] : memref<512x32xbf16, #tpu.memory_space<vmem>>, vector<512x32xbf16>
    %cst = arith.constant dense<0.000000e+00> : vector<512x256xf32>
    %5 = tpu.matmul %4, %3, %cst {dimension_numbers = #tpu.dot_dimension_numbers<[1], [1], [0], [0], [0, 0, 1, 0], [], []>} : vector<512x32xbf16>, vector<256x32xbf16>, vector<512x256xf32> -> vector<512x256xf32>
    %cst_4 = arith.constant 14.2857141 : f32
    %6 = vector.broadcast %cst_4 : f32 to vector<512x256xf32>
    %7 = arith.mulf %5, %6 : vector<512x256xf32>
    %8 = math.exp %7 : vector<512x256xf32>
    %c0_5 = arith.constant 0 : index
    %c0_6 = arith.constant 0 : index
    %9 = vector.load %arg6[%c0_5, %c0_6] : memref<512x1xf32, #tpu.memory_space<vmem>>, vector<512x1xf32>
    %10 = vector.broadcast %9 : vector<512x1xf32> to vector<512x256xf32>
    %11 = arith.mulf %8, %10 : vector<512x256xf32>
    %c256_i32 = arith.constant 256 : i32
    %12 = arith.muli %arg0, %c256_i32 : i32
    %c1_i32 = arith.constant 1 : i32
    %13 = arith.addi %arg1, %c1_i32 : i32
    %c512_i32 = arith.constant 512 : i32
    %14 = arith.muli %13, %c512_i32 : i32
    %15 = arith.cmpi slt, %12, %14 : i32
    %c512_i32_7 = arith.constant 512 : i32
    %16 = arith.muli %arg1, %c512_i32_7 : i32
    %c1_i32_8 = arith.constant 1 : i32
    %17 = arith.addi %arg0, %c1_i32_8 : i32
    %c256_i32_9 = arith.constant 256 : i32
    %18 = arith.muli %17, %c256_i32_9 : i32
    %19 = arith.cmpi slt, %16, %18 : i32
    %20 = arith.andi %15, %19 : i1
    %21 = arith.extui %20 : i1 to i32
    %c0_i32_10 = arith.constant 0 : i32
    %22 = arith.cmpi ne, %21, %c0_i32_10 : i32
    scf.if %22 {
      %c512_i32_12 = arith.constant 512 : i32
      %26 = arith.muli %arg1, %c512_i32_12 : i32
      %27 = tpu.iota {dimensions = array<i32: 0>} : vector<512x256xi32>
      %28 = vector.broadcast %26 : i32 to vector<512x256xi32>
      %29 = arith.addi %28, %27 : vector<512x256xi32>
      %c256_i32_13 = arith.constant 256 : i32
      %30 = arith.muli %arg0, %c256_i32_13 : i32
      %31 = tpu.iota {dimensions = array<i32: 1>} : vector<512x256xi32>
      %32 = vector.broadcast %30 : i32 to vector<512x256xi32>
      %33 = arith.addi %32, %31 : vector<512x256xi32>
      %34 = arith.cmpi ne, %29, %33 : vector<512x256xi32>
      %cst_14 = arith.constant 0.000000e+00 : f32
      %35 = vector.broadcast %cst_14 : f32 to vector<512x256xf32>
      %36 = arith.select %34, %11, %35 : vector<512x256xi1>, vector<512x256xf32>
      %c0_15 = arith.constant 0 : index
      %c0_16 = arith.constant 0 : index
      %37 = vector.load %arg5[%c0_15, %c0_16] : memref<512x1xi32, #tpu.memory_space<vmem>>, vector<512x1xi32>
      %c0_17 = arith.constant 0 : index
      %c0_18 = arith.constant 0 : index
      %38 = vector.load %arg4[%c0_17, %c0_18] : memref<1x256xi32, #tpu.memory_space<vmem>>, vector<1x256xi32>
      %39 = vector.broadcast %37 : vector<512x1xi32> to vector<512x256xi32>
      %40 = vector.broadcast %38 : vector<1x256xi32> to vector<512x256xi32>
      %41 = arith.cmpi eq, %39, %40 : vector<512x256xi32>
      %c0_19 = arith.constant 0 : index
      %c0_20 = arith.constant 0 : index
      %42 = vector.load %arg7[%c0_19, %c0_20] : memref<1x256xf32, #tpu.memory_space<vmem>>, vector<1x256xf32>
      %cst_21 = arith.constant 0.000000e+00 : f32
      %43 = vector.broadcast %cst_21 : f32 to vector<512x256xf32>
      %44 = arith.select %41, %36, %43 : vector<512x256xi1>, vector<512x256xf32>
      %cst_22 = arith.constant dense<0.000000e+00> : vector<256xf32>
      %45 = vector.multi_reduction <add>, %44, %cst_22 [0] : vector<512x256xf32> to vector<256xf32>
      %46 = vector.shape_cast %45 : vector<256xf32> to vector<1x256xf32>
      %47 = arith.addf %42, %46 : vector<1x256xf32>
      %c0_23 = arith.constant 0 : index
      %c0_24 = arith.constant 0 : index
      %48 = vector.load %arg7[%c0_23, %c0_24] : memref<1x256xf32, #tpu.memory_space<vmem>>, vector<1x256xf32>
      tpu.vector_store %arg7[%c0_23, %c0_24], %47 {strides = array<i32>} : memref<1x256xf32, #tpu.memory_space<vmem>>, vector<1x256xf32>,
      %c0_25 = arith.constant 0 : index
      %c0_26 = arith.constant 0 : index
      %49 = vector.load %arg8[%c0_25, %c0_26] : memref<1x256xf32, #tpu.memory_space<vmem>>, vector<1x256xf32>
      %cst_27 = arith.constant dense<0.000000e+00> : vector<256xf32>
      %50 = vector.multi_reduction <add>, %36, %cst_27 [0] : vector<512x256xf32> to vector<256xf32>
      %51 = vector.shape_cast %50 : vector<256xf32> to vector<1x256xf32>
      %52 = arith.addf %49, %51 : vector<1x256xf32>
      %c0_28 = arith.constant 0 : index
      %c0_29 = arith.constant 0 : index
      %53 = vector.load %arg8[%c0_28, %c0_29] : memref<1x256xf32, #tpu.memory_space<vmem>>, vector<1x256xf32>
      tpu.vector_store %arg8[%c0_28, %c0_29], %52 {strides = array<i32>} : memref<1x256xf32, #tpu.memory_space<vmem>>, vector<1x256xf32>,
    } else {
    }
    %true = arith.constant true
    %23 = arith.xori %20, %true : i1
    %24 = arith.extui %23 : i1 to i32
    %c0_i32_11 = arith.constant 0 : i32
    %25 = arith.cmpi ne, %24, %c0_i32_11 : i32
    scf.if %25 {
      %c0_12 = arith.constant 0 : index
      %c0_13 = arith.constant 0 : index
      %26 = vector.load %arg5[%c0_12, %c0_13] : memref<512x1xi32, #tpu.memory_space<vmem>>, vector<512x1xi32>
      %c0_14 = arith.constant 0 : index
      %c0_15 = arith.constant 0 : index
      %27 = vector.load %arg4[%c0_14, %c0_15] : memref<1x256xi32, #tpu.memory_space<vmem>>, vector<1x256xi32>
      %28 = vector.broadcast %26 : vector<512x1xi32> to vector<512x256xi32>
      %29 = vector.broadcast %27 : vector<1x256xi32> to vector<512x256xi32>
      %30 = arith.cmpi eq, %28, %29 : vector<512x256xi32>
      %c0_16 = arith.constant 0 : index
      %c0_17 = arith.constant 0 : index
      %31 = vector.load %arg7[%c0_16, %c0_17] : memref<1x256xf32, #tpu.memory_space<vmem>>, vector<1x256xf32>
      %cst_18 = arith.constant 0.000000e+00 : f32
      %32 = vector.broadcast %cst_18 : f32 to vector<512x256xf32>
      %33 = arith.select %30, %11, %32 : vector<512x256xi1>, vector<512x256xf32>
      %cst_19 = arith.constant dense<0.000000e+00> : vector<256xf32>
      %34 = vector.multi_reduction <add>, %33, %cst_19 [0] : vector<512x256xf32> to vector<256xf32>
      %35 = vector.shape_cast %34 : vector<256xf32> to vector<1x256xf32>
      %36 = arith.addf %31, %35 : vector<1x256xf32>
      %c0_20 = arith.constant 0 : index
      %c0_21 = arith.constant 0 : index
      %37 = vector.load %arg7[%c0_20, %c0_21] : memref<1x256xf32, #tpu.memory_space<vmem>>, vector<1x256xf32>
      tpu.vector_store %arg7[%c0_20, %c0_21], %36 {strides = array<i32>} : memref<1x256xf32, #tpu.memory_space<vmem>>, vector<1x256xf32>,
      %c0_22 = arith.constant 0 : index
      %c0_23 = arith.constant 0 : index
      %38 = vector.load %arg8[%c0_22, %c0_23] : memref<1x256xf32, #tpu.memory_space<vmem>>, vector<1x256xf32>
      %cst_24 = arith.constant dense<0.000000e+00> : vector<256xf32>
      %39 = vector.multi_reduction <add>, %11, %cst_24 [0] : vector<512x256xf32> to vector<256xf32>
      %40 = vector.shape_cast %39 : vector<256xf32> to vector<1x256xf32>
      %41 = arith.addf %38, %40 : vector<1x256xf32>
      %c0_25 = arith.constant 0 : index
      %c0_26 = arith.constant 0 : index
      %42 = vector.load %arg8[%c0_25, %c0_26] : memref<1x256xf32, #tpu.memory_space<vmem>>, vector<1x256xf32>
      tpu.vector_store %arg8[%c0_25, %c0_26], %41 {strides = array<i32>} : memref<1x256xf32, #tpu.memory_space<vmem>>, vector<1x256xf32>,
    } else {
    }
    return
  }
  func.func @transform_0(%arg0: i32, %arg1: i32) -> (i32, i32) {
    %c0_i32 = arith.constant 0 : i32
    %c0_i32_0 = arith.constant 0 : i32
    return %arg0, %c0_i32 : i32, i32
  }
  func.func @transform_1(%arg0: i32, %arg1: i32) -> (i32, i32) {
    %c0_i32 = arith.constant 0 : i32
    %c0_i32_0 = arith.constant 0 : i32
    return %arg1, %c0_i32 : i32, i32
  }
  func.func @transform_2(%arg0: i32, %arg1: i32) -> (i32, i32) {
    %c0_i32 = arith.constant 0 : i32
    %c0_i32_0 = arith.constant 0 : i32
    return %c0_i32, %arg0 : i32, i32
  }
  func.func @transform_3(%arg0: i32, %arg1: i32) -> (i32, i32) {
    %c0_i32 = arith.constant 0 : i32
    %c0_i32_0 = arith.constant 0 : i32
    return %arg1, %c0_i32 : i32, i32
  }
  func.func @transform_4(%arg0: i32, %arg1: i32) -> (i32, i32) {
    %c0_i32 = arith.constant 0 : i32
    %c0_i32_0 = arith.constant 0 : i32
    return %arg1, %c0_i32 : i32, i32
  }
  func.func @transform_5(%arg0: i32, %arg1: i32) -> (i32, i32) {
    %c0_i32 = arith.constant 0 : i32
    %c0_i32_0 = arith.constant 0 : i32
    return %c0_i32, %arg0 : i32, i32
  }
  func.func @transform_6(%arg0: i32, %arg1: i32) -> (i32, i32) {
    %c0_i32 = arith.constant 0 : i32
    %c0_i32_0 = arith.constant 0 : i32
    return %c0_i32, %arg0 : i32, i32
  }
}

</mosaic_0001>

<llo_original>
// kernel: contrast_loss_point_cloud_intra_batch.1
$region0: #{contrast_loss_point_cloud_intra_batch.1}
  #allocation0 [shape = 'u32[]', space=smem, size = 0x4, offset = 0x4, fixed_abs, tag = 'smem constant byte address 0x4 - core index']
  #allocation1 [shape = 'u32[72,128]{1,0:T(1,128)}', space=vmem, size = 0x9000, scoped, tag = 'internal scratch']
  %s0 = inlined_call_operand.vmem [shape: bf16[512,32], index: 0, kind: input, shape index: {}, may-alias: {0,1}]
  %s1 = inlined_call_operand.vmem [shape: bf16[512,32], index: 1, kind: input, shape index: {}, may-alias: {0,1}]
  %s2 = inlined_call_operand.vmem [shape: s32[1,512], index: 2, kind: input, shape index: {}]
  %s3 = inlined_call_operand.vmem [shape: s32[512,1], index: 3, kind: input, shape index: {}]
  %s4 = inlined_call_operand.vmem [shape: f32[512,1], index: 4, kind: input, shape index: {}]
  %s5 = inlined_call_operand.vmem [shape: f32[1,512], index: 5, kind: output, shape index: {0}]
  %s6 = inlined_call_operand.vmem [shape: f32[1,512], index: 6, kind: output, shape index: {1}]
  %7 = xla_tuple %s5, %s6
  %s8 = sld [smem:[#allocation0]]
  $region73: #{contrast_loss_point_cloud_intra_batch.1} parent=0
    _
  %s10 = ssub.s32 1, %s8
  %s11 = scalar_select 0, %s10, %s8
  loop: start=0, step=1, limit=4
  $region2: #{contrast_loss_point_cloud_intra_batch.1} parent=0 // loop_pre_header
    _
  $region3: #{contrast_loss_point_cloud_intra_batch.1} parent=0 // loop_header
    %s13 = sphi 0, %s17
    %p14 = scmp.ge.s32.totalorder %s13, 4
    %s20 = sphi 0, %s32
    %s21 = sphi 0, %s28
    %s22 = sphi 0, %s20
    %s23 = sphi 0, %s21
    %s24 = sphi 0, %s22
    %s25 = sphi 0, %s23
    %s35 = sphi 0, %s37
    %s38 = sphi 0, %s35
    %s39 = sphi 0, %s38
    %s55 = sphi 0, %s39
    %s61 = sphi 0, %s63
    %s64 = sphi 0, %s61
    %s65 = sphi 0, %s64
    %s81 = sphi 0, %s65
    %s87 = sphi 0, %s89
    %s90 = sphi 0, %s87
    %s91 = sphi 0, %s90
    %s107 = sphi 0, %s91
    %s113 = sphi 0, %s115
    %s116 = sphi 0, %s113
    %s117 = sphi 0, %s116
    %s133 = sphi 0, %s117
    %s139 = sphi 0, %s141
    %s142 = sphi 0, %s139
    %s143 = sphi 0, %s142
    %s159 = sphi 0, %s143
    %s165 = sphi 0, %s167
    %s168 = sphi 0, %s165
    %s169 = sphi 0, %s168
    %s185 = sphi 0, %s169
    %s191 = sphi 0, %s193
    %s194 = sphi 0, %s191
    %s195 = sphi 0, %s194
    %s211 = sphi 0, %s195
  $region4: #{contrast_loss_point_cloud_intra_batch.1} parent=0 // loop_header_branch
    %16 = sbr.rel (%p14) target = $region8
  $region5: #{contrast_loss_point_cloud_intra_batch.1} parent=0 // loop_body
    %s18 = ssub.s32 %s13, 1
    %s19 = ssub.s32 %s13, 2
    %s26 = sadd.s32 1, %s21
    %p27 = scmp.ge.s32.totalorder %s26, 1
    %s28 = scalar_select %p27, 0, %s26
    %s29 = sadd.s32 1, %s20
    %s30 = scalar_select %p27, %s29, %s20
    %p31 = scmp.ge.s32.totalorder %s30, 2
    %s32 = scalar_select %p31, 0, %s30
    %s33 = ssub.s32 %s20, %s32
    %p34 = scmp.eq.s32.totalorder %s33, 0
    %s36 = sadd.s32 %s35, 1
    %s37 = scalar_select %p34, %s35, %s36
    %p40 = pneg %p34
    %p41 = scmp.eq.s32.totalorder %s13, 1
    %p42 = por %p40, %p41
    %p43 = scmp.ne.s32.totalorder %s35, %s38
    %p44 = scmp.eq.s32.totalorder %s13, 0
    %p45 = por %p43, %p44
    %p46 = scmp.ne.s32.totalorder %s35, %s38
    %p47 = scmp.eq.s32.totalorder %s18, 1
    %p48 = por %p46, %p47
    %p49 = scmp.ne.s32.totalorder %s38, %s39
    %p50 = scmp.eq.s32.totalorder %s18, 0
    %p51 = por %p49, %p50
    %p52 = scmp.ne.s32.totalorder %s38, %s39
    %p53 = scmp.eq.s32.totalorder %s19, 1
    %p54 = por %p52, %p53
    %p56 = scmp.ne.s32.totalorder %s39, %s55
    %p57 = scmp.eq.s32.totalorder %s19, 0
    %p58 = por %p56, %p57
    %s59 = ssub.s32 %s21, %s28
    %p60 = scmp.eq.s32.totalorder %s59, 0
    %s62 = sadd.s32 %s61, 1
    %s63 = scalar_select %p60, %s61, %s62
    %p66 = pneg %p60
    %p67 = scmp.eq.s32.totalorder %s13, 1
    %p68 = por %p66, %p67
    %p69 = scmp.ne.s32.totalorder %s61, %s64
    %p70 = scmp.eq.s32.totalorder %s13, 0
    %p71 = por %p69, %p70
    %p72 = scmp.ne.s32.totalorder %s61, %s64
    %p73 = scmp.eq.s32.totalorder %s18, 1
    %p74 = por %p72, %p73
    %p75 = scmp.ne.s32.totalorder %s64, %s65
    %p76 = scmp.eq.s32.totalorder %s18, 0
    %p77 = por %p75, %p76
    %p78 = scmp.ne.s32.totalorder %s64, %s65
    %p79 = scmp.eq.s32.totalorder %s19, 1
    %p80 = por %p78, %p79
    %p82 = scmp.ne.s32.totalorder %s65, %s81
    %p83 = scmp.eq.s32.totalorder %s19, 0
    %p84 = por %p82, %p83
    %s85 = ssub.s32 %s20, %s32
    %p86 = scmp.eq.s32.totalorder %s85, 0
    %s88 = sadd.s32 %s87, 1
    %s89 = scalar_select %p86, %s87, %s88
    %p92 = pneg %p86
    %p93 = scmp.eq.s32.totalorder %s13, 1
    %p94 = por %p92, %p93
    %p95 = scmp.ne.s32.totalorder %s87, %s90
    %p96 = scmp.eq.s32.totalorder %s13, 0
    %p97 = por %p95, %p96
    %p98 = scmp.ne.s32.totalorder %s87, %s90
    %p99 = scmp.eq.s32.totalorder %s18, 1
    %p100 = por %p98, %p99
    %p101 = scmp.ne.s32.totalorder %s90, %s91
    %p102 = scmp.eq.s32.totalorder %s18, 0
    %p103 = por %p101, %p102
    %p104 = scmp.ne.s32.totalorder %s90, %s91
    %p105 = scmp.eq.s32.totalorder %s19, 1
    %p106 = por %p104, %p105
    %p108 = scmp.ne.s32.totalorder %s91, %s107
    %p109 = scmp.eq.s32.totalorder %s19, 0
    %p110 = por %p108, %p109
    %s111 = ssub.s32 %s21, %s28
    %p112 = scmp.eq.s32.totalorder %s111, 0
    %s114 = sadd.s32 %s113, 1
    %s115 = scalar_select %p112, %s113, %s114
    %p118 = pneg %p112
    %p119 = scmp.eq.s32.totalorder %s13, 1
    %p120 = por %p118, %p119
    %p121 = scmp.ne.s32.totalorder %s113, %s116
    %p122 = scmp.eq.s32.totalorder %s13, 0
    %p123 = por %p121, %p122
    %p124 = scmp.ne.s32.totalorder %s113, %s116
    %p125 = scmp.eq.s32.totalorder %s18, 1
    %p126 = por %p124, %p125
    %p127 = scmp.ne.s32.totalorder %s116, %s117
    %p128 = scmp.eq.s32.totalorder %s18, 0
    %p129 = por %p127, %p128
    %p130 = scmp.ne.s32.totalorder %s116, %s117
    %p131 = scmp.eq.s32.totalorder %s19, 1
    %p132 = por %p130, %p131
    %p134 = scmp.ne.s32.totalorder %s117, %s133
    %p135 = scmp.eq.s32.totalorder %s19, 0
    %p136 = por %p134, %p135
    %s137 = ssub.s32 %s21, %s28
    %p138 = scmp.eq.s32.totalorder %s137, 0
    %s140 = sadd.s32 %s139, 1
    %s141 = scalar_select %p138, %s139, %s140
    %p144 = pneg %p138
    %p145 = scmp.eq.s32.totalorder %s13, 1
    %p146 = por %p144, %p145
    %p147 = scmp.ne.s32.totalorder %s139, %s142
    %p148 = scmp.eq.s32.totalorder %s13, 0
    %p149 = por %p147, %p148
    %p150 = scmp.ne.s32.totalorder %s139, %s142
    %p151 = scmp.eq.s32.totalorder %s18, 1
    %p152 = por %p150, %p151
    %p153 = scmp.ne.s32.totalorder %s142, %s143
    %p154 = scmp.eq.s32.totalorder %s18, 0
    %p155 = por %p153, %p154
    %p156 = scmp.ne.s32.totalorder %s142, %s143
    %p157 = scmp.eq.s32.totalorder %s19, 1
    %p158 = por %p156, %p157
    %p160 = scmp.ne.s32.totalorder %s143, %s159
    %p161 = scmp.eq.s32.totalorder %s19, 0
    %p162 = por %p160, %p161
    %s163 = ssub.s32 %s20, %s32
    %p164 = scmp.eq.s32.totalorder %s163, 0
    %s166 = sadd.s32 %s165, 1
    %s167 = scalar_select %p164, %s165, %s166
    %p170 = pneg %p164
    %p171 = scmp.eq.s32.totalorder %s13, 1
    %p172 = por %p170, %p171
    %p173 = scmp.ne.s32.totalorder %s165, %s168
    %p174 = scmp.eq.s32.totalorder %s13, 0
    %p175 = por %p173, %p174
    %p176 = scmp.ne.s32.totalorder %s165, %s168
    %p177 = scmp.eq.s32.totalorder %s18, 1
    %p178 = por %p176, %p177
    %p179 = scmp.ne.s32.totalorder %s168, %s169
    %p180 = scmp.eq.s32.totalorder %s18, 0
    %p181 = por %p179, %p180
    %p182 = scmp.ne.s32.totalorder %s168, %s169
    %p183 = scmp.eq.s32.totalorder %s19, 1
    %p184 = por %p182, %p183
    %p186 = scmp.ne.s32.totalorder %s169, %s185
    %p187 = scmp.eq.s32.totalorder %s19, 0
    %p188 = por %p186, %p187
    %s189 = ssub.s32 %s20, %s32
    %p190 = scmp.eq.s32.totalorder %s189, 0
    %s192 = sadd.s32 %s191, 1
    %s193 = scalar_select %p190, %s191, %s192
    %p196 = pneg %p190
    %p197 = scmp.eq.s32.totalorder %s13, 1
    %p198 = por %p196, %p197
    %p199 = scmp.ne.s32.totalorder %s191, %s194
    %p200 = scmp.eq.s32.totalorder %s13, 0
    %p201 = por %p199, %p200
    %p202 = scmp.ne.s32.totalorder %s191, %s194
    %p203 = scmp.eq.s32.totalorder %s18, 1
    %p204 = por %p202, %p203
    %p205 = scmp.ne.s32.totalorder %s194, %s195
    %p206 = scmp.eq.s32.totalorder %s18, 0
    %p207 = por %p205, %p206
    %p208 = scmp.ne.s32.totalorder %s194, %s195
    %p209 = scmp.eq.s32.totalorder %s19, 1
    %p210 = por %p208, %p209
    %p212 = scmp.ne.s32.totalorder %s195, %s211
    %p213 = scmp.eq.s32.totalorder %s19, 0
    %p214 = por %p212, %p213
    %p215 = scmp.le.s32.totalorder 1, %s13
    %p216 = scmp.lt.s32.totalorder %s13, 3
    %p217 = pnand %p215, %p216
    %p218 = pneg %p217
    // Predicated region
    $region9: #{contrast_loss_point_cloud_intra_batch.1} parent=5 // pred_check
      _
    $region10: #{contrast_loss_point_cloud_intra_batch.1} parent=5 // pred_check_branch
      %220 = sbr.rel (%p217) target = $region12
    $region11: #{contrast_loss_point_cloud_intra_batch.1} parent=5 // pred_region
      %s221 = ssub.s32 %s13, 1
      // Predicated region
      $region13: #{contrast_loss_point_cloud_intra_batch.1} parent=11 // pred_check
        %p222 = pneg %p77
      $region14: #{contrast_loss_point_cloud_intra_batch.1} parent=11 // pred_check_branch
        %224 = sbr.rel (%p222) target = $region16
      $region15: #{contrast_loss_point_cloud_intra_batch.1} parent=11 // pred_region
        %s225 = smul.u32 64, %s23
        %p226 = scmp.lt.s32.totalorder %s225, 63
        %s227 = scalar_select %p226, %s225, 63
        %s228 = smul.addr %s227, 4
        %s229 = scalar_lea.vmem %s1, %s228
        %s230 = smul.u32 64, %s23
      $region16: #{contrast_loss_point_cloud_intra_batch.1} parent=11 // pred_fallthru
        _
      // Predicated region
      $region17: #{contrast_loss_point_cloud_intra_batch.1} parent=11 // pred_check
        %p231 = pneg %p129
      $region18: #{contrast_loss_point_cloud_intra_batch.1} parent=11 // pred_check_branch
        %233 = sbr.rel (%p231) target = $region20
      $region19: #{contrast_loss_point_cloud_intra_batch.1} parent=11 // pred_region
        %s234 = smul.u32 64, %s23
        %p235 = scmp.lt.s32.totalorder %s234, 63
        %s236 = scalar_select %p235, %s234, 63
        %s237 = smul.addr %s236, 8
        %s238 = scalar_lea.vmem %s3, %s237
        %s239 = smul.u32 64, %s23
      $region20: #{contrast_loss_point_cloud_intra_batch.1} parent=11 // pred_fallthru
        _
      // Predicated region
      $region21: #{contrast_loss_point_cloud_intra_batch.1} parent=11 // pred_check
        %p240 = pneg %p155
      $region22: #{contrast_loss_point_cloud_intra_batch.1} parent=11 // pred_check_branch
        %242 = sbr.rel (%p240) target = $region24
      $region23: #{contrast_loss_point_cloud_intra_batch.1} parent=11 // pred_region
        %s243 = smul.u32 64, %s23
        %p244 = scmp.lt.s32.totalorder %s243, 63
        %s245 = scalar_select %p244, %s243, 63
        %s246 = smul.addr %s245, 8
        %s247 = scalar_lea.vmem %s4, %s246
        %s248 = smul.u32 64, %s23
      $region24: #{contrast_loss_point_cloud_intra_batch.1} parent=11 // pred_fallthru
        _
    $region12: #{contrast_loss_point_cloud_intra_batch.1} parent=5 // pred_fallthru
      _
    %p249 = scmp.lt.s32.totalorder %s13, 2
    // Predicated region
    $region25: #{contrast_loss_point_cloud_intra_batch.1} parent=5 // pred_check
      %p250 = pneg %p249
    $region26: #{contrast_loss_point_cloud_intra_batch.1} parent=5 // pred_check_branch
      %252 = sbr.rel (%p250) target = $region28
    $region27: #{contrast_loss_point_cloud_intra_batch.1} parent=5 // pred_region
      // Predicated region
      $region29: #{contrast_loss_point_cloud_intra_batch.1} parent=27 // pred_check
        %p253 = pneg %p45
      $region30: #{contrast_loss_point_cloud_intra_batch.1} parent=27 // pred_check_branch
        %255 = sbr.rel (%p253) target = $region32
      $region31: #{contrast_loss_point_cloud_intra_batch.1} parent=27 // pred_region
        %s256 = smul.u32 32, %s20
        %p257 = scmp.lt.s32.totalorder %s256, 63
        %s258 = scalar_select %p257, %s256, 63
        %s259 = smul.addr %s258, 4
        %s260 = scalar_lea.vmem %s0, %s259
        %s261 = smul.u32 32, %s20
      $region32: #{contrast_loss_point_cloud_intra_batch.1} parent=27 // pred_fallthru
        _
      // Predicated region
      $region33: #{contrast_loss_point_cloud_intra_batch.1} parent=27 // pred_check
        %p262 = pneg %p97
      $region34: #{contrast_loss_point_cloud_intra_batch.1} parent=27 // pred_check_branch
        %264 = sbr.rel (%p262) target = $region36
      $region35: #{contrast_loss_point_cloud_intra_batch.1} parent=27 // pred_region
        %s265 = smul.u32 2, %s20
        %p266 = scmp.lt.s32.totalorder %s265, 3
        %s267 = scalar_select %p266, %s265, 3
        %s268 = scalar_lea.vmem %s2, %s267
        %s269 = smul.u32 2, %s20
      $region36: #{contrast_loss_point_cloud_intra_batch.1} parent=27 // pred_fallthru
        _
    $region28: #{contrast_loss_point_cloud_intra_batch.1} parent=5 // pred_fallthru
      _
    %p270 = scmp.le.s32.totalorder 1, %s13
    %p271 = scmp.lt.s32.totalorder %s13, 3
    %p272 = pnand %p270, %p271
    %p273 = pneg %p272
    // Predicated region
    $region37: #{contrast_loss_point_cloud_intra_batch.1} parent=5 // pred_check
      _
    $region38: #{contrast_loss_point_cloud_intra_batch.1} parent=5 // pred_check_branch
      %275 = sbr.rel (%p272) target = $region40
    $region39: #{contrast_loss_point_cloud_intra_batch.1} parent=5 // pred_region
      %s276 = ssub.s32 %s13, 1
      %s277 = smul.u32 32, %s22
      %p278 = scmp.lt.s32.totalorder %s277, 63
      %s279 = scalar_select %p278, %s277, 63
      %s280 = smul.addr %s279, 4
      %s281 = scalar_lea.vmem %s0, %s280
      %p282 = pneg %p51
      %p283 = pneg %p48
      %s284 = smul.u32 64, %s23
      %p285 = scmp.lt.s32.totalorder %s284, 63
      %s286 = scalar_select %p285, %s284, 63
      %s287 = smul.addr %s286, 4
      %s288 = scalar_lea.vmem %s1, %s287
      %p289 = pneg %p77
      %p290 = pneg %p74
      %s291 = smul.u32 2, %s22
      %p292 = scmp.lt.s32.totalorder %s291, 3
      %s293 = scalar_select %p292, %s291, 3
      %s294 = scalar_lea.vmem %s2, %s293
      %p295 = pneg %p103
      %p296 = pneg %p100
      %s297 = smul.u32 64, %s23
      %p298 = scmp.lt.s32.totalorder %s297, 63
      %s299 = scalar_select %p298, %s297, 63
      %s300 = smul.addr %s299, 8
      %s301 = scalar_lea.vmem %s3, %s300
      %p302 = pneg %p129
      %p303 = pneg %p126
      %s304 = smul.u32 64, %s23
      %p305 = scmp.lt.s32.totalorder %s304, 63
      %s306 = scalar_select %p305, %s304, 63
      %s307 = smul.addr %s306, 8
      %s308 = scalar_lea.vmem %s4, %s307
      %p309 = pneg %p155
      %p310 = pneg %p152
      %p311 = pneg %p181
      %p312 = pneg %p178
      %s313 = smul.u32 2, %s22
      %p314 = scmp.lt.s32.totalorder %s313, 3
      %s315 = scalar_select %p314, %s313, 3
      %s316 = scalar_lea.vmem %s5, %s315
      %p317 = pneg %p207
      %p318 = pneg %p204
      %s319 = smul.u32 2, %s22
      %p320 = scmp.lt.s32.totalorder %s319, 3
      %s321 = scalar_select %p320, %s319, 3
      %s322 = scalar_lea.vmem %s6, %s321
      %s323 = smul.u32 32, %s22
      %p324 = scmp.lt.s32.totalorder %s323, 63
      %s325 = scalar_select %p324, %s323, 63
      %s326 = smul.addr %s325, 4
      %s327 = scalar_lea.vmem %s0, %s326
      %s328 = smul.u32 32, %s22
      %s329 = smul.u32 64, %s23
      %p330 = scmp.lt.s32.totalorder %s329, 63
      %s331 = scalar_select %p330, %s329, 63
      %s332 = smul.addr %s331, 4
      %s333 = scalar_lea.vmem %s1, %s332
      %s334 = smul.u32 64, %s23
      %s335 = smul.u32 2, %s22
      %p336 = scmp.lt.s32.totalorder %s335, 3
      %s337 = scalar_select %p336, %s335, 3
      %s338 = scalar_lea.vmem %s2, %s337
      %s339 = smul.u32 2, %s22
      %s340 = smul.u32 64, %s23
      %p341 = scmp.lt.s32.totalorder %s340, 63
      %s342 = scalar_select %p341, %s340, 63
      %s343 = smul.addr %s342, 8
      %s344 = scalar_lea.vmem %s3, %s343
      %s345 = smul.u32 64, %s23
      %s346 = smul.u32 64, %s23
      %p347 = scmp.lt.s32.totalorder %s346, 63
      %s348 = scalar_select %p347, %s346, 63
      %s349 = smul.addr %s348, 8
      %s350 = scalar_lea.vmem %s4, %s349
      %s351 = smul.u32 64, %s23
      %s352 = smul.u32 2, %s22
      %p353 = scmp.lt.s32.totalorder %s352, 3
      %s354 = scalar_select %p353, %s352, 3
      %s355 = scalar_lea.vmem %s5, %s354
      %s356 = smul.u32 2, %s22
      %s357 = smul.u32 2, %s22
      %p358 = scmp.lt.s32.totalorder %s357, 3
      %s359 = scalar_select %p358, %s357, 3
      %s360 = scalar_lea.vmem %s6, %s359
      %s361 = smul.u32 2, %s22
      %p362 = scmp.eq.s32.totalorder %s23, 0
      // Predicated region
      $region41: #{contrast_loss_point_cloud_intra_batch.1} parent=39 // pred_check
        %p363 = pneg %p362
      $region42: #{contrast_loss_point_cloud_intra_batch.1} parent=39 // pred_check_branch
        %365 = sbr.rel (%p363) target = $region44
      $region43: #{contrast_loss_point_cloud_intra_batch.1} parent=39 // pred_region
        %v366 = vlaneseq
        %vm367 = vcmp.ge.s32.totalorder %v366, 0
        %vm368 = vcmp.lt.s32.totalorder %v366, 256
        %vm369 = vmand %vm367, %vm368
        %370 = vst.msk [vmem:[%s355] sm:$0x3] %vm369, 0.0
        %371 = vst.msk [vmem:[%s360] sm:$0x3] %vm369, 0.0
      $region44: #{contrast_loss_point_cloud_intra_batch.1} parent=39 // pred_fallthru
        _
      %v372 = vld [vmem:[%s327] sm:$0xf]
      %v373 = vld [vmem:[%s327 + $0x4] sm:$0xf]
      %v374 = vld [vmem:[%s327 + $0x8] sm:$0xf]
      %v375 = vld [vmem:[%s327 + $0xc] sm:$0xf]
      %v376 = vld [vmem:[%s327 + $0x10] sm:$0xf]
      %v377 = vld [vmem:[%s327 + $0x14] sm:$0xf]
      %v378 = vld [vmem:[%s327 + $0x18] sm:$0xf]
      %v379 = vld [vmem:[%s327 + $0x1c] sm:$0xf]
      %v380 = vld [vmem:[%s327 + $0x20] sm:$0xf]
      %v381 = vld [vmem:[%s327 + $0x24] sm:$0xf]
      %v382 = vld [vmem:[%s327 + $0x28] sm:$0xf]
      %v383 = vld [vmem:[%s327 + $0x2c] sm:$0xf]
      %v384 = vld [vmem:[%s327 + $0x30] sm:$0xf]
      %v385 = vld [vmem:[%s327 + $0x34] sm:$0xf]
      %v386 = vld [vmem:[%s327 + $0x38] sm:$0xf]
      %v387 = vld [vmem:[%s327 + $0x3c] sm:$0xf]
      %v388 = vld [vmem:[%s327 + $0x40] sm:$0xf]
      %v389 = vld [vmem:[%s327 + $0x44] sm:$0xf]
      %v390 = vld [vmem:[%s327 + $0x48] sm:$0xf]
      %v391 = vld [vmem:[%s327 + $0x4c] sm:$0xf]
      %v392 = vld [vmem:[%s327 + $0x50] sm:$0xf]
      %v393 = vld [vmem:[%s327 + $0x54] sm:$0xf]
      %v394 = vld [vmem:[%s327 + $0x58] sm:$0xf]
      %v395 = vld [vmem:[%s327 + $0x5c] sm:$0xf]
      %v396 = vld [vmem:[%s327 + $0x60] sm:$0xf]
      %v397 = vld [vmem:[%s327 + $0x64] sm:$0xf]
      %v398 = vld [vmem:[%s327 + $0x68] sm:$0xf]
      %v399 = vld [vmem:[%s327 + $0x6c] sm:$0xf]
      %v400 = vld [vmem:[%s327 + $0x70] sm:$0xf]
      %v401 = vld [vmem:[%s327 + $0x74] sm:$0xf]
      %v402 = vld [vmem:[%s327 + $0x78] sm:$0xf]
      %v403 = vld [vmem:[%s327 + $0x7c] sm:$0xf]
      %v404 = vld [vmem:[%s333] sm:$0xf]
      %v405 = vld [vmem:[%s333 + $0x4] sm:$0xf]
      %v406 = vld [vmem:[%s333 + $0x8] sm:$0xf]
      %v407 = vld [vmem:[%s333 + $0xc] sm:$0xf]
      %v408 = vld [vmem:[%s333 + $0x10] sm:$0xf]
      %v409 = vld [vmem:[%s333 + $0x14] sm:$0xf]
      %v410 = vld [vmem:[%s333 + $0x18] sm:$0xf]
      %v411 = vld [vmem:[%s333 + $0x1c] sm:$0xf]
      %v412 = vld [vmem:[%s333 + $0x20] sm:$0xf]
      %v413 = vld [vmem:[%s333 + $0x24] sm:$0xf]
      %v414 = vld [vmem:[%s333 + $0x28] sm:$0xf]
      %v415 = vld [vmem:[%s333 + $0x2c] sm:$0xf]
      %v416 = vld [vmem:[%s333 + $0x30] sm:$0xf]
      %v417 = vld [vmem:[%s333 + $0x34] sm:$0xf]
      %v418 = vld [vmem:[%s333 + $0x38] sm:$0xf]
      %v419 = vld [vmem:[%s333 + $0x3c] sm:$0xf]
      %v420 = vld [vmem:[%s333 + $0x40] sm:$0xf]
      %v421 = vld [vmem:[%s333 + $0x44] sm:$0xf]
      %v422 = vld [vmem:[%s333 + $0x48] sm:$0xf]
      %v423 = vld [vmem:[%s333 + $0x4c] sm:$0xf]
      %v424 = vld [vmem:[%s333 + $0x50] sm:$0xf]
      %v425 = vld [vmem:[%s333 + $0x54] sm:$0xf]
      %v426 = vld [vmem:[%s333 + $0x58] sm:$0xf]
      %v427 = vld [vmem:[%s333 + $0x5c] sm:$0xf]
      %v428 = vld [vmem:[%s333 + $0x60] sm:$0xf]
      %v429 = vld [vmem:[%s333 + $0x64] sm:$0xf]
      %v430 = vld [vmem:[%s333 + $0x68] sm:$0xf]
      %v431 = vld [vmem:[%s333 + $0x6c] sm:$0xf]
      %v432 = vld [vmem:[%s333 + $0x70] sm:$0xf]
      %v433 = vld [vmem:[%s333 + $0x74] sm:$0xf]
      %v434 = vld [vmem:[%s333 + $0x78] sm:$0xf]
      %v435 = vld [vmem:[%s333 + $0x7c] sm:$0xf]
      %v436 = vld [vmem:[%s333 + $0x80] sm:$0xf]
      %v437 = vld [vmem:[%s333 + $0x84] sm:$0xf]
      %v438 = vld [vmem:[%s333 + $0x88] sm:$0xf]
      %v439 = vld [vmem:[%s333 + $0x8c] sm:$0xf]
      %v440 = vld [vmem:[%s333 + $0x90] sm:$0xf]
      %v441 = vld [vmem:[%s333 + $0x94] sm:$0xf]
      %v442 = vld [vmem:[%s333 + $0x98] sm:$0xf]
      %v443 = vld [vmem:[%s333 + $0x9c] sm:$0xf]
      %v444 = vld [vmem:[%s333 + $0xa0] sm:$0xf]
      %v445 = vld [vmem:[%s333 + $0xa4] sm:$0xf]
      %v446 = vld [vmem:[%s333 + $0xa8] sm:$0xf]
      %v447 = vld [vmem:[%s333 + $0xac] sm:$0xf]
      %v448 = vld [vmem:[%s333 + $0xb0] sm:$0xf]
      %v449 = vld [vmem:[%s333 + $0xb4] sm:$0xf]
      %v450 = vld [vmem:[%s333 + $0xb8] sm:$0xf]
      %v451 = vld [vmem:[%s333 + $0xbc] sm:$0xf]
      %v452 = vld [vmem:[%s333 + $0xc0] sm:$0xf]
      %v453 = vld [vmem:[%s333 + $0xc4] sm:$0xf]
      %v454 = vld [vmem:[%s333 + $0xc8] sm:$0xf]
      %v455 = vld [vmem:[%s333 + $0xcc] sm:$0xf]
      %v456 = vld [vmem:[%s333 + $0xd0] sm:$0xf]
      %v457 = vld [vmem:[%s333 + $0xd4] sm:$0xf]
      %v458 = vld [vmem:[%s333 + $0xd8] sm:$0xf]
      %v459 = vld [vmem:[%s333 + $0xdc] sm:$0xf]
      %v460 = vld [vmem:[%s333 + $0xe0] sm:$0xf]
      %v461 = vld [vmem:[%s333 + $0xe4] sm:$0xf]
      %v462 = vld [vmem:[%s333 + $0xe8] sm:$0xf]
      %v463 = vld [vmem:[%s333 + $0xec] sm:$0xf]
      %v464 = vld [vmem:[%s333 + $0xf0] sm:$0xf]
      %v465 = vld [vmem:[%s333 + $0xf4] sm:$0xf]
      %v466 = vld [vmem:[%s333 + $0xf8] sm:$0xf]
      %v467 = vld [vmem:[%s333 + $0xfc] sm:$0xf]
      %v532 = vunpack.c.l.b16 %v404
      %v533 = vunpack.c.l.b16 %v405
      %v534 = vunpack.c.l.b16 %v406
      %v535 = vunpack.c.l.b16 %v407
      %v536 = vunpack.c.l.b16 %v408
      %v537 = vunpack.c.l.b16 %v409
      %v538 = vunpack.c.l.b16 %v410
      %v539 = vunpack.c.l.b16 %v411
      %v540 = vunpack.c.l.b16 %v412
      %v541 = vunpack.c.l.b16 %v413
      %v542 = vunpack.c.l.b16 %v414
      %v543 = vunpack.c.l.b16 %v415
      %v544 = vunpack.c.l.b16 %v416
      %v545 = vunpack.c.l.b16 %v417
      %v546 = vunpack.c.l.b16 %v418
      %v547 = vunpack.c.l.b16 %v419
      %v548 = vunpack.c.l.b16 %v420
      %v549 = vunpack.c.l.b16 %v421
      %v550 = vunpack.c.l.b16 %v422
      %v551 = vunpack.c.l.b16 %v423
      %v552 = vunpack.c.l.b16 %v424
      %v553 = vunpack.c.l.b16 %v425
      %v554 = vunpack.c.l.b16 %v426
      %v555 = vunpack.c.l.b16 %v427
      %v556 = vunpack.c.l.b16 %v428
      %v557 = vunpack.c.l.b16 %v429
      %v558 = vunpack.c.l.b16 %v430
      %v559 = vunpack.c.l.b16 %v431
      %v560 = vunpack.c.l.b16 %v432
      %v561 = vunpack.c.l.b16 %v433
      %v562 = vunpack.c.l.b16 %v434
      %v563 = vunpack.c.l.b16 %v435
      %v564 = vunpack.c.l.b16 %v436
      %v565 = vunpack.c.l.b16 %v437
      %v566 = vunpack.c.l.b16 %v438
      %v567 = vunpack.c.l.b16 %v439
      %v568 = vunpack.c.l.b16 %v440
      %v569 = vunpack.c.l.b16 %v441
      %v570 = vunpack.c.l.b16 %v442
      %v571 = vunpack.c.l.b16 %v443
      %v572 = vunpack.c.l.b16 %v444
      %v573 = vunpack.c.l.b16 %v445
      %v574 = vunpack.c.l.b16 %v446
      %v575 = vunpack.c.l.b16 %v447
      %v576 = vunpack.c.l.b16 %v448
      %v577 = vunpack.c.l.b16 %v449
      %v578 = vunpack.c.l.b16 %v450
      %v579 = vunpack.c.l.b16 %v451
      %v580 = vunpack.c.l.b16 %v452
      %v581 = vunpack.c.l.b16 %v453
      %v582 = vunpack.c.l.b16 %v454
      %v583 = vunpack.c.l.b16 %v455
      %v584 = vunpack.c.l.b16 %v456
      %v585 = vunpack.c.l.b16 %v457
      %v586 = vunpack.c.l.b16 %v458
      %v587 = vunpack.c.l.b16 %v459
      %v588 = vunpack.c.l.b16 %v460
      %v589 = vunpack.c.l.b16 %v461
      %v590 = vunpack.c.l.b16 %v462
      %v591 = vunpack.c.l.b16 %v463
      %v592 = vunpack.c.l.b16 %v464
      %v593 = vunpack.c.l.b16 %v465
      %v594 = vunpack.c.l.b16 %v466
      %v595 = vunpack.c.l.b16 %v467
      %v596 = vpack.c.b16 %v533, %v532
      %v597 = vpack.c.b16 %v535, %v534
      %v598 = vpack.c.b16 %v537, %v536
      %v599 = vpack.c.b16 %v539, %v538
      %v600 = vpack.c.b16 %v541, %v540
      %v601 = vpack.c.b16 %v543, %v542
      %v602 = vpack.c.b16 %v545, %v544
      %v603 = vpack.c.b16 %v547, %v546
      %v604 = vpack.c.b16 %v549, %v548
      %v605 = vpack.c.b16 %v551, %v550
      %v606 = vpack.c.b16 %v553, %v552
      %v607 = vpack.c.b16 %v555, %v554
      %v608 = vpack.c.b16 %v557, %v556
      %v609 = vpack.c.b16 %v559, %v558
      %v610 = vpack.c.b16 %v561, %v560
      %v611 = vpack.c.b16 %v563, %v562
      %v612 = vpack.c.b16 %v565, %v564
      %v613 = vpack.c.b16 %v567, %v566
      %v614 = vpack.c.b16 %v569, %v568
      %v615 = vpack.c.b16 %v571, %v570
      %v616 = vpack.c.b16 %v573, %v572
      %v617 = vpack.c.b16 %v575, %v574
      %v618 = vpack.c.b16 %v577, %v576
      %v619 = vpack.c.b16 %v579, %v578
      %v620 = vpack.c.b16 %v581, %v580
      %v621 = vpack.c.b16 %v583, %v582
      %v622 = vpack.c.b16 %v585, %v584
      %v623 = vpack.c.b16 %v587, %v586
      %v624 = vpack.c.b16 %v589, %v588
      %v625 = vpack.c.b16 %v591, %v590
      %v626 = vpack.c.b16 %v593, %v592
      %v627 = vpack.c.b16 %v595, %v594
      %v660 = vunpack.c.l.b16 %v372
      %v661 = vunpack.c.l.b16 %v373
      %v662 = vunpack.c.l.b16 %v374
      %v663 = vunpack.c.l.b16 %v375
      %v664 = vunpack.c.l.b16 %v376
      %v665 = vunpack.c.l.b16 %v377
      %v666 = vunpack.c.l.b16 %v378
      %v667 = vunpack.c.l.b16 %v379
      %v668 = vunpack.c.l.b16 %v380
      %v669 = vunpack.c.l.b16 %v381
      %v670 = vunpack.c.l.b16 %v382
      %v671 = vunpack.c.l.b16 %v383
      %v672 = vunpack.c.l.b16 %v384
      %v673 = vunpack.c.l.b16 %v385
      %v674 = vunpack.c.l.b16 %v386
      %v675 = vunpack.c.l.b16 %v387
      %v676 = vunpack.c.l.b16 %v388
      %v677 = vunpack.c.l.b16 %v389
      %v678 = vunpack.c.l.b16 %v390
      %v679 = vunpack.c.l.b16 %v391
      %v680 = vunpack.c.l.b16 %v392
      %v681 = vunpack.c.l.b16 %v393
      %v682 = vunpack.c.l.b16 %v394
      %v683 = vunpack.c.l.b16 %v395
      %v684 = vunpack.c.l.b16 %v396
      %v685 = vunpack.c.l.b16 %v397
      %v686 = vunpack.c.l.b16 %v398
      %v687 = vunpack.c.l.b16 %v399
      %v688 = vunpack.c.l.b16 %v400
      %v689 = vunpack.c.l.b16 %v401
      %v690 = vunpack.c.l.b16 %v402
      %v691 = vunpack.c.l.b16 %v403
      %v692 = vpack.c.b16 %v661, %v660
      %v693 = vpack.c.b16 %v663, %v662
      %v694 = vpack.c.b16 %v665, %v664
      %v695 = vpack.c.b16 %v667, %v666
      %v696 = vpack.c.b16 %v669, %v668
      %v697 = vpack.c.b16 %v671, %v670
      %v698 = vpack.c.b16 %v673, %v672
      %v699 = vpack.c.b16 %v675, %v674
      %v700 = vpack.c.b16 %v677, %v676
      %v701 = vpack.c.b16 %v679, %v678
      %v702 = vpack.c.b16 %v681, %v680
      %v703 = vpack.c.b16 %v683, %v682
      %v704 = vpack.c.b16 %v685, %v684
      %v705 = vpack.c.b16 %v687, %v686
      %v706 = vpack.c.b16 %v689, %v688
      %v707 = vpack.c.b16 %v691, %v690
      %vm708 = vcmask 261120
      %v710 = vsel %vm708, %v596, 0
      %v713 = vsel %vm708, %v597, 0
      %v716 = vsel %vm708, %v598, 0
      %v719 = vsel %vm708, %v599, 0
      %v722 = vsel %vm708, %v600, 0
      %v725 = vsel %vm708, %v601, 0
      %v728 = vsel %vm708, %v602, 0
      %v731 = vsel %vm708, %v603, 0
      %v734 = vsel %vm708, %v604, 0
      %v737 = vsel %vm708, %v605, 0
      %v740 = vsel %vm708, %v606, 0
      %v743 = vsel %vm708, %v607, 0
      %v746 = vsel %vm708, %v608, 0
      %v749 = vsel %vm708, %v609, 0
      %v752 = vsel %vm708, %v610, 0
      %v755 = vsel %vm708, %v611, 0
      %v758 = vsel %vm708, %v612, 0
      %v761 = vsel %vm708, %v613, 0
      %v764 = vsel %vm708, %v614, 0
      %v767 = vsel %vm708, %v615, 0
      %v770 = vsel %vm708, %v616, 0
      %v773 = vsel %vm708, %v617, 0
      %v776 = vsel %vm708, %v618, 0
      %v779 = vsel %vm708, %v619, 0
      %v782 = vsel %vm708, %v620, 0
      %v785 = vsel %vm708, %v621, 0
      %v788 = vsel %vm708, %v622, 0
      %v791 = vsel %vm708, %v623, 0
      %v794 = vsel %vm708, %v624, 0
      %v797 = vsel %vm708, %v625, 0
      %v800 = vsel %vm708, %v626, 0
      %v803 = vsel %vm708, %v627, 0
      %v806 = vsel %vm708, %v692, 0
      %v809 = vsel %vm708, %v693, 0
      %v812 = vsel %vm708, %v694, 0
      %v815 = vsel %vm708, %v695, 0
      %v818 = vsel %vm708, %v696, 0
      %v821 = vsel %vm708, %v697, 0
      %v824 = vsel %vm708, %v698, 0
      %v827 = vsel %vm708, %v699, 0
      %v830 = vsel %vm708, %v700, 0
      %v833 = vsel %vm708, %v701, 0
      %v836 = vsel %vm708, %v702, 0
      %v839 = vsel %vm708, %v703, 0
      %v842 = vsel %vm708, %v704, 0
      %v845 = vsel %vm708, %v705, 0
      %v848 = vsel %vm708, %v706, 0
      %v851 = vsel %vm708, %v707, 0
      %853 = vmatpush.bf16.xpose.msra.mxu0 %v827
      %854 = vmatpush.bf16.xpose.msra.mxu0 %v824
      %855 = vmatpush.bf16.xpose.msra.mxu0 %v821
      %856 = vmatpush.bf16.xpose.msra.mxu0 %v818
      %857 = vmatpush.bf16.xpose.msra.mxu0 %v815
      %858 = vmatpush.bf16.xpose.msra.mxu0 %v812
      %859 = vmatpush.bf16.xpose.msra.mxu0 %v809
      %860 = vmatpush.bf16.xpose.msra.mxu0 %v806
      %861 = vmatmul.bf16.gmra.mxu0 %v710
      %v862 = vpop.f32.mrf.mxu0
      %v863 = vadd.f32 0.0, %v862
      %v864 = vpop.f32.mrf.mxu0
      %v865 = vadd.f32 0.0, %v864
      %866 = vmatmul.bf16.gmra.mxu0 %v713
      %v867 = vpop.f32.mrf.mxu0
      %v868 = vadd.f32 0.0, %v867
      %v869 = vpop.f32.mrf.mxu0
      %v870 = vadd.f32 0.0, %v869
      %871 = vmatmul.bf16.gmra.mxu0 %v716
      %v872 = vpop.f32.mrf.mxu0
      %v873 = vadd.f32 0.0, %v872
      %v874 = vpop.f32.mrf.mxu0
      %v875 = vadd.f32 0.0, %v874
      %876 = vmatmul.bf16.gmra.mxu0 %v719
      %v877 = vpop.f32.mrf.mxu0
      %v878 = vadd.f32 0.0, %v877
      %v879 = vpop.f32.mrf.mxu0
      %v880 = vadd.f32 0.0, %v879
      %881 = vmatmul.bf16.gmra.mxu0 %v722
      %v882 = vpop.f32.mrf.mxu0
      %v883 = vadd.f32 0.0, %v882
      %v884 = vpop.f32.mrf.mxu0
      %v885 = vadd.f32 0.0, %v884
      %886 = vmatmul.bf16.gmra.mxu0 %v725
      %v887 = vpop.f32.mrf.mxu0
      %v888 = vadd.f32 0.0, %v887
      %v889 = vpop.f32.mrf.mxu0
      %v890 = vadd.f32 0.0, %v889
      %891 = vmatmul.bf16.gmra.mxu0 %v728
      %v892 = vpop.f32.mrf.mxu0
      %v893 = vadd.f32 0.0, %v892
      %v894 = vpop.f32.mrf.mxu0
      %v895 = vadd.f32 0.0, %v894
      %896 = vmatmul.bf16.gmra.mxu0 %v731
      %v897 = vpop.f32.mrf.mxu0
      %v898 = vadd.f32 0.0, %v897
      %v899 = vpop.f32.mrf.mxu0
      %v900 = vadd.f32 0.0, %v899
      %901 = vmatmul.bf16.gmra.mxu0 %v734
      %v902 = vpop.f32.mrf.mxu0
      %v903 = vadd.f32 0.0, %v902
      %v904 = vpop.f32.mrf.mxu0
      %v905 = vadd.f32 0.0, %v904
      %906 = vmatmul.bf16.gmra.mxu0 %v737
      %v907 = vpop.f32.mrf.mxu0
      %v908 = vadd.f32 0.0, %v907
      %v909 = vpop.f32.mrf.mxu0
      %v910 = vadd.f32 0.0, %v909
      %911 = vmatmul.bf16.gmra.mxu0 %v740
      %v912 = vpop.f32.mrf.mxu0
      %v913 = vadd.f32 0.0, %v912
      %v914 = vpop.f32.mrf.mxu0
      %v915 = vadd.f32 0.0, %v914
      %916 = vmatmul.bf16.gmra.mxu0 %v743
      %v917 = vpop.f32.mrf.mxu0
      %v918 = vadd.f32 0.0, %v917
      %v919 = vpop.f32.mrf.mxu0
      %v920 = vadd.f32 0.0, %v919
      %921 = vmatmul.bf16.gmra.mxu0 %v746
      %v922 = vpop.f32.mrf.mxu0
      %v923 = vadd.f32 0.0, %v922
      %v924 = vpop.f32.mrf.mxu0
      %v925 = vadd.f32 0.0, %v924
      %926 = vmatmul.bf16.gmra.mxu0 %v749
      %v927 = vpop.f32.mrf.mxu0
      %v928 = vadd.f32 0.0, %v927
      %v929 = vpop.f32.mrf.mxu0
      %v930 = vadd.f32 0.0, %v929
      %931 = vmatmul.bf16.gmra.mxu0 %v752
      %v932 = vpop.f32.mrf.mxu0
      %v933 = vadd.f32 0.0, %v932
      %v934 = vpop.f32.mrf.mxu0
      %v935 = vadd.f32 0.0, %v934
      %936 = vmatmul.bf16.gmra.mxu0 %v755
      %v937 = vpop.f32.mrf.mxu0
      %v938 = vadd.f32 0.0, %v937
      %v939 = vpop.f32.mrf.mxu0
      %v940 = vadd.f32 0.0, %v939
      %941 = vmatmul.bf16.gmra.mxu0 %v758
      %v942 = vpop.f32.mrf.mxu0
      %v943 = vadd.f32 0.0, %v942
      %v944 = vpop.f32.mrf.mxu0
      %v945 = vadd.f32 0.0, %v944
      %946 = vmatmul.bf16.gmra.mxu0 %v761
      %v947 = vpop.f32.mrf.mxu0
      %v948 = vadd.f32 0.0, %v947
      %v949 = vpop.f32.mrf.mxu0
      %v950 = vadd.f32 0.0, %v949
      %951 = vmatmul.bf16.gmra.mxu0 %v764
      %v952 = vpop.f32.mrf.mxu0
      %v953 = vadd.f32 0.0, %v952
      %v954 = vpop.f32.mrf.mxu0
      %v955 = vadd.f32 0.0, %v954
      %956 = vmatmul.bf16.gmra.mxu0 %v767
      %v957 = vpop.f32.mrf.mxu0
      %v958 = vadd.f32 0.0, %v957
      %v959 = vpop.f32.mrf.mxu0
      %v960 = vadd.f32 0.0, %v959
      %961 = vmatmul.bf16.gmra.mxu0 %v770
      %v962 = vpop.f32.mrf.mxu0
      %v963 = vadd.f32 0.0, %v962
      %v964 = vpop.f32.mrf.mxu0
      %v965 = vadd.f32 0.0, %v964
      %966 = vmatmul.bf16.gmra.mxu0 %v773
      %v967 = vpop.f32.mrf.mxu0
      %v968 = vadd.f32 0.0, %v967
      %v969 = vpop.f32.mrf.mxu0
      %v970 = vadd.f32 0.0, %v969
      %971 = vmatmul.bf16.gmra.mxu0 %v776
      %v972 = vpop.f32.mrf.mxu0
      %v973 = vadd.f32 0.0, %v972
      %v974 = vpop.f32.mrf.mxu0
      %v975 = vadd.f32 0.0, %v974
      %976 = vmatmul.bf16.gmra.mxu0 %v779
      %v977 = vpop.f32.mrf.mxu0
      %v978 = vadd.f32 0.0, %v977
      %v979 = vpop.f32.mrf.mxu0
      %v980 = vadd.f32 0.0, %v979
      %981 = vmatmul.bf16.gmra.mxu0 %v782
      %v982 = vpop.f32.mrf.mxu0
      %v983 = vadd.f32 0.0, %v982
      %v984 = vpop.f32.mrf.mxu0
      %v985 = vadd.f32 0.0, %v984
      %986 = vmatmul.bf16.gmra.mxu0 %v785
      %v987 = vpop.f32.mrf.mxu0
      %v988 = vadd.f32 0.0, %v987
      %v989 = vpop.f32.mrf.mxu0
      %v990 = vadd.f32 0.0, %v989
      %991 = vmatmul.bf16.gmra.mxu0 %v788
      %v992 = vpop.f32.mrf.mxu0
      %v993 = vadd.f32 0.0, %v992
      %v994 = vpop.f32.mrf.mxu0
      %v995 = vadd.f32 0.0, %v994
      %996 = vmatmul.bf16.gmra.mxu0 %v791
      %v997 = vpop.f32.mrf.mxu0
      %v998 = vadd.f32 0.0, %v997
      %v999 = vpop.f32.mrf.mxu0
      %v1000 = vadd.f32 0.0, %v999
      %1001 = vmatmul.bf16.gmra.mxu0 %v794
      %v1002 = vpop.f32.mrf.mxu0
      %v1003 = vadd.f32 0.0, %v1002
      %v1004 = vpop.f32.mrf.mxu0
      %v1005 = vadd.f32 0.0, %v1004
      %1006 = vmatmul.bf16.gmra.mxu0 %v797
      %v1007 = vpop.f32.mrf.mxu0
      %v1008 = vadd.f32 0.0, %v1007
      %v1009 = vpop.f32.mrf.mxu0
      %v1010 = vadd.f32 0.0, %v1009
      %1011 = vmatmul.bf16.gmra.mxu0 %v800
      %v1012 = vpop.f32.mrf.mxu0
      %v1013 = vadd.f32 0.0, %v1012
      %v1014 = vpop.f32.mrf.mxu0
      %v1015 = vadd.f32 0.0, %v1014
      %1016 = vmatmul.bf16.gmra.mxu0 %v803
      %v1017 = vpop.f32.mrf.mxu0
      %v1018 = vadd.f32 0.0, %v1017
      %v1019 = vpop.f32.mrf.mxu0
      %v1020 = vadd.f32 0.0, %v1019
      %1021 = vdwg.mxu0
      %1022 = vmatpush.bf16.xpose.msra.mxu0 %v851
      %1023 = vmatpush.bf16.xpose.msra.mxu0 %v848
      %1024 = vmatpush.bf16.xpose.msra.mxu0 %v845
      %1025 = vmatpush.bf16.xpose.msra.mxu0 %v842
      %1026 = vmatpush.bf16.xpose.msra.mxu0 %v839
      %1027 = vmatpush.bf16.xpose.msra.mxu0 %v836
      %1028 = vmatpush.bf16.xpose.msra.mxu0 %v833
      %1029 = vmatpush.bf16.xpose.msra.mxu0 %v830
      %1030 = vmatmul.bf16.gmra.mxu0 %v710
      %v1031 = vpop.f32.mrf.mxu0
      %v1032 = vadd.f32 0.0, %v1031
      %v1033 = vpop.f32.mrf.mxu0
      %v1034 = vadd.f32 0.0, %v1033
      %1035 = vmatmul.bf16.gmra.mxu0 %v713
      %v1036 = vpop.f32.mrf.mxu0
      %v1037 = vadd.f32 0.0, %v1036
      %v1038 = vpop.f32.mrf.mxu0
      %v1039 = vadd.f32 0.0, %v1038
      %1040 = vmatmul.bf16.gmra.mxu0 %v716
      %v1041 = vpop.f32.mrf.mxu0
      %v1042 = vadd.f32 0.0, %v1041
      %v1043 = vpop.f32.mrf.mxu0
      %v1044 = vadd.f32 0.0, %v1043
      %1045 = vmatmul.bf16.gmra.mxu0 %v719
      %v1046 = vpop.f32.mrf.mxu0
      %v1047 = vadd.f32 0.0, %v1046
      %v1048 = vpop.f32.mrf.mxu0
      %v1049 = vadd.f32 0.0, %v1048
      %1050 = vmatmul.bf16.gmra.mxu0 %v722
      %v1051 = vpop.f32.mrf.mxu0
      %v1052 = vadd.f32 0.0, %v1051
      %v1053 = vpop.f32.mrf.mxu0
      %v1054 = vadd.f32 0.0, %v1053
      %1055 = vmatmul.bf16.gmra.mxu0 %v725
      %v1056 = vpop.f32.mrf.mxu0
      %v1057 = vadd.f32 0.0, %v1056
      %v1058 = vpop.f32.mrf.mxu0
      %v1059 = vadd.f32 0.0, %v1058
      %1060 = vmatmul.bf16.gmra.mxu0 %v728
      %v1061 = vpop.f32.mrf.mxu0
      %v1062 = vadd.f32 0.0, %v1061
      %v1063 = vpop.f32.mrf.mxu0
      %v1064 = vadd.f32 0.0, %v1063
      %1065 = vmatmul.bf16.gmra.mxu0 %v731
      %v1066 = vpop.f32.mrf.mxu0
      %v1067 = vadd.f32 0.0, %v1066
      %v1068 = vpop.f32.mrf.mxu0
      %v1069 = vadd.f32 0.0, %v1068
      %1070 = vmatmul.bf16.gmra.mxu0 %v734
      %v1071 = vpop.f32.mrf.mxu0
      %v1072 = vadd.f32 0.0, %v1071
      %v1073 = vpop.f32.mrf.mxu0
      %v1074 = vadd.f32 0.0, %v1073
      %1075 = vmatmul.bf16.gmra.mxu0 %v737
      %v1076 = vpop.f32.mrf.mxu0
      %v1077 = vadd.f32 0.0, %v1076
      %v1078 = vpop.f32.mrf.mxu0
      %v1079 = vadd.f32 0.0, %v1078
      %1080 = vmatmul.bf16.gmra.mxu0 %v740
      %v1081 = vpop.f32.mrf.mxu0
      %v1082 = vadd.f32 0.0, %v1081
      %v1083 = vpop.f32.mrf.mxu0
      %v1084 = vadd.f32 0.0, %v1083
      %1085 = vmatmul.bf16.gmra.mxu0 %v743
      %v1086 = vpop.f32.mrf.mxu0
      %v1087 = vadd.f32 0.0, %v1086
      %v1088 = vpop.f32.mrf.mxu0
      %v1089 = vadd.f32 0.0, %v1088
      %1090 = vmatmul.bf16.gmra.mxu0 %v746
      %v1091 = vpop.f32.mrf.mxu0
      %v1092 = vadd.f32 0.0, %v1091
      %v1093 = vpop.f32.mrf.mxu0
      %v1094 = vadd.f32 0.0, %v1093
      %1095 = vmatmul.bf16.gmra.mxu0 %v749
      %v1096 = vpop.f32.mrf.mxu0
      %v1097 = vadd.f32 0.0, %v1096
      %v1098 = vpop.f32.mrf.mxu0
      %v1099 = vadd.f32 0.0, %v1098
      %1100 = vmatmul.bf16.gmra.mxu0 %v752
      %v1101 = vpop.f32.mrf.mxu0
      %v1102 = vadd.f32 0.0, %v1101
      %v1103 = vpop.f32.mrf.mxu0
      %v1104 = vadd.f32 0.0, %v1103
      %1105 = vmatmul.bf16.gmra.mxu0 %v755
      %v1106 = vpop.f32.mrf.mxu0
      %v1107 = vadd.f32 0.0, %v1106
      %v1108 = vpop.f32.mrf.mxu0
      %v1109 = vadd.f32 0.0, %v1108
      %1110 = vmatmul.bf16.gmra.mxu0 %v758
      %v1111 = vpop.f32.mrf.mxu0
      %v1112 = vadd.f32 0.0, %v1111
      %v1113 = vpop.f32.mrf.mxu0
      %v1114 = vadd.f32 0.0, %v1113
      %1115 = vmatmul.bf16.gmra.mxu0 %v761
      %v1116 = vpop.f32.mrf.mxu0
      %v1117 = vadd.f32 0.0, %v1116
      %v1118 = vpop.f32.mrf.mxu0
      %v1119 = vadd.f32 0.0, %v1118
      %1120 = vmatmul.bf16.gmra.mxu0 %v764
      %v1121 = vpop.f32.mrf.mxu0
      %v1122 = vadd.f32 0.0, %v1121
      %v1123 = vpop.f32.mrf.mxu0
      %v1124 = vadd.f32 0.0, %v1123
      %1125 = vmatmul.bf16.gmra.mxu0 %v767
      %v1126 = vpop.f32.mrf.mxu0
      %v1127 = vadd.f32 0.0, %v1126
      %v1128 = vpop.f32.mrf.mxu0
      %v1129 = vadd.f32 0.0, %v1128
      %1130 = vmatmul.bf16.gmra.mxu0 %v770
      %v1131 = vpop.f32.mrf.mxu0
      %v1132 = vadd.f32 0.0, %v1131
      %v1133 = vpop.f32.mrf.mxu0
      %v1134 = vadd.f32 0.0, %v1133
      %1135 = vmatmul.bf16.gmra.mxu0 %v773
      %v1136 = vpop.f32.mrf.mxu0
      %v1137 = vadd.f32 0.0, %v1136
      %v1138 = vpop.f32.mrf.mxu0
      %v1139 = vadd.f32 0.0, %v1138
      %1140 = vmatmul.bf16.gmra.mxu0 %v776
      %v1141 = vpop.f32.mrf.mxu0
      %v1142 = vadd.f32 0.0, %v1141
      %v1143 = vpop.f32.mrf.mxu0
      %v1144 = vadd.f32 0.0, %v1143
      %1145 = vmatmul.bf16.gmra.mxu0 %v779
      %v1146 = vpop.f32.mrf.mxu0
      %v1147 = vadd.f32 0.0, %v1146
      %v1148 = vpop.f32.mrf.mxu0
      %v1149 = vadd.f32 0.0, %v1148
      %1150 = vmatmul.bf16.gmra.mxu0 %v782
      %v1151 = vpop.f32.mrf.mxu0
      %v1152 = vadd.f32 0.0, %v1151
      %v1153 = vpop.f32.mrf.mxu0
      %v1154 = vadd.f32 0.0, %v1153
      %1155 = vmatmul.bf16.gmra.mxu0 %v785
      %v1156 = vpop.f32.mrf.mxu0
      %v1157 = vadd.f32 0.0, %v1156
      %v1158 = vpop.f32.mrf.mxu0
      %v1159 = vadd.f32 0.0, %v1158
      %1160 = vmatmul.bf16.gmra.mxu0 %v788
      %v1161 = vpop.f32.mrf.mxu0
      %v1162 = vadd.f32 0.0, %v1161
      %v1163 = vpop.f32.mrf.mxu0
      %v1164 = vadd.f32 0.0, %v1163
      %1165 = vmatmul.bf16.gmra.mxu0 %v791
      %v1166 = vpop.f32.mrf.mxu0
      %v1167 = vadd.f32 0.0, %v1166
      %v1168 = vpop.f32.mrf.mxu0
      %v1169 = vadd.f32 0.0, %v1168
      %1170 = vmatmul.bf16.gmra.mxu0 %v794
      %v1171 = vpop.f32.mrf.mxu0
      %v1172 = vadd.f32 0.0, %v1171
      %v1173 = vpop.f32.mrf.mxu0
      %v1174 = vadd.f32 0.0, %v1173
      %1175 = vmatmul.bf16.gmra.mxu0 %v797
      %v1176 = vpop.f32.mrf.mxu0
      %v1177 = vadd.f32 0.0, %v1176
      %v1178 = vpop.f32.mrf.mxu0
      %v1179 = vadd.f32 0.0, %v1178
      %1180 = vmatmul.bf16.gmra.mxu0 %v800
      %v1181 = vpop.f32.mrf.mxu0
      %v1182 = vadd.f32 0.0, %v1181
      %v1183 = vpop.f32.mrf.mxu0
      %v1184 = vadd.f32 0.0, %v1183
      %1185 = vmatmul.bf16.gmra.mxu0 %v803
      %v1186 = vpop.f32.mrf.mxu0
      %v1187 = vadd.f32 0.0, %v1186
      %v1188 = vpop.f32.mrf.mxu0
      %v1189 = vadd.f32 0.0, %v1188
      %1190 = vdwg.mxu0
      %v1191 = vmul.f32 %v863, 14.285714
      %v1192 = vmul.f32 %v1032, 14.285714
      %v1193 = vmul.f32 %v865, 14.285714
      %v1194 = vmul.f32 %v1034, 14.285714
      %v1195 = vmul.f32 %v868, 14.285714
      %v1196 = vmul.f32 %v1037, 14.285714
      %v1197 = vmul.f32 %v870, 14.285714
      %v1198 = vmul.f32 %v1039, 14.285714
      %v1199 = vmul.f32 %v873, 14.285714
      %v1200 = vmul.f32 %v1042, 14.285714
      %v1201 = vmul.f32 %v875, 14.285714
      %v1202 = vmul.f32 %v1044, 14.285714
      %v1203 = vmul.f32 %v878, 14.285714
      %v1204 = vmul.f32 %v1047, 14.285714
      %v1205 = vmul.f32 %v880, 14.285714
      %v1206 = vmul.f32 %v1049, 14.285714
      %v1207 = vmul.f32 %v883, 14.285714
      %v1208 = vmul.f32 %v1052, 14.285714
      %v1209 = vmul.f32 %v885, 14.285714
      %v1210 = vmul.f32 %v1054, 14.285714
      %v1211 = vmul.f32 %v888, 14.285714
      %v1212 = vmul.f32 %v1057, 14.285714
      %v1213 = vmul.f32 %v890, 14.285714
      %v1214 = vmul.f32 %v1059, 14.285714
      %v1215 = vmul.f32 %v893, 14.285714
      %v1216 = vmul.f32 %v1062, 14.285714
      %v1217 = vmul.f32 %v895, 14.285714
      %v1218 = vmul.f32 %v1064, 14.285714
      %v1219 = vmul.f32 %v898, 14.285714
      %v1220 = vmul.f32 %v1067, 14.285714
      %v1221 = vmul.f32 %v900, 14.285714
      %v1222 = vmul.f32 %v1069, 14.285714
      %v1223 = vmul.f32 %v903, 14.285714
      %v1224 = vmul.f32 %v1072, 14.285714
      %v1225 = vmul.f32 %v905, 14.285714
      %v1226 = vmul.f32 %v1074, 14.285714
      %v1227 = vmul.f32 %v908, 14.285714
      %v1228 = vmul.f32 %v1077, 14.285714
      %v1229 = vmul.f32 %v910, 14.285714
      %v1230 = vmul.f32 %v1079, 14.285714
      %v1231 = vmul.f32 %v913, 14.285714
      %v1232 = vmul.f32 %v1082, 14.285714
      %v1233 = vmul.f32 %v915, 14.285714
      %v1234 = vmul.f32 %v1084, 14.285714
      %v1235 = vmul.f32 %v918, 14.285714
      %v1236 = vmul.f32 %v1087, 14.285714
      %v1237 = vmul.f32 %v920, 14.285714
      %v1238 = vmul.f32 %v1089, 14.285714
      %v1239 = vmul.f32 %v923, 14.285714
      %v1240 = vmul.f32 %v1092, 14.285714
      %v1241 = vmul.f32 %v925, 14.285714
      %v1242 = vmul.f32 %v1094, 14.285714
      %v1243 = vmul.f32 %v928, 14.285714
      %v1244 = vmul.f32 %v1097, 14.285714
      %v1245 = vmul.f32 %v930, 14.285714
      %v1246 = vmul.f32 %v1099, 14.285714
      %v1247 = vmul.f32 %v933, 14.285714
      %v1248 = vmul.f32 %v1102, 14.285714
      %v1249 = vmul.f32 %v935, 14.285714
      %v1250 = vmul.f32 %v1104, 14.285714
      %v1251 = vmul.f32 %v938, 14.285714
      %v1252 = vmul.f32 %v1107, 14.285714
      %v1253 = vmul.f32 %v940, 14.285714
      %v1254 = vmul.f32 %v1109, 14.285714
      %v1255 = vmul.f32 %v943, 14.285714
      %v1256 = vmul.f32 %v1112, 14.285714
      %v1257 = vmul.f32 %v945, 14.285714
      %v1258 = vmul.f32 %v1114, 14.285714
      %v1259 = vmul.f32 %v948, 14.285714
      %v1260 = vmul.f32 %v1117, 14.285714
      %v1261 = vmul.f32 %v950, 14.285714
      %v1262 = vmul.f32 %v1119, 14.285714
      %v1263 = vmul.f32 %v953, 14.285714
      %v1264 = vmul.f32 %v1122, 14.285714
      %v1265 = vmul.f32 %v955, 14.285714
      %v1266 = vmul.f32 %v1124, 14.285714
      %v1267 = vmul.f32 %v958, 14.285714
      %v1268 = vmul.f32 %v1127, 14.285714
      %v1269 = vmul.f32 %v960, 14.285714
      %v1270 = vmul.f32 %v1129, 14.285714
      %v1271 = vmul.f32 %v963, 14.285714
      %v1272 = vmul.f32 %v1132, 14.285714
      %v1273 = vmul.f32 %v965, 14.285714
      %v1274 = vmul.f32 %v1134, 14.285714
      %v1275 = vmul.f32 %v968, 14.285714
      %v1276 = vmul.f32 %v1137, 14.285714
      %v1277 = vmul.f32 %v970, 14.285714
      %v1278 = vmul.f32 %v1139, 14.285714
      %v1279 = vmul.f32 %v973, 14.285714
      %v1280 = vmul.f32 %v1142, 14.285714
      %v1281 = vmul.f32 %v975, 14.285714
      %v1282 = vmul.f32 %v1144, 14.285714
      %v1283 = vmul.f32 %v978, 14.285714
      %v1284 = vmul.f32 %v1147, 14.285714
      %v1285 = vmul.f32 %v980, 14.285714
      %v1286 = vmul.f32 %v1149, 14.285714
      %v1287 = vmul.f32 %v983, 14.285714
      %v1288 = vmul.f32 %v1152, 14.285714
      %v1289 = vmul.f32 %v985, 14.285714
      %v1290 = vmul.f32 %v1154, 14.285714
      %v1291 = vmul.f32 %v988, 14.285714
      %v1292 = vmul.f32 %v1157, 14.285714
      %v1293 = vmul.f32 %v990, 14.285714
      %v1294 = vmul.f32 %v1159, 14.285714
      %v1295 = vmul.f32 %v993, 14.285714
      %v1296 = vmul.f32 %v1162, 14.285714
      %v1297 = vmul.f32 %v995, 14.285714
      %v1298 = vmul.f32 %v1164, 14.285714
      %v1299 = vmul.f32 %v998, 14.285714
      %v1300 = vmul.f32 %v1167, 14.285714
      %v1301 = vmul.f32 %v1000, 14.285714
      %v1302 = vmul.f32 %v1169, 14.285714
      %v1303 = vmul.f32 %v1003, 14.285714
      %v1304 = vmul.f32 %v1172, 14.285714
      %v1305 = vmul.f32 %v1005, 14.285714
      %v1306 = vmul.f32 %v1174, 14.285714
      %v1307 = vmul.f32 %v1008, 14.285714
      %v1308 = vmul.f32 %v1177, 14.285714
      %v1309 = vmul.f32 %v1010, 14.285714
      %v1310 = vmul.f32 %v1179, 14.285714
      %v1311 = vmul.f32 %v1013, 14.285714
      %v1312 = vmul.f32 %v1182, 14.285714
      %v1313 = vmul.f32 %v1015, 14.285714
      %v1314 = vmul.f32 %v1184, 14.285714
      %v1315 = vmul.f32 %v1018, 14.285714
      %v1316 = vmul.f32 %v1187, 14.285714
      %v1317 = vmul.f32 %v1020, 14.285714
      %v1318 = vmul.f32 %v1189, 14.285714
      %v1319 = vmul.f32 %v1191, 1.442695
      %v1320 = vpow.pop %v1319
      %v1321 = vmul.f32 %v1192, 1.442695
      %v1322 = vpow.pop %v1321
      %v1323 = vmul.f32 %v1193, 1.442695
      %v1324 = vpow.pop %v1323
      %v1325 = vmul.f32 %v1194, 1.442695
      %v1326 = vpow.pop %v1325
      %v1327 = vmul.f32 %v1195, 1.442695
      %v1328 = vpow.pop %v1327
      %v1329 = vmul.f32 %v1196, 1.442695
      %v1330 = vpow.pop %v1329
      %v1331 = vmul.f32 %v1197, 1.442695
      %v1332 = vpow.pop %v1331
      %v1333 = vmul.f32 %v1198, 1.442695
      %v1334 = vpow.pop %v1333
      %v1335 = vmul.f32 %v1199, 1.442695
      %v1336 = vpow.pop %v1335
      %v1337 = vmul.f32 %v1200, 1.442695
      %v1338 = vpow.pop %v1337
      %v1339 = vmul.f32 %v1201, 1.442695
      %v1340 = vpow.pop %v1339
      %v1341 = vmul.f32 %v1202, 1.442695
      %v1342 = vpow.pop %v1341
      %v1343 = vmul.f32 %v1203, 1.442695
      %v1344 = vpow.pop %v1343
      %v1345 = vmul.f32 %v1204, 1.442695
      %v1346 = vpow.pop %v1345
      %v1347 = vmul.f32 %v1205, 1.442695
      %v1348 = vpow.pop %v1347
      %v1349 = vmul.f32 %v1206, 1.442695
      %v1350 = vpow.pop %v1349
      %v1351 = vmul.f32 %v1207, 1.442695
      %v1352 = vpow.pop %v1351
      %v1353 = vmul.f32 %v1208, 1.442695
      %v1354 = vpow.pop %v1353
      %v1355 = vmul.f32 %v1209, 1.442695
      %v1356 = vpow.pop %v1355
      %v1357 = vmul.f32 %v1210, 1.442695
      %v1358 = vpow.pop %v1357
      %v1359 = vmul.f32 %v1211, 1.442695
      %v1360 = vpow.pop %v1359
      %v1361 = vmul.f32 %v1212, 1.442695
      %v1362 = vpow.pop %v1361
      %v1363 = vmul.f32 %v1213, 1.442695
      %v1364 = vpow.pop %v1363
      %v1365 = vmul.f32 %v1214, 1.442695
      %v1366 = vpow.pop %v1365
      %v1367 = vmul.f32 %v1215, 1.442695
      %v1368 = vpow.pop %v1367
      %v1369 = vmul.f32 %v1216, 1.442695
      %v1370 = vpow.pop %v1369
      %v1371 = vmul.f32 %v1217, 1.442695
      %v1372 = vpow.pop %v1371
      %v1373 = vmul.f32 %v1218, 1.442695
      %v1374 = vpow.pop %v1373
      %v1375 = vmul.f32 %v1219, 1.442695
      %v1376 = vpow.pop %v1375
      %v1377 = vmul.f32 %v1220, 1.442695
      %v1378 = vpow.pop %v1377
      %v1379 = vmul.f32 %v1221, 1.442695
      %v1380 = vpow.pop %v1379
      %v1381 = vmul.f32 %v1222, 1.442695
      %v1382 = vpow.pop %v1381
      %v1383 = vmul.f32 %v1223, 1.442695
      %v1384 = vpow.pop %v1383
      %v1385 = vmul.f32 %v1224, 1.442695
      %v1386 = vpow.pop %v1385
      %v1387 = vmul.f32 %v1225, 1.442695
      %v1388 = vpow.pop %v1387
      %v1389 = vmul.f32 %v1226, 1.442695
      %v1390 = vpow.pop %v1389
      %v1391 = vmul.f32 %v1227, 1.442695
      %v1392 = vpow.pop %v1391
      %v1393 = vmul.f32 %v1228, 1.442695
      %v1394 = vpow.pop %v1393
      %v1395 = vmul.f32 %v1229, 1.442695
      %v1396 = vpow.pop %v1395
      %v1397 = vmul.f32 %v1230, 1.442695
      %v1398 = vpow.pop %v1397
      %v1399 = vmul.f32 %v1231, 1.442695
      %v1400 = vpow.pop %v1399
      %v1401 = vmul.f32 %v1232, 1.442695
      %v1402 = vpow.pop %v1401
      %v1403 = vmul.f32 %v1233, 1.442695
      %v1404 = vpow.pop %v1403
      %v1405 = vmul.f32 %v1234, 1.442695
      %v1406 = vpow.pop %v1405
      %v1407 = vmul.f32 %v1235, 1.442695
      %v1408 = vpow.pop %v1407
      %v1409 = vmul.f32 %v1236, 1.442695
      %v1410 = vpow.pop %v1409
      %v1411 = vmul.f32 %v1237, 1.442695
      %v1412 = vpow.pop %v1411
      %v1413 = vmul.f32 %v1238, 1.442695
      %v1414 = vpow.pop %v1413
      %v1415 = vmul.f32 %v1239, 1.442695
      %v1416 = vpow.pop %v1415
      %v1417 = vmul.f32 %v1240, 1.442695
      %v1418 = vpow.pop %v1417
      %v1419 = vmul.f32 %v1241, 1.442695
      %v1420 = vpow.pop %v1419
      %v1421 = vmul.f32 %v1242, 1.442695
      %v1422 = vpow.pop %v1421
      %v1423 = vmul.f32 %v1243, 1.442695
      %v1424 = vpow.pop %v1423
      %v1425 = vmul.f32 %v1244, 1.442695
      %v1426 = vpow.pop %v1425
      %v1427 = vmul.f32 %v1245, 1.442695
      %v1428 = vpow.pop %v1427
      %v1429 = vmul.f32 %v1246, 1.442695
      %v1430 = vpow.pop %v1429
      %v1431 = vmul.f32 %v1247, 1.442695
      %v1432 = vpow.pop %v1431
      %v1433 = vmul.f32 %v1248, 1.442695
      %v1434 = vpow.pop %v1433
      %v1435 = vmul.f32 %v1249, 1.442695
      %v1436 = vpow.pop %v1435
      %v1437 = vmul.f32 %v1250, 1.442695
      %v1438 = vpow.pop %v1437
      %v1439 = vmul.f32 %v1251, 1.442695
      %v1440 = vpow.pop %v1439
      %v1441 = vmul.f32 %v1252, 1.442695
      %v1442 = vpow.pop %v1441
      %v1443 = vmul.f32 %v1253, 1.442695
      %v1444 = vpow.pop %v1443
      %v1445 = vmul.f32 %v1254, 1.442695
      %v1446 = vpow.pop %v1445
      %v1447 = vmul.f32 %v1255, 1.442695
      %v1448 = vpow.pop %v1447
      %v1449 = vmul.f32 %v1256, 1.442695
      %v1450 = vpow.pop %v1449
      %v1451 = vmul.f32 %v1257, 1.442695
      %v1452 = vpow.pop %v1451
      %v1453 = vmul.f32 %v1258, 1.442695
      %v1454 = vpow.pop %v1453
      %v1455 = vmul.f32 %v1259, 1.442695
      %v1456 = vpow.pop %v1455
      %v1457 = vmul.f32 %v1260, 1.442695
      %v1458 = vpow.pop %v1457
      %v1459 = vmul.f32 %v1261, 1.442695
      %v1460 = vpow.pop %v1459
      %v1461 = vmul.f32 %v1262, 1.442695
      %v1462 = vpow.pop %v1461
      %v1463 = vmul.f32 %v1263, 1.442695
      %v1464 = vpow.pop %v1463
      %v1465 = vmul.f32 %v1264, 1.442695
      %v1466 = vpow.pop %v1465
      %v1467 = vmul.f32 %v1265, 1.442695
      %v1468 = vpow.pop %v1467
      %v1469 = vmul.f32 %v1266, 1.442695
      %v1470 = vpow.pop %v1469
      %v1471 = vmul.f32 %v1267, 1.442695
      %v1472 = vpow.pop %v1471
      %v1473 = vmul.f32 %v1268, 1.442695
      %v1474 = vpow.pop %v1473
      %v1475 = vmul.f32 %v1269, 1.442695
      %v1476 = vpow.pop %v1475
      %v1477 = vmul.f32 %v1270, 1.442695
      %v1478 = vpow.pop %v1477
      %v1479 = vmul.f32 %v1271, 1.442695
      %v1480 = vpow.pop %v1479
      %v1481 = vmul.f32 %v1272, 1.442695
      %v1482 = vpow.pop %v1481
      %v1483 = vmul.f32 %v1273, 1.442695
      %v1484 = vpow.pop %v1483
      %v1485 = vmul.f32 %v1274, 1.442695
      %v1486 = vpow.pop %v1485
      %v1487 = vmul.f32 %v1275, 1.442695
      %v1488 = vpow.pop %v1487
      %v1489 = vmul.f32 %v1276, 1.442695
      %v1490 = vpow.pop %v1489
      %v1491 = vmul.f32 %v1277, 1.442695
      %v1492 = vpow.pop %v1491
      %v1493 = vmul.f32 %v1278, 1.442695
      %v1494 = vpow.pop %v1493
      %v1495 = vmul.f32 %v1279, 1.442695
      %v1496 = vpow.pop %v1495
      %v1497 = vmul.f32 %v1280, 1.442695
      %v1498 = vpow.pop %v1497
      %v1499 = vmul.f32 %v1281, 1.442695
      %v1500 = vpow.pop %v1499
      %v1501 = vmul.f32 %v1282, 1.442695
      %v1502 = vpow.pop %v1501
      %v1503 = vmul.f32 %v1283, 1.442695
      %v1504 = vpow.pop %v1503
      %v1505 = vmul.f32 %v1284, 1.442695
      %v1506 = vpow.pop %v1505
      %v1507 = vmul.f32 %v1285, 1.442695
      %v1508 = vpow.pop %v1507
      %v1509 = vmul.f32 %v1286, 1.442695
      %v1510 = vpow.pop %v1509
      %v1511 = vmul.f32 %v1287, 1.442695
      %v1512 = vpow.pop %v1511
      %v1513 = vmul.f32 %v1288, 1.442695
      %v1514 = vpow.pop %v1513
      %v1515 = vmul.f32 %v1289, 1.442695
      %v1516 = vpow.pop %v1515
      %v1517 = vmul.f32 %v1290, 1.442695
      %v1518 = vpow.pop %v1517
      %v1519 = vmul.f32 %v1291, 1.442695
      %v1520 = vpow.pop %v1519
      %v1521 = vmul.f32 %v1292, 1.442695
      %v1522 = vpow.pop %v1521
      %v1523 = vmul.f32 %v1293, 1.442695
      %v1524 = vpow.pop %v1523
      %v1525 = vmul.f32 %v1294, 1.442695
      %v1526 = vpow.pop %v1525
      %v1527 = vmul.f32 %v1295, 1.442695
      %v1528 = vpow.pop %v1527
      %v1529 = vmul.f32 %v1296, 1.442695
      %v1530 = vpow.pop %v1529
      %v1531 = vmul.f32 %v1297, 1.442695
      %v1532 = vpow.pop %v1531
      %v1533 = vmul.f32 %v1298, 1.442695
      %v1534 = vpow.pop %v1533
      %v1535 = vmul.f32 %v1299, 1.442695
      %v1536 = vpow.pop %v1535
      %v1537 = vmul.f32 %v1300, 1.442695
      %v1538 = vpow.pop %v1537
      %v1539 = vmul.f32 %v1301, 1.442695
      %v1540 = vpow.pop %v1539
      %v1541 = vmul.f32 %v1302, 1.442695
      %v1542 = vpow.pop %v1541
      %v1543 = vmul.f32 %v1303, 1.442695
      %v1544 = vpow.pop %v1543
      %v1545 = vmul.f32 %v1304, 1.442695
      %v1546 = vpow.pop %v1545
      %v1547 = vmul.f32 %v1305, 1.442695
      %v1548 = vpow.pop %v1547
      %v1549 = vmul.f32 %v1306, 1.442695
      %v1550 = vpow.pop %v1549
      %v1551 = vmul.f32 %v1307, 1.442695
      %v1552 = vpow.pop %v1551
      %v1553 = vmul.f32 %v1308, 1.442695
      %v1554 = vpow.pop %v1553
      %v1555 = vmul.f32 %v1309, 1.442695
      %v1556 = vpow.pop %v1555
      %v1557 = vmul.f32 %v1310, 1.442695
      %v1558 = vpow.pop %v1557
      %v1559 = vmul.f32 %v1311, 1.442695
      %v1560 = vpow.pop %v1559
      %v1561 = vmul.f32 %v1312, 1.442695
      %v1562 = vpow.pop %v1561
      %v1563 = vmul.f32 %v1313, 1.442695
      %v1564 = vpow.pop %v1563
      %v1565 = vmul.f32 %v1314, 1.442695
      %v1566 = vpow.pop %v1565
      %v1567 = vmul.f32 %v1315, 1.442695
      %v1568 = vpow.pop %v1567
      %v1569 = vmul.f32 %v1316, 1.442695
      %v1570 = vpow.pop %v1569
      %v1571 = vmul.f32 %v1317, 1.442695
      %v1572 = vpow.pop %v1571
      %v1573 = vmul.f32 %v1318, 1.442695
      %v1574 = vpow.pop %v1573
      %v1575 = vld [vmem:[%s350] sm:$0xff]
      %v1576 = vld [vmem:[%s350 + $0x8] sm:$0xff]
      %v1577 = vld [vmem:[%s350 + $0x10] sm:$0xff]
      %v1578 = vld [vmem:[%s350 + $0x18] sm:$0xff]
      %v1579 = vld [vmem:[%s350 + $0x20] sm:$0xff]
      %v1580 = vld [vmem:[%s350 + $0x28] sm:$0xff]
      %v1581 = vld [vmem:[%s350 + $0x30] sm:$0xff]
      %v1582 = vld [vmem:[%s350 + $0x38] sm:$0xff]
      %v1583 = vld [vmem:[%s350 + $0x40] sm:$0xff]
      %v1584 = vld [vmem:[%s350 + $0x48] sm:$0xff]
      %v1585 = vld [vmem:[%s350 + $0x50] sm:$0xff]
      %v1586 = vld [vmem:[%s350 + $0x58] sm:$0xff]
      %v1587 = vld [vmem:[%s350 + $0x60] sm:$0xff]
      %v1588 = vld [vmem:[%s350 + $0x68] sm:$0xff]
      %v1589 = vld [vmem:[%s350 + $0x70] sm:$0xff]
      %v1590 = vld [vmem:[%s350 + $0x78] sm:$0xff]
      %v1591 = vld [vmem:[%s350 + $0x80] sm:$0xff]
      %v1592 = vld [vmem:[%s350 + $0x88] sm:$0xff]
      %v1593 = vld [vmem:[%s350 + $0x90] sm:$0xff]
      %v1594 = vld [vmem:[%s350 + $0x98] sm:$0xff]
      %v1595 = vld [vmem:[%s350 + $0xa0] sm:$0xff]
      %v1596 = vld [vmem:[%s350 + $0xa8] sm:$0xff]
      %v1597 = vld [vmem:[%s350 + $0xb0] sm:$0xff]
      %v1598 = vld [vmem:[%s350 + $0xb8] sm:$0xff]
      %v1599 = vld [vmem:[%s350 + $0xc0] sm:$0xff]
      %v1600 = vld [vmem:[%s350 + $0xc8] sm:$0xff]
      %v1601 = vld [vmem:[%s350 + $0xd0] sm:$0xff]
      %v1602 = vld [vmem:[%s350 + $0xd8] sm:$0xff]
      %v1603 = vld [vmem:[%s350 + $0xe0] sm:$0xff]
      %v1604 = vld [vmem:[%s350 + $0xe8] sm:$0xff]
      %v1605 = vld [vmem:[%s350 + $0xf0] sm:$0xff]
      %v1606 = vld [vmem:[%s350 + $0xf8] sm:$0xff]
      %v1607 = vld [vmem:[%s350 + $0x100] sm:$0xff]
      %v1608 = vld [vmem:[%s350 + $0x108] sm:$0xff]
      %v1609 = vld [vmem:[%s350 + $0x110] sm:$0xff]
      %v1610 = vld [vmem:[%s350 + $0x118] sm:$0xff]
      %v1611 = vld [vmem:[%s350 + $0x120] sm:$0xff]
      %v1612 = vld [vmem:[%s350 + $0x128] sm:$0xff]
      %v1613 = vld [vmem:[%s350 + $0x130] sm:$0xff]
      %v1614 = vld [vmem:[%s350 + $0x138] sm:$0xff]
      %v1615 = vld [vmem:[%s350 + $0x140] sm:$0xff]
      %v1616 = vld [vmem:[%s350 + $0x148] sm:$0xff]
      %v1617 = vld [vmem:[%s350 + $0x150] sm:$0xff]
      %v1618 = vld [vmem:[%s350 + $0x158] sm:$0xff]
      %v1619 = vld [vmem:[%s350 + $0x160] sm:$0xff]
      %v1620 = vld [vmem:[%s350 + $0x168] sm:$0xff]
      %v1621 = vld [vmem:[%s350 + $0x170] sm:$0xff]
      %v1622 = vld [vmem:[%s350 + $0x178] sm:$0xff]
      %v1623 = vld [vmem:[%s350 + $0x180] sm:$0xff]
      %v1624 = vld [vmem:[%s350 + $0x188] sm:$0xff]
      %v1625 = vld [vmem:[%s350 + $0x190] sm:$0xff]
      %v1626 = vld [vmem:[%s350 + $0x198] sm:$0xff]
      %v1627 = vld [vmem:[%s350 + $0x1a0] sm:$0xff]
      %v1628 = vld [vmem:[%s350 + $0x1a8] sm:$0xff]
      %v1629 = vld [vmem:[%s350 + $0x1b0] sm:$0xff]
      %v1630 = vld [vmem:[%s350 + $0x1b8] sm:$0xff]
      %v1631 = vld [vmem:[%s350 + $0x1c0] sm:$0xff]
      %v1632 = vld [vmem:[%s350 + $0x1c8] sm:$0xff]
      %v1633 = vld [vmem:[%s350 + $0x1d0] sm:$0xff]
      %v1634 = vld [vmem:[%s350 + $0x1d8] sm:$0xff]
      %v1635 = vld [vmem:[%s350 + $0x1e0] sm:$0xff]
      %v1636 = vld [vmem:[%s350 + $0x1e8] sm:$0xff]
      %v1637 = vld [vmem:[%s350 + $0x1f0] sm:$0xff]
      %v1638 = vld [vmem:[%s350 + $0x1f8] sm:$0xff]
      %1640 = vset.pattern.permute.xlu0 0
      %1641 = vperm.xlu0 %1640, %v1575
      %v1642 = vpop.permute.xlu0 %1641
      %1645 = vset.pattern.permute.xlu0 0
      %1646 = vperm.xlu0 %1645, %v1576
      %v1647 = vpop.permute.xlu0 %1646
      %1650 = vset.pattern.permute.xlu0 0
      %1651 = vperm.xlu0 %1650, %v1577
      %v1652 = vpop.permute.xlu0 %1651
      %1655 = vset.pattern.permute.xlu0 0
      %1656 = vperm.xlu0 %1655, %v1578
      %v1657 = vpop.permute.xlu0 %1656
      %1660 = vset.pattern.permute.xlu0 0
      %1661 = vperm.xlu0 %1660, %v1579
      %v1662 = vpop.permute.xlu0 %1661
      %1665 = vset.pattern.permute.xlu0 0
      %1666 = vperm.xlu0 %1665, %v1580
      %v1667 = vpop.permute.xlu0 %1666
      %1670 = vset.pattern.permute.xlu0 0
      %1671 = vperm.xlu0 %1670, %v1581
      %v1672 = vpop.permute.xlu0 %1671
      %1675 = vset.pattern.permute.xlu0 0
      %1676 = vperm.xlu0 %1675, %v1582
      %v1677 = vpop.permute.xlu0 %1676
      %1680 = vset.pattern.permute.xlu0 0
      %1681 = vperm.xlu0 %1680, %v1583
      %v1682 = vpop.permute.xlu0 %1681
      %1685 = vset.pattern.permute.xlu0 0
      %1686 = vperm.xlu0 %1685, %v1584
      %v1687 = vpop.permute.xlu0 %1686
      %1690 = vset.pattern.permute.xlu0 0
      %1691 = vperm.xlu0 %1690, %v1585
      %v1692 = vpop.permute.xlu0 %1691
      %1695 = vset.pattern.permute.xlu0 0
      %1696 = vperm.xlu0 %1695, %v1586
      %v1697 = vpop.permute.xlu0 %1696
      %1700 = vset.pattern.permute.xlu0 0
      %1701 = vperm.xlu0 %1700, %v1587
      %v1702 = vpop.permute.xlu0 %1701
      %1705 = vset.pattern.permute.xlu0 0
      %1706 = vperm.xlu0 %1705, %v1588
      %v1707 = vpop.permute.xlu0 %1706
      %1710 = vset.pattern.permute.xlu0 0
      %1711 = vperm.xlu0 %1710, %v1589
      %v1712 = vpop.permute.xlu0 %1711
      %1715 = vset.pattern.permute.xlu0 0
      %1716 = vperm.xlu0 %1715, %v1590
      %v1717 = vpop.permute.xlu0 %1716
      %1720 = vset.pattern.permute.xlu0 0
      %1721 = vperm.xlu0 %1720, %v1591
      %v1722 = vpop.permute.xlu0 %1721
      %1725 = vset.pattern.permute.xlu0 0
      %1726 = vperm.xlu0 %1725, %v1592
      %v1727 = vpop.permute.xlu0 %1726
      %1730 = vset.pattern.permute.xlu0 0
      %1731 = vperm.xlu0 %1730, %v1593
      %v1732 = vpop.permute.xlu0 %1731
      %1735 = vset.pattern.permute.xlu0 0
      %1736 = vperm.xlu0 %1735, %v1594
      %v1737 = vpop.permute.xlu0 %1736
      %1740 = vset.pattern.permute.xlu0 0
      %1741 = vperm.xlu0 %1740, %v1595
      %v1742 = vpop.permute.xlu0 %1741
      %1745 = vset.pattern.permute.xlu0 0
      %1746 = vperm.xlu0 %1745, %v1596
      %v1747 = vpop.permute.xlu0 %1746
      %1750 = vset.pattern.permute.xlu0 0
      %1751 = vperm.xlu0 %1750, %v1597
      %v1752 = vpop.permute.xlu0 %1751
      %1755 = vset.pattern.permute.xlu0 0
      %1756 = vperm.xlu0 %1755, %v1598
      %v1757 = vpop.permute.xlu0 %1756
      %1760 = vset.pattern.permute.xlu0 0
      %1761 = vperm.xlu0 %1760, %v1599
      %v1762 = vpop.permute.xlu0 %1761
      %1765 = vset.pattern.permute.xlu0 0
      %1766 = vperm.xlu0 %1765, %v1600
      %v1767 = vpop.permute.xlu0 %1766
      %1770 = vset.pattern.permute.xlu0 0
      %1771 = vperm.xlu0 %1770, %v1601
      %v1772 = vpop.permute.xlu0 %1771
      %1775 = vset.pattern.permute.xlu0 0
      %1776 = vperm.xlu0 %1775, %v1602
      %v1777 = vpop.permute.xlu0 %1776
      %1780 = vset.pattern.permute.xlu0 0
      %1781 = vperm.xlu0 %1780, %v1603
      %v1782 = vpop.permute.xlu0 %1781
      %1785 = vset.pattern.permute.xlu0 0
      %1786 = vperm.xlu0 %1785, %v1604
      %v1787 = vpop.permute.xlu0 %1786
      %1790 = vset.pattern.permute.xlu0 0
      %1791 = vperm.xlu0 %1790, %v1605
      %v1792 = vpop.permute.xlu0 %1791
      %1795 = vset.pattern.permute.xlu0 0
      %1796 = vperm.xlu0 %1795, %v1606
      %v1797 = vpop.permute.xlu0 %1796
      %1800 = vset.pattern.permute.xlu0 0
      %1801 = vperm.xlu0 %1800, %v1607
      %v1802 = vpop.permute.xlu0 %1801
      %1805 = vset.pattern.permute.xlu0 0
      %1806 = vperm.xlu0 %1805, %v1608
      %v1807 = vpop.permute.xlu0 %1806
      %1810 = vset.pattern.permute.xlu0 0
      %1811 = vperm.xlu0 %1810, %v1609
      %v1812 = vpop.permute.xlu0 %1811
      %1815 = vset.pattern.permute.xlu0 0
      %1816 = vperm.xlu0 %1815, %v1610
      %v1817 = vpop.permute.xlu0 %1816
      %1820 = vset.pattern.permute.xlu0 0
      %1821 = vperm.xlu0 %1820, %v1611
      %v1822 = vpop.permute.xlu0 %1821
      %1825 = vset.pattern.permute.xlu0 0
      %1826 = vperm.xlu0 %1825, %v1612
      %v1827 = vpop.permute.xlu0 %1826
      %1830 = vset.pattern.permute.xlu0 0
      %1831 = vperm.xlu0 %1830, %v1613
      %v1832 = vpop.permute.xlu0 %1831
      %1835 = vset.pattern.permute.xlu0 0
      %1836 = vperm.xlu0 %1835, %v1614
      %v1837 = vpop.permute.xlu0 %1836
      %1840 = vset.pattern.permute.xlu0 0
      %1841 = vperm.xlu0 %1840, %v1615
      %v1842 = vpop.permute.xlu0 %1841
      %1845 = vset.pattern.permute.xlu0 0
      %1846 = vperm.xlu0 %1845, %v1616
      %v1847 = vpop.permute.xlu0 %1846
      %1850 = vset.pattern.permute.xlu0 0
      %1851 = vperm.xlu0 %1850, %v1617
      %v1852 = vpop.permute.xlu0 %1851
      %1855 = vset.pattern.permute.xlu0 0
      %1856 = vperm.xlu0 %1855, %v1618
      %v1857 = vpop.permute.xlu0 %1856
      %1860 = vset.pattern.permute.xlu0 0
      %1861 = vperm.xlu0 %1860, %v1619
      %v1862 = vpop.permute.xlu0 %1861
      %1865 = vset.pattern.permute.xlu0 0
      %1866 = vperm.xlu0 %1865, %v1620
      %v1867 = vpop.permute.xlu0 %1866
      %1870 = vset.pattern.permute.xlu0 0
      %1871 = vperm.xlu0 %1870, %v1621
      %v1872 = vpop.permute.xlu0 %1871
      %1875 = vset.pattern.permute.xlu0 0
      %1876 = vperm.xlu0 %1875, %v1622
      %v1877 = vpop.permute.xlu0 %1876
      %1880 = vset.pattern.permute.xlu0 0
      %1881 = vperm.xlu0 %1880, %v1623
      %v1882 = vpop.permute.xlu0 %1881
      %1885 = vset.pattern.permute.xlu0 0
      %1886 = vperm.xlu0 %1885, %v1624
      %v1887 = vpop.permute.xlu0 %1886
      %1890 = vset.pattern.permute.xlu0 0
      %1891 = vperm.xlu0 %1890, %v1625
      %v1892 = vpop.permute.xlu0 %1891
      %1895 = vset.pattern.permute.xlu0 0
      %1896 = vperm.xlu0 %1895, %v1626
      %v1897 = vpop.permute.xlu0 %1896
      %1900 = vset.pattern.permute.xlu0 0
      %1901 = vperm.xlu0 %1900, %v1627
      %v1902 = vpop.permute.xlu0 %1901
      %1905 = vset.pattern.permute.xlu0 0
      %1906 = vperm.xlu0 %1905, %v1628
      %v1907 = vpop.permute.xlu0 %1906
      %1910 = vset.pattern.permute.xlu0 0
      %1911 = vperm.xlu0 %1910, %v1629
      %v1912 = vpop.permute.xlu0 %1911
      %1915 = vset.pattern.permute.xlu0 0
      %1916 = vperm.xlu0 %1915, %v1630
      %v1917 = vpop.permute.xlu0 %1916
      %1920 = vset.pattern.permute.xlu0 0
      %1921 = vperm.xlu0 %1920, %v1631
      %v1922 = vpop.permute.xlu0 %1921
      %1925 = vset.pattern.permute.xlu0 0
      %1926 = vperm.xlu0 %1925, %v1632
      %v1927 = vpop.permute.xlu0 %1926
      %1930 = vset.pattern.permute.xlu0 0
      %1931 = vperm.xlu0 %1930, %v1633
      %v1932 = vpop.permute.xlu0 %1931
      %1935 = vset.pattern.permute.xlu0 0
      %1936 = vperm.xlu0 %1935, %v1634
      %v1937 = vpop.permute.xlu0 %1936
      %1940 = vset.pattern.permute.xlu0 0
      %1941 = vperm.xlu0 %1940, %v1635
      %v1942 = vpop.permute.xlu0 %1941
      %1945 = vset.pattern.permute.xlu0 0
      %1946 = vperm.xlu0 %1945, %v1636
      %v1947 = vpop.permute.xlu0 %1946
      %1950 = vset.pattern.permute.xlu0 0
      %1951 = vperm.xlu0 %1950, %v1637
      %v1952 = vpop.permute.xlu0 %1951
      %1955 = vset.pattern.permute.xlu0 0
      %1956 = vperm.xlu0 %1955, %v1638
      %v1957 = vpop.permute.xlu0 %1956
      %v1959 = vmul.f32 %v1320, %v1642
      %v1960 = vmul.f32 %v1322, %v1642
      %v1961 = vmul.f32 %v1324, %v1647
      %v1962 = vmul.f32 %v1326, %v1647
      %v1963 = vmul.f32 %v1328, %v1652
      %v1964 = vmul.f32 %v1330, %v1652
      %v1965 = vmul.f32 %v1332, %v1657
      %v1966 = vmul.f32 %v1334, %v1657
      %v1967 = vmul.f32 %v1336, %v1662
      %v1968 = vmul.f32 %v1338, %v1662
      %v1969 = vmul.f32 %v1340, %v1667
      %v1970 = vmul.f32 %v1342, %v1667
      %v1971 = vmul.f32 %v1344, %v1672
      %v1972 = vmul.f32 %v1346, %v1672
      %v1973 = vmul.f32 %v1348, %v1677
      %v1974 = vmul.f32 %v1350, %v1677
      %v1975 = vmul.f32 %v1352, %v1682
      %v1976 = vmul.f32 %v1354, %v1682
      %v1977 = vmul.f32 %v1356, %v1687
      %v1978 = vmul.f32 %v1358, %v1687
      %v1979 = vmul.f32 %v1360, %v1692
      %v1980 = vmul.f32 %v1362, %v1692
      %v1981 = vmul.f32 %v1364, %v1697
      %v1982 = vmul.f32 %v1366, %v1697
      %v1983 = vmul.f32 %v1368, %v1702
      %v1984 = vmul.f32 %v1370, %v1702
      %v1985 = vmul.f32 %v1372, %v1707
      %v1986 = vmul.f32 %v1374, %v1707
      %v1987 = vmul.f32 %v1376, %v1712
      %v1988 = vmul.f32 %v1378, %v1712
      %v1989 = vmul.f32 %v1380, %v1717
      %v1990 = vmul.f32 %v1382, %v1717
      %v1991 = vmul.f32 %v1384, %v1722
      %v1992 = vmul.f32 %v1386, %v1722
      %v1993 = vmul.f32 %v1388, %v1727
      %v1994 = vmul.f32 %v1390, %v1727
      %v1995 = vmul.f32 %v1392, %v1732
      %v1996 = vmul.f32 %v1394, %v1732
      %v1997 = vmul.f32 %v1396, %v1737
      %v1998 = vmul.f32 %v1398, %v1737
      %v1999 = vmul.f32 %v1400, %v1742
      %v2000 = vmul.f32 %v1402, %v1742
      %v2001 = vmul.f32 %v1404, %v1747
      %v2002 = vmul.f32 %v1406, %v1747
      %v2003 = vmul.f32 %v1408, %v1752
      %v2004 = vmul.f32 %v1410, %v1752
      %v2005 = vmul.f32 %v1412, %v1757
      %v2006 = vmul.f32 %v1414, %v1757
      %v2007 = vmul.f32 %v1416, %v1762
      %v2008 = vmul.f32 %v1418, %v1762
      %v2009 = vmul.f32 %v1420, %v1767
      %v2010 = vmul.f32 %v1422, %v1767
      %v2011 = vmul.f32 %v1424, %v1772
      %v2012 = vmul.f32 %v1426, %v1772
      %v2013 = vmul.f32 %v1428, %v1777
      %v2014 = vmul.f32 %v1430, %v1777
      %v2015 = vmul.f32 %v1432, %v1782
      %v2016 = vmul.f32 %v1434, %v1782
      %v2017 = vmul.f32 %v1436, %v1787
      %v2018 = vmul.f32 %v1438, %v1787
      %v2019 = vmul.f32 %v1440, %v1792
      %v2020 = vmul.f32 %v1442, %v1792
      %v2021 = vmul.f32 %v1444, %v1797
      %v2022 = vmul.f32 %v1446, %v1797
      %v2023 = vmul.f32 %v1448, %v1802
      %v2024 = vmul.f32 %v1450, %v1802
      %v2025 = vmul.f32 %v1452, %v1807
      %v2026 = vmul.f32 %v1454, %v1807
      %v2027 = vmul.f32 %v1456, %v1812
      %v2028 = vmul.f32 %v1458, %v1812
      %v2029 = vmul.f32 %v1460, %v1817
      %v2030 = vmul.f32 %v1462, %v1817
      %v2031 = vmul.f32 %v1464, %v1822
      %v2032 = vmul.f32 %v1466, %v1822
      %v2033 = vmul.f32 %v1468, %v1827
      %v2034 = vmul.f32 %v1470, %v1827
      %v2035 = vmul.f32 %v1472, %v1832
      %v2036 = vmul.f32 %v1474, %v1832
      %v2037 = vmul.f32 %v1476, %v1837
      %v2038 = vmul.f32 %v1478, %v1837
      %v2039 = vmul.f32 %v1480, %v1842
      %v2040 = vmul.f32 %v1482, %v1842
      %v2041 = vmul.f32 %v1484, %v1847
      %v2042 = vmul.f32 %v1486, %v1847
      %v2043 = vmul.f32 %v1488, %v1852
      %v2044 = vmul.f32 %v1490, %v1852
      %v2045 = vmul.f32 %v1492, %v1857
      %v2046 = vmul.f32 %v1494, %v1857
      %v2047 = vmul.f32 %v1496, %v1862
      %v2048 = vmul.f32 %v1498, %v1862
      %v2049 = vmul.f32 %v1500, %v1867
      %v2050 = vmul.f32 %v1502, %v1867
      %v2051 = vmul.f32 %v1504, %v1872
      %v2052 = vmul.f32 %v1506, %v1872
      %v2053 = vmul.f32 %v1508, %v1877
      %v2054 = vmul.f32 %v1510, %v1877
      %v2055 = vmul.f32 %v1512, %v1882
      %v2056 = vmul.f32 %v1514, %v1882
      %v2057 = vmul.f32 %v1516, %v1887
      %v2058 = vmul.f32 %v1518, %v1887
      %v2059 = vmul.f32 %v1520, %v1892
      %v2060 = vmul.f32 %v1522, %v1892
      %v2061 = vmul.f32 %v1524, %v1897
      %v2062 = vmul.f32 %v1526, %v1897
      %v2063 = vmul.f32 %v1528, %v1902
      %v2064 = vmul.f32 %v1530, %v1902
      %v2065 = vmul.f32 %v1532, %v1907
      %v2066 = vmul.f32 %v1534, %v1907
      %v2067 = vmul.f32 %v1536, %v1912
      %v2068 = vmul.f32 %v1538, %v1912
      %v2069 = vmul.f32 %v1540, %v1917
      %v2070 = vmul.f32 %v1542, %v1917
      %v2071 = vmul.f32 %v1544, %v1922
      %v2072 = vmul.f32 %v1546, %v1922
      %v2073 = vmul.f32 %v1548, %v1927
      %v2074 = vmul.f32 %v1550, %v1927
      %v2075 = vmul.f32 %v1552, %v1932
      %v2076 = vmul.f32 %v1554, %v1932
      %v2077 = vmul.f32 %v1556, %v1937
      %v2078 = vmul.f32 %v1558, %v1937
      %v2079 = vmul.f32 %v1560, %v1942
      %v2080 = vmul.f32 %v1562, %v1942
      %v2081 = vmul.f32 %v1564, %v1947
      %v2082 = vmul.f32 %v1566, %v1947
      %v2083 = vmul.f32 %v1568, %v1952
      %v2084 = vmul.f32 %v1570, %v1952
      %v2085 = vmul.f32 %v1572, %v1957
      %v2086 = vmul.f32 %v1574, %v1957
      %s2087 = smul.u32 %s22, 256
      %s2088 = sadd.s32 %s23, 1
      %s2089 = smul.u32 %s2088, 512
      %p2090 = scmp.lt.s32.totalorder %s2087, %s2089
      %s2091 = smul.u32 %s23, 512
      %s2092 = sadd.s32 %s22, 1
      %s2093 = smul.u32 %s2092, 256
      %p2094 = scmp.lt.s32.totalorder %s2091, %s2093
      %p2095 = pnand %p2090, %p2094
      %p2096 = pneg %p2095
      // Predicated region
      $region45: #{contrast_loss_point_cloud_intra_batch.1} parent=39 // pred_check
        _
      $region46: #{contrast_loss_point_cloud_intra_batch.1} parent=39 // pred_check_branch
        %2098 = sbr.rel (%p2095) target = $region48
      $region47: #{contrast_loss_point_cloud_intra_batch.1} parent=39 // pred_region
        %v2099 = vlaneseq
        %v2100 = vshrl.u32 %v2099, 7
        %v2101 = vadd.s32 %v2100, 8
        %v2102 = vadd.s32 %v2100, 16
        %v2103 = vadd.s32 %v2100, 24
        %v2104 = vadd.s32 %v2100, 32
        %v2105 = vadd.s32 %v2100, 40
        %v2106 = vadd.s32 %v2100, 48
        %v2107 = vadd.s32 %v2100, 56
        %v2108 = vadd.s32 %v2100, 64
        %v2109 = vadd.s32 %v2100, 72
        %v2110 = vadd.s32 %v2100, 80
        %v2111 = vadd.s32 %v2100, 88
        %v2112 = vadd.s32 %v2100, 96
        %v2113 = vadd.s32 %v2100, 104
        %v2114 = vadd.s32 %v2100, 112
        %v2115 = vadd.s32 %v2100, 120
        %v2116 = vadd.s32 %v2100, 128
        %v2117 = vadd.s32 %v2100, 136
        %v2118 = vadd.s32 %v2100, 144
        %v2119 = vadd.s32 %v2100, 152
        %v2120 = vadd.s32 %v2100, 160
        %v2121 = vadd.s32 %v2100, 168
        %v2122 = vadd.s32 %v2100, 176
        %v2123 = vadd.s32 %v2100, 184
        %v2124 = vadd.s32 %v2100, 192
        %v2125 = vadd.s32 %v2100, 200
        %v2126 = vadd.s32 %v2100, 208
        %v2127 = vadd.s32 %v2100, 216
        %v2128 = vadd.s32 %v2100, 224
        %v2129 = vadd.s32 %v2100, 232
        %v2130 = vadd.s32 %v2100, 240
        %v2131 = vadd.s32 %v2100, 248
        %v2132 = vadd.s32 %v2100, 256
        %v2133 = vadd.s32 %v2100, 264
        %v2134 = vadd.s32 %v2100, 272
        %v2135 = vadd.s32 %v2100, 280
        %v2136 = vadd.s32 %v2100, 288
        %v2137 = vadd.s32 %v2100, 296
        %v2138 = vadd.s32 %v2100, 304
        %v2139 = vadd.s32 %v2100, 312
        %v2140 = vadd.s32 %v2100, 320
        %v2141 = vadd.s32 %v2100, 328
        %v2142 = vadd.s32 %v2100, 336
        %v2143 = vadd.s32 %v2100, 344
        %v2144 = vadd.s32 %v2100, 352
        %v2145 = vadd.s32 %v2100, 360
        %v2146 = vadd.s32 %v2100, 368
        %v2147 = vadd.s32 %v2100, 376
        %v2148 = vadd.s32 %v2100, 384
        %v2149 = vadd.s32 %v2100, 392
        %v2150 = vadd.s32 %v2100, 400
        %v2151 = vadd.s32 %v2100, 408
        %v2152 = vadd.s32 %v2100, 416
        %v2153 = vadd.s32 %v2100, 424
        %v2154 = vadd.s32 %v2100, 432
        %v2155 = vadd.s32 %v2100, 440
        %v2156 = vadd.s32 %v2100, 448
        %v2157 = vadd.s32 %v2100, 456
        %v2158 = vadd.s32 %v2100, 464
        %v2159 = vadd.s32 %v2100, 472
        %v2160 = vadd.s32 %v2100, 480
        %v2161 = vadd.s32 %v2100, 488
        %v2162 = vadd.s32 %v2100, 496
        %v2163 = vadd.s32 %v2100, 504
        %v2164 = vstv %s2091
        %v2165 = vadd.s32 %v2164, %v2100
        %v2166 = vadd.s32 %v2164, %v2101
        %v2167 = vadd.s32 %v2164, %v2102
        %v2168 = vadd.s32 %v2164, %v2103
        %v2169 = vadd.s32 %v2164, %v2104
        %v2170 = vadd.s32 %v2164, %v2105
        %v2171 = vadd.s32 %v2164, %v2106
        %v2172 = vadd.s32 %v2164, %v2107
        %v2173 = vadd.s32 %v2164, %v2108
        %v2174 = vadd.s32 %v2164, %v2109
        %v2175 = vadd.s32 %v2164, %v2110
        %v2176 = vadd.s32 %v2164, %v2111
        %v2177 = vadd.s32 %v2164, %v2112
        %v2178 = vadd.s32 %v2164, %v2113
        %v2179 = vadd.s32 %v2164, %v2114
        %v2180 = vadd.s32 %v2164, %v2115
        %v2181 = vadd.s32 %v2164, %v2116
        %v2182 = vadd.s32 %v2164, %v2117
        %v2183 = vadd.s32 %v2164, %v2118
        %v2184 = vadd.s32 %v2164, %v2119
        %v2185 = vadd.s32 %v2164, %v2120
        %v2186 = vadd.s32 %v2164, %v2121
        %v2187 = vadd.s32 %v2164, %v2122
        %v2188 = vadd.s32 %v2164, %v2123
        %v2189 = vadd.s32 %v2164, %v2124
        %v2190 = vadd.s32 %v2164, %v2125
        %v2191 = vadd.s32 %v2164, %v2126
        %v2192 = vadd.s32 %v2164, %v2127
        %v2193 = vadd.s32 %v2164, %v2128
        %v2194 = vadd.s32 %v2164, %v2129
        %v2195 = vadd.s32 %v2164, %v2130
        %v2196 = vadd.s32 %v2164, %v2131
        %v2197 = vadd.s32 %v2164, %v2132
        %v2198 = vadd.s32 %v2164, %v2133
        %v2199 = vadd.s32 %v2164, %v2134
        %v2200 = vadd.s32 %v2164, %v2135
        %v2201 = vadd.s32 %v2164, %v2136
        %v2202 = vadd.s32 %v2164, %v2137
        %v2203 = vadd.s32 %v2164, %v2138
        %v2204 = vadd.s32 %v2164, %v2139
        %v2205 = vadd.s32 %v2164, %v2140
        %v2206 = vadd.s32 %v2164, %v2141
        %v2207 = vadd.s32 %v2164, %v2142
        %v2208 = vadd.s32 %v2164, %v2143
        %v2209 = vadd.s32 %v2164, %v2144
        %v2210 = vadd.s32 %v2164, %v2145
        %v2211 = vadd.s32 %v2164, %v2146
        %v2212 = vadd.s32 %v2164, %v2147
        %v2213 = vadd.s32 %v2164, %v2148
        %v2214 = vadd.s32 %v2164, %v2149
        %v2215 = vadd.s32 %v2164, %v2150
        %v2216 = vadd.s32 %v2164, %v2151
        %v2217 = vadd.s32 %v2164, %v2152
        %v2218 = vadd.s32 %v2164, %v2153
        %v2219 = vadd.s32 %v2164, %v2154
        %v2220 = vadd.s32 %v2164, %v2155
        %v2221 = vadd.s32 %v2164, %v2156
        %v2222 = vadd.s32 %v2164, %v2157
        %v2223 = vadd.s32 %v2164, %v2158
        %v2224 = vadd.s32 %v2164, %v2159
        %v2225 = vadd.s32 %v2164, %v2160
        %v2226 = vadd.s32 %v2164, %v2161
        %v2227 = vadd.s32 %v2164, %v2162
        %v2228 = vadd.s32 %v2164, %v2163
        %v2229 = vlaneseq
        %v2230 = vand.u32 %v2229, 127
        %v2231 = vadd.s32 %v2230, 128
        %v2232 = vstv %s2087
        %v2233 = vadd.s32 %v2232, %v2230
        %v2234 = vadd.s32 %v2232, %v2231
        %vm2235 = vcmp.ne.s32.totalorder %v2165, %v2233
        %vm2236 = vcmp.ne.s32.totalorder %v2165, %v2234
        %vm2237 = vcmp.ne.s32.totalorder %v2166, %v2233
        %vm2238 = vcmp.ne.s32.totalorder %v2166, %v2234
        %vm2239 = vcmp.ne.s32.totalorder %v2167, %v2233
        %vm2240 = vcmp.ne.s32.totalorder %v2167, %v2234
        %vm2241 = vcmp.ne.s32.totalorder %v2168, %v2233
        %vm2242 = vcmp.ne.s32.totalorder %v2168, %v2234
        %vm2243 = vcmp.ne.s32.totalorder %v2169, %v2233
        %vm2244 = vcmp.ne.s32.totalorder %v2169, %v2234
        %vm2245 = vcmp.ne.s32.totalorder %v2170, %v2233
        %vm2246 = vcmp.ne.s32.totalorder %v2170, %v2234
        %vm2247 = vcmp.ne.s32.totalorder %v2171, %v2233
        %vm2248 = vcmp.ne.s32.totalorder %v2171, %v2234
        %vm2249 = vcmp.ne.s32.totalorder %v2172, %v2233
        %vm2250 = vcmp.ne.s32.totalorder %v2172, %v2234
        %vm2251 = vcmp.ne.s32.totalorder %v2173, %v2233
        %vm2252 = vcmp.ne.s32.totalorder %v2173, %v2234
        %vm2253 = vcmp.ne.s32.totalorder %v2174, %v2233
        %vm2254 = vcmp.ne.s32.totalorder %v2174, %v2234
        %vm2255 = vcmp.ne.s32.totalorder %v2175, %v2233
        %vm2256 = vcmp.ne.s32.totalorder %v2175, %v2234
        %vm2257 = vcmp.ne.s32.totalorder %v2176, %v2233
        %vm2258 = vcmp.ne.s32.totalorder %v2176, %v2234
        %vm2259 = vcmp.ne.s32.totalorder %v2177, %v2233
        %vm2260 = vcmp.ne.s32.totalorder %v2177, %v2234
        %vm2261 = vcmp.ne.s32.totalorder %v2178, %v2233
        %vm2262 = vcmp.ne.s32.totalorder %v2178, %v2234
        %vm2263 = vcmp.ne.s32.totalorder %v2179, %v2233
        %vm2264 = vcmp.ne.s32.totalorder %v2179, %v2234
        %vm2265 = vcmp.ne.s32.totalorder %v2180, %v2233
        %vm2266 = vcmp.ne.s32.totalorder %v2180, %v2234
        %vm2267 = vcmp.ne.s32.totalorder %v2181, %v2233
        %vm2268 = vcmp.ne.s32.totalorder %v2181, %v2234
        %vm2269 = vcmp.ne.s32.totalorder %v2182, %v2233
        %vm2270 = vcmp.ne.s32.totalorder %v2182, %v2234
        %vm2271 = vcmp.ne.s32.totalorder %v2183, %v2233
        %vm2272 = vcmp.ne.s32.totalorder %v2183, %v2234
        %vm2273 = vcmp.ne.s32.totalorder %v2184, %v2233
        %vm2274 = vcmp.ne.s32.totalorder %v2184, %v2234
        %vm2275 = vcmp.ne.s32.totalorder %v2185, %v2233
        %vm2276 = vcmp.ne.s32.totalorder %v2185, %v2234
        %vm2277 = vcmp.ne.s32.totalorder %v2186, %v2233
        %vm2278 = vcmp.ne.s32.totalorder %v2186, %v2234
        %vm2279 = vcmp.ne.s32.totalorder %v2187, %v2233
        %vm2280 = vcmp.ne.s32.totalorder %v2187, %v2234
        %vm2281 = vcmp.ne.s32.totalorder %v2188, %v2233
        %vm2282 = vcmp.ne.s32.totalorder %v2188, %v2234
        %vm2283 = vcmp.ne.s32.totalorder %v2189, %v2233
        %vm2284 = vcmp.ne.s32.totalorder %v2189, %v2234
        %vm2285 = vcmp.ne.s32.totalorder %v2190, %v2233
        %vm2286 = vcmp.ne.s32.totalorder %v2190, %v2234
        %vm2287 = vcmp.ne.s32.totalorder %v2191, %v2233
        %vm2288 = vcmp.ne.s32.totalorder %v2191, %v2234
        %vm2289 = vcmp.ne.s32.totalorder %v2192, %v2233
        %vm2290 = vcmp.ne.s32.totalorder %v2192, %v2234
        %vm2291 = vcmp.ne.s32.totalorder %v2193, %v2233
        %vm2292 = vcmp.ne.s32.totalorder %v2193, %v2234
        %vm2293 = vcmp.ne.s32.totalorder %v2194, %v2233
        %vm2294 = vcmp.ne.s32.totalorder %v2194, %v2234
        %vm2295 = vcmp.ne.s32.totalorder %v2195, %v2233
        %vm2296 = vcmp.ne.s32.totalorder %v2195, %v2234
        %vm2297 = vcmp.ne.s32.totalorder %v2196, %v2233
        %vm2298 = vcmp.ne.s32.totalorder %v2196, %v2234
        %vm2299 = vcmp.ne.s32.totalorder %v2197, %v2233
        %vm2300 = vcmp.ne.s32.totalorder %v2197, %v2234
        %vm2301 = vcmp.ne.s32.totalorder %v2198, %v2233
        %vm2302 = vcmp.ne.s32.totalorder %v2198, %v2234
        %vm2303 = vcmp.ne.s32.totalorder %v2199, %v2233
        %vm2304 = vcmp.ne.s32.totalorder %v2199, %v2234
        %vm2305 = vcmp.ne.s32.totalorder %v2200, %v2233
        %vm2306 = vcmp.ne.s32.totalorder %v2200, %v2234
        %vm2307 = vcmp.ne.s32.totalorder %v2201, %v2233
        %vm2308 = vcmp.ne.s32.totalorder %v2201, %v2234
        %vm2309 = vcmp.ne.s32.totalorder %v2202, %v2233
        %vm2310 = vcmp.ne.s32.totalorder %v2202, %v2234
        %vm2311 = vcmp.ne.s32.totalorder %v2203, %v2233
        %vm2312 = vcmp.ne.s32.totalorder %v2203, %v2234
        %vm2313 = vcmp.ne.s32.totalorder %v2204, %v2233
        %vm2314 = vcmp.ne.s32.totalorder %v2204, %v2234
        %vm2315 = vcmp.ne.s32.totalorder %v2205, %v2233
        %vm2316 = vcmp.ne.s32.totalorder %v2205, %v2234
        %vm2317 = vcmp.ne.s32.totalorder %v2206, %v2233
        %vm2318 = vcmp.ne.s32.totalorder %v2206, %v2234
        %vm2319 = vcmp.ne.s32.totalorder %v2207, %v2233
        %vm2320 = vcmp.ne.s32.totalorder %v2207, %v2234
        %vm2321 = vcmp.ne.s32.totalorder %v2208, %v2233
        %vm2322 = vcmp.ne.s32.totalorder %v2208, %v2234
        %vm2323 = vcmp.ne.s32.totalorder %v2209, %v2233
        %vm2324 = vcmp.ne.s32.totalorder %v2209, %v2234
        %vm2325 = vcmp.ne.s32.totalorder %v2210, %v2233
        %vm2326 = vcmp.ne.s32.totalorder %v2210, %v2234
        %vm2327 = vcmp.ne.s32.totalorder %v2211, %v2233
        %vm2328 = vcmp.ne.s32.totalorder %v2211, %v2234
        %vm2329 = vcmp.ne.s32.totalorder %v2212, %v2233
        %vm2330 = vcmp.ne.s32.totalorder %v2212, %v2234
        %vm2331 = vcmp.ne.s32.totalorder %v2213, %v2233
        %vm2332 = vcmp.ne.s32.totalorder %v2213, %v2234
        %vm2333 = vcmp.ne.s32.totalorder %v2214, %v2233
        %vm2334 = vcmp.ne.s32.totalorder %v2214, %v2234
        %vm2335 = vcmp.ne.s32.totalorder %v2215, %v2233
        %vm2336 = vcmp.ne.s32.totalorder %v2215, %v2234
        %vm2337 = vcmp.ne.s32.totalorder %v2216, %v2233
        %vm2338 = vcmp.ne.s32.totalorder %v2216, %v2234
        %vm2339 = vcmp.ne.s32.totalorder %v2217, %v2233
        %vm2340 = vcmp.ne.s32.totalorder %v2217, %v2234
        %vm2341 = vcmp.ne.s32.totalorder %v2218, %v2233
        %vm2342 = vcmp.ne.s32.totalorder %v2218, %v2234
        %vm2343 = vcmp.ne.s32.totalorder %v2219, %v2233
        %vm2344 = vcmp.ne.s32.totalorder %v2219, %v2234
        %vm2345 = vcmp.ne.s32.totalorder %v2220, %v2233
        %vm2346 = vcmp.ne.s32.totalorder %v2220, %v2234
        %vm2347 = vcmp.ne.s32.totalorder %v2221, %v2233
        %vm2348 = vcmp.ne.s32.totalorder %v2221, %v2234
        %vm2349 = vcmp.ne.s32.totalorder %v2222, %v2233
        %vm2350 = vcmp.ne.s32.totalorder %v2222, %v2234
        %vm2351 = vcmp.ne.s32.totalorder %v2223, %v2233
        %vm2352 = vcmp.ne.s32.totalorder %v2223, %v2234
        %vm2353 = vcmp.ne.s32.totalorder %v2224, %v2233
        %vm2354 = vcmp.ne.s32.totalorder %v2224, %v2234
        %vm2355 = vcmp.ne.s32.totalorder %v2225, %v2233
        %vm2356 = vcmp.ne.s32.totalorder %v2225, %v2234
        %vm2357 = vcmp.ne.s32.totalorder %v2226, %v2233
        %vm2358 = vcmp.ne.s32.totalorder %v2226, %v2234
        %vm2359 = vcmp.ne.s32.totalorder %v2227, %v2233
        %vm2360 = vcmp.ne.s32.totalorder %v2227, %v2234
        %vm2361 = vcmp.ne.s32.totalorder %v2228, %v2233
        %vm2362 = vcmp.ne.s32.totalorder %v2228, %v2234
        %v2363 = vsel %vm2235, %v1959, 0.0
        %v2364 = vsel %vm2236, %v1960, 0.0
        %v2365 = vsel %vm2237, %v1961, 0.0
        %v2366 = vsel %vm2238, %v1962, 0.0
        %v2367 = vsel %vm2239, %v1963, 0.0
        %v2368 = vsel %vm2240, %v1964, 0.0
        %v2369 = vsel %vm2241, %v1965, 0.0
        %v2370 = vsel %vm2242, %v1966, 0.0
        %v2371 = vsel %vm2243, %v1967, 0.0
        %v2372 = vsel %vm2244, %v1968, 0.0
        %v2373 = vsel %vm2245, %v1969, 0.0
        %v2374 = vsel %vm2246, %v1970, 0.0
        %v2375 = vsel %vm2247, %v1971, 0.0
        %v2376 = vsel %vm2248, %v1972, 0.0
        %v2377 = vsel %vm2249, %v1973, 0.0
        %v2378 = vsel %vm2250, %v1974, 0.0
        %v2379 = vsel %vm2251, %v1975, 0.0
        %v2380 = vsel %vm2252, %v1976, 0.0
        %v2381 = vsel %vm2253, %v1977, 0.0
        %v2382 = vsel %vm2254, %v1978, 0.0
        %v2383 = vsel %vm2255, %v1979, 0.0
        %v2384 = vsel %vm2256, %v1980, 0.0
        %v2385 = vsel %vm2257, %v1981, 0.0
        %v2386 = vsel %vm2258, %v1982, 0.0
        %v2387 = vsel %vm2259, %v1983, 0.0
        %v2388 = vsel %vm2260, %v1984, 0.0
        %v2389 = vsel %vm2261, %v1985, 0.0
        %v2390 = vsel %vm2262, %v1986, 0.0
        %v2391 = vsel %vm2263, %v1987, 0.0
        %v2392 = vsel %vm2264, %v1988, 0.0
        %v2393 = vsel %vm2265, %v1989, 0.0
        %v2394 = vsel %vm2266, %v1990, 0.0
        %v2395 = vsel %vm2267, %v1991, 0.0
        %v2396 = vsel %vm2268, %v1992, 0.0
        %v2397 = vsel %vm2269, %v1993, 0.0
        %v2398 = vsel %vm2270, %v1994, 0.0
        %v2399 = vsel %vm2271, %v1995, 0.0
        %v2400 = vsel %vm2272, %v1996, 0.0
        %v2401 = vsel %vm2273, %v1997, 0.0
        %v2402 = vsel %vm2274, %v1998, 0.0
        %v2403 = vsel %vm2275, %v1999, 0.0
        %v2404 = vsel %vm2276, %v2000, 0.0
        %v2405 = vsel %vm2277, %v2001, 0.0
        %v2406 = vsel %vm2278, %v2002, 0.0
        %v2407 = vsel %vm2279, %v2003, 0.0
        %v2408 = vsel %vm2280, %v2004, 0.0
        %v2409 = vsel %vm2281, %v2005, 0.0
        %v2410 = vsel %vm2282, %v2006, 0.0
        %v2411 = vsel %vm2283, %v2007, 0.0
        %v2412 = vsel %vm2284, %v2008, 0.0
        %v2413 = vsel %vm2285, %v2009, 0.0
        %v2414 = vsel %vm2286, %v2010, 0.0
        %v2415 = vsel %vm2287, %v2011, 0.0
        %v2416 = vsel %vm2288, %v2012, 0.0
        %v2417 = vsel %vm2289, %v2013, 0.0
        %v2418 = vsel %vm2290, %v2014, 0.0
        %v2419 = vsel %vm2291, %v2015, 0.0
        %v2420 = vsel %vm2292, %v2016, 0.0
        %v2421 = vsel %vm2293, %v2017, 0.0
        %v2422 = vsel %vm2294, %v2018, 0.0
        %v2423 = vsel %vm2295, %v2019, 0.0
        %v2424 = vsel %vm2296, %v2020, 0.0
        %v2425 = vsel %vm2297, %v2021, 0.0
        %v2426 = vsel %vm2298, %v2022, 0.0
        %v2427 = vsel %vm2299, %v2023, 0.0
        %v2428 = vsel %vm2300, %v2024, 0.0
        %v2429 = vsel %vm2301, %v2025, 0.0
        %v2430 = vsel %vm2302, %v2026, 0.0
        %v2431 = vsel %vm2303, %v2027, 0.0
        %v2432 = vsel %vm2304, %v2028, 0.0
        %v2433 = vsel %vm2305, %v2029, 0.0
        %v2434 = vsel %vm2306, %v2030, 0.0
        %v2435 = vsel %vm2307, %v2031, 0.0
        %v2436 = vsel %vm2308, %v2032, 0.0
        %v2437 = vsel %vm2309, %v2033, 0.0
        %v2438 = vsel %vm2310, %v2034, 0.0
        %v2439 = vsel %vm2311, %v2035, 0.0
        %v2440 = vsel %vm2312, %v2036, 0.0
        %v2441 = vsel %vm2313, %v2037, 0.0
        %v2442 = vsel %vm2314, %v2038, 0.0
        %v2443 = vsel %vm2315, %v2039, 0.0
        %v2444 = vsel %vm2316, %v2040, 0.0
        %v2445 = vsel %vm2317, %v2041, 0.0
        %v2446 = vsel %vm2318, %v2042, 0.0
        %v2447 = vsel %vm2319, %v2043, 0.0
        %v2448 = vsel %vm2320, %v2044, 0.0
        %v2449 = vsel %vm2321, %v2045, 0.0
        %v2450 = vsel %vm2322, %v2046, 0.0
        %v2451 = vsel %vm2323, %v2047, 0.0
        %v2452 = vsel %vm2324, %v2048, 0.0
        %v2453 = vsel %vm2325, %v2049, 0.0
        %v2454 = vsel %vm2326, %v2050, 0.0
        %v2455 = vsel %vm2327, %v2051, 0.0
        %v2456 = vsel %vm2328, %v2052, 0.0
        %v2457 = vsel %vm2329, %v2053, 0.0
        %v2458 = vsel %vm2330, %v2054, 0.0
        %v2459 = vsel %vm2331, %v2055, 0.0
        %v2460 = vsel %vm2332, %v2056, 0.0
        %v2461 = vsel %vm2333, %v2057, 0.0
        %v2462 = vsel %vm2334, %v2058, 0.0
        %v2463 = vsel %vm2335, %v2059, 0.0
        %v2464 = vsel %vm2336, %v2060, 0.0
        %v2465 = vsel %vm2337, %v2061, 0.0
        %v2466 = vsel %vm2338, %v2062, 0.0
        %v2467 = vsel %vm2339, %v2063, 0.0
        %v2468 = vsel %vm2340, %v2064, 0.0
        %v2469 = vsel %vm2341, %v2065, 0.0
        %v2470 = vsel %vm2342, %v2066, 0.0
        %v2471 = vsel %vm2343, %v2067, 0.0
        %v2472 = vsel %vm2344, %v2068, 0.0
        %v2473 = vsel %vm2345, %v2069, 0.0
        %v2474 = vsel %vm2346, %v2070, 0.0
        %v2475 = vsel %vm2347, %v2071, 0.0
        %v2476 = vsel %vm2348, %v2072, 0.0
        %v2477 = vsel %vm2349, %v2073, 0.0
        %v2478 = vsel %vm2350, %v2074, 0.0
        %v2479 = vsel %vm2351, %v2075, 0.0
        %v2480 = vsel %vm2352, %v2076, 0.0
        %v2481 = vsel %vm2353, %v2077, 0.0
        %v2482 = vsel %vm2354, %v2078, 0.0
        %v2483 = vsel %vm2355, %v2079, 0.0
        %v2484 = vsel %vm2356, %v2080, 0.0
        %v2485 = vsel %vm2357, %v2081, 0.0
        %v2486 = vsel %vm2358, %v2082, 0.0
        %v2487 = vsel %vm2359, %v2083, 0.0
        %v2488 = vsel %vm2360, %v2084, 0.0
        %v2489 = vsel %vm2361, %v2085, 0.0
        %v2490 = vsel %vm2362, %v2086, 0.0
        %v2491 = vld [vmem:[%s344] sm:$0xff]
        %v2492 = vld [vmem:[%s344 + $0x8] sm:$0xff]
        %v2493 = vld [vmem:[%s344 + $0x10] sm:$0xff]
        %v2494 = vld [vmem:[%s344 + $0x18] sm:$0xff]
        %v2495 = vld [vmem:[%s344 + $0x20] sm:$0xff]
        %v2496 = vld [vmem:[%s344 + $0x28] sm:$0xff]
        %v2497 = vld [vmem:[%s344 + $0x30] sm:$0xff]
        %v2498 = vld [vmem:[%s344 + $0x38] sm:$0xff]
        %v2499 = vld [vmem:[%s344 + $0x40] sm:$0xff]
        %v2500 = vld [vmem:[%s344 + $0x48] sm:$0xff]
        %v2501 = vld [vmem:[%s344 + $0x50] sm:$0xff]
        %v2502 = vld [vmem:[%s344 + $0x58] sm:$0xff]
        %v2503 = vld [vmem:[%s344 + $0x60] sm:$0xff]
        %v2504 = vld [vmem:[%s344 + $0x68] sm:$0xff]
        %v2505 = vld [vmem:[%s344 + $0x70] sm:$0xff]
        %v2506 = vld [vmem:[%s344 + $0x78] sm:$0xff]
        %v2507 = vld [vmem:[%s344 + $0x80] sm:$0xff]
        %v2508 = vld [vmem:[%s344 + $0x88] sm:$0xff]
        %v2509 = vld [vmem:[%s344 + $0x90] sm:$0xff]
        %v2510 = vld [vmem:[%s344 + $0x98] sm:$0xff]
        %v2511 = vld [vmem:[%s344 + $0xa0] sm:$0xff]
        %v2512 = vld [vmem:[%s344 + $0xa8] sm:$0xff]
        %v2513 = vld [vmem:[%s344 + $0xb0] sm:$0xff]
        %v2514 = vld [vmem:[%s344 + $0xb8] sm:$0xff]
        %v2515 = vld [vmem:[%s344 + $0xc0] sm:$0xff]
        %v2516 = vld [vmem:[%s344 + $0xc8] sm:$0xff]
        %v2517 = vld [vmem:[%s344 + $0xd0] sm:$0xff]
        %v2518 = vld [vmem:[%s344 + $0xd8] sm:$0xff]
        %v2519 = vld [vmem:[%s344 + $0xe0] sm:$0xff]
        %v2520 = vld [vmem:[%s344 + $0xe8] sm:$0xff]
        %v2521 = vld [vmem:[%s344 + $0xf0] sm:$0xff]
        %v2522 = vld [vmem:[%s344 + $0xf8] sm:$0xff]
        %v2523 = vld [vmem:[%s344 + $0x100] sm:$0xff]
        %v2524 = vld [vmem:[%s344 + $0x108] sm:$0xff]
        %v2525 = vld [vmem:[%s344 + $0x110] sm:$0xff]
        %v2526 = vld [vmem:[%s344 + $0x118] sm:$0xff]
        %v2527 = vld [vmem:[%s344 + $0x120] sm:$0xff]
        %v2528 = vld [vmem:[%s344 + $0x128] sm:$0xff]
        %v2529 = vld [vmem:[%s344 + $0x130] sm:$0xff]
        %v2530 = vld [vmem:[%s344 + $0x138] sm:$0xff]
        %v2531 = vld [vmem:[%s344 + $0x140] sm:$0xff]
        %v2532 = vld [vmem:[%s344 + $0x148] sm:$0xff]
        %v2533 = vld [vmem:[%s344 + $0x150] sm:$0xff]
        %v2534 = vld [vmem:[%s344 + $0x158] sm:$0xff]
        %v2535 = vld [vmem:[%s344 + $0x160] sm:$0xff]
        %v2536 = vld [vmem:[%s344 + $0x168] sm:$0xff]
        %v2537 = vld [vmem:[%s344 + $0x170] sm:$0xff]
        %v2538 = vld [vmem:[%s344 + $0x178] sm:$0xff]
        %v2539 = vld [vmem:[%s344 + $0x180] sm:$0xff]
        %v2540 = vld [vmem:[%s344 + $0x188] sm:$0xff]
        %v2541 = vld [vmem:[%s344 + $0x190] sm:$0xff]
        %v2542 = vld [vmem:[%s344 + $0x198] sm:$0xff]
        %v2543 = vld [vmem:[%s344 + $0x1a0] sm:$0xff]
        %v2544 = vld [vmem:[%s344 + $0x1a8] sm:$0xff]
        %v2545 = vld [vmem:[%s344 + $0x1b0] sm:$0xff]
        %v2546 = vld [vmem:[%s344 + $0x1b8] sm:$0xff]
        %v2547 = vld [vmem:[%s344 + $0x1c0] sm:$0xff]
        %v2548 = vld [vmem:[%s344 + $0x1c8] sm:$0xff]
        %v2549 = vld [vmem:[%s344 + $0x1d0] sm:$0xff]
        %v2550 = vld [vmem:[%s344 + $0x1d8] sm:$0xff]
        %v2551 = vld [vmem:[%s344 + $0x1e0] sm:$0xff]
        %v2552 = vld [vmem:[%s344 + $0x1e8] sm:$0xff]
        %v2553 = vld [vmem:[%s344 + $0x1f0] sm:$0xff]
        %v2554 = vld [vmem:[%s344 + $0x1f8] sm:$0xff]
        %v2555 = vld [vmem:[%s338] sm:$0x3]
        %2556 = vset.pattern.permute.xlu0 0
        %2557 = vperm.xlu0 %2556, %v2491
        %v2558 = vpop.permute.xlu0 %2557
        %2559 = vset.pattern.permute.xlu0 0
        %2560 = vperm.xlu0 %2559, %v2492
        %v2561 = vpop.permute.xlu0 %2560
        %2562 = vset.pattern.permute.xlu0 0
        %2563 = vperm.xlu0 %2562, %v2493
        %v2564 = vpop.permute.xlu0 %2563
        %2565 = vset.pattern.permute.xlu0 0
        %2566 = vperm.xlu0 %2565, %v2494
        %v2567 = vpop.permute.xlu0 %2566
        %2568 = vset.pattern.permute.xlu0 0
        %2569 = vperm.xlu0 %2568, %v2495
        %v2570 = vpop.permute.xlu0 %2569
        %2571 = vset.pattern.permute.xlu0 0
        %2572 = vperm.xlu0 %2571, %v2496
        %v2573 = vpop.permute.xlu0 %2572
        %2574 = vset.pattern.permute.xlu0 0
        %2575 = vperm.xlu0 %2574, %v2497
        %v2576 = vpop.permute.xlu0 %2575
        %2577 = vset.pattern.permute.xlu0 0
        %2578 = vperm.xlu0 %2577, %v2498
        %v2579 = vpop.permute.xlu0 %2578
        %2580 = vset.pattern.permute.xlu0 0
        %2581 = vperm.xlu0 %2580, %v2499
        %v2582 = vpop.permute.xlu0 %2581
        %2583 = vset.pattern.permute.xlu0 0
        %2584 = vperm.xlu0 %2583, %v2500
        %v2585 = vpop.permute.xlu0 %2584
        %2586 = vset.pattern.permute.xlu0 0
        %2587 = vperm.xlu0 %2586, %v2501
        %v2588 = vpop.permute.xlu0 %2587
        %2589 = vset.pattern.permute.xlu0 0
        %2590 = vperm.xlu0 %2589, %v2502
        %v2591 = vpop.permute.xlu0 %2590
        %2592 = vset.pattern.permute.xlu0 0
        %2593 = vperm.xlu0 %2592, %v2503
        %v2594 = vpop.permute.xlu0 %2593
        %2595 = vset.pattern.permute.xlu0 0
        %2596 = vperm.xlu0 %2595, %v2504
        %v2597 = vpop.permute.xlu0 %2596
        %2598 = vset.pattern.permute.xlu0 0
        %2599 = vperm.xlu0 %2598, %v2505
        %v2600 = vpop.permute.xlu0 %2599
        %2601 = vset.pattern.permute.xlu0 0
        %2602 = vperm.xlu0 %2601, %v2506
        %v2603 = vpop.permute.xlu0 %2602
        %2604 = vset.pattern.permute.xlu0 0
        %2605 = vperm.xlu0 %2604, %v2507
        %v2606 = vpop.permute.xlu0 %2605
        %2607 = vset.pattern.permute.xlu0 0
        %2608 = vperm.xlu0 %2607, %v2508
        %v2609 = vpop.permute.xlu0 %2608
        %2610 = vset.pattern.permute.xlu0 0
        %2611 = vperm.xlu0 %2610, %v2509
        %v2612 = vpop.permute.xlu0 %2611
        %2613 = vset.pattern.permute.xlu0 0
        %2614 = vperm.xlu0 %2613, %v2510
        %v2615 = vpop.permute.xlu0 %2614
        %2616 = vset.pattern.permute.xlu0 0
        %2617 = vperm.xlu0 %2616, %v2511
        %v2618 = vpop.permute.xlu0 %2617
        %2619 = vset.pattern.permute.xlu0 0
        %2620 = vperm.xlu0 %2619, %v2512
        %v2621 = vpop.permute.xlu0 %2620
        %2622 = vset.pattern.permute.xlu0 0
        %2623 = vperm.xlu0 %2622, %v2513
        %v2624 = vpop.permute.xlu0 %2623
        %2625 = vset.pattern.permute.xlu0 0
        %2626 = vperm.xlu0 %2625, %v2514
        %v2627 = vpop.permute.xlu0 %2626
        %2628 = vset.pattern.permute.xlu0 0
        %2629 = vperm.xlu0 %2628, %v2515
        %v2630 = vpop.permute.xlu0 %2629
        %2631 = vset.pattern.permute.xlu0 0
        %2632 = vperm.xlu0 %2631, %v2516
        %v2633 = vpop.permute.xlu0 %2632
        %2634 = vset.pattern.permute.xlu0 0
        %2635 = vperm.xlu0 %2634, %v2517
        %v2636 = vpop.permute.xlu0 %2635
        %2637 = vset.pattern.permute.xlu0 0
        %2638 = vperm.xlu0 %2637, %v2518
        %v2639 = vpop.permute.xlu0 %2638
        %2640 = vset.pattern.permute.xlu0 0
        %2641 = vperm.xlu0 %2640, %v2519
        %v2642 = vpop.permute.xlu0 %2641
        %2643 = vset.pattern.permute.xlu0 0
        %2644 = vperm.xlu0 %2643, %v2520
        %v2645 = vpop.permute.xlu0 %2644
        %2646 = vset.pattern.permute.xlu0 0
        %2647 = vperm.xlu0 %2646, %v2521
        %v2648 = vpop.permute.xlu0 %2647
        %2649 = vset.pattern.permute.xlu0 0
        %2650 = vperm.xlu0 %2649, %v2522
        %v2651 = vpop.permute.xlu0 %2650
        %2652 = vset.pattern.permute.xlu0 0
        %2653 = vperm.xlu0 %2652, %v2523
        %v2654 = vpop.permute.xlu0 %2653
        %2655 = vset.pattern.permute.xlu0 0
        %2656 = vperm.xlu0 %2655, %v2524
        %v2657 = vpop.permute.xlu0 %2656
        %2658 = vset.pattern.permute.xlu0 0
        %2659 = vperm.xlu0 %2658, %v2525
        %v2660 = vpop.permute.xlu0 %2659
        %2661 = vset.pattern.permute.xlu0 0
        %2662 = vperm.xlu0 %2661, %v2526
        %v2663 = vpop.permute.xlu0 %2662
        %2664 = vset.pattern.permute.xlu0 0
        %2665 = vperm.xlu0 %2664, %v2527
        %v2666 = vpop.permute.xlu0 %2665
        %2667 = vset.pattern.permute.xlu0 0
        %2668 = vperm.xlu0 %2667, %v2528
        %v2669 = vpop.permute.xlu0 %2668
        %2670 = vset.pattern.permute.xlu0 0
        %2671 = vperm.xlu0 %2670, %v2529
        %v2672 = vpop.permute.xlu0 %2671
        %2673 = vset.pattern.permute.xlu0 0
        %2674 = vperm.xlu0 %2673, %v2530
        %v2675 = vpop.permute.xlu0 %2674
        %2676 = vset.pattern.permute.xlu0 0
        %2677 = vperm.xlu0 %2676, %v2531
        %v2678 = vpop.permute.xlu0 %2677
        %2679 = vset.pattern.permute.xlu0 0
        %2680 = vperm.xlu0 %2679, %v2532
        %v2681 = vpop.permute.xlu0 %2680
        %2682 = vset.pattern.permute.xlu0 0
        %2683 = vperm.xlu0 %2682, %v2533
        %v2684 = vpop.permute.xlu0 %2683
        %2685 = vset.pattern.permute.xlu0 0
        %2686 = vperm.xlu0 %2685, %v2534
        %v2687 = vpop.permute.xlu0 %2686
        %2688 = vset.pattern.permute.xlu0 0
        %2689 = vperm.xlu0 %2688, %v2535
        %v2690 = vpop.permute.xlu0 %2689
        %2691 = vset.pattern.permute.xlu0 0
        %2692 = vperm.xlu0 %2691, %v2536
        %v2693 = vpop.permute.xlu0 %2692
        %2694 = vset.pattern.permute.xlu0 0
        %2695 = vperm.xlu0 %2694, %v2537
        %v2696 = vpop.permute.xlu0 %2695
        %2697 = vset.pattern.permute.xlu0 0
        %2698 = vperm.xlu0 %2697, %v2538
        %v2699 = vpop.permute.xlu0 %2698
        %2700 = vset.pattern.permute.xlu0 0
        %2701 = vperm.xlu0 %2700, %v2539
        %v2702 = vpop.permute.xlu0 %2701
        %2703 = vset.pattern.permute.xlu0 0
        %2704 = vperm.xlu0 %2703, %v2540
        %v2705 = vpop.permute.xlu0 %2704
        %2706 = vset.pattern.permute.xlu0 0
        %2707 = vperm.xlu0 %2706, %v2541
        %v2708 = vpop.permute.xlu0 %2707
        %2709 = vset.pattern.permute.xlu0 0
        %2710 = vperm.xlu0 %2709, %v2542
        %v2711 = vpop.permute.xlu0 %2710
        %2712 = vset.pattern.permute.xlu0 0
        %2713 = vperm.xlu0 %2712, %v2543
        %v2714 = vpop.permute.xlu0 %2713
        %2715 = vset.pattern.permute.xlu0 0
        %2716 = vperm.xlu0 %2715, %v2544
        %v2717 = vpop.permute.xlu0 %2716
        %2718 = vset.pattern.permute.xlu0 0
        %2719 = vperm.xlu0 %2718, %v2545
        %v2720 = vpop.permute.xlu0 %2719
        %2721 = vset.pattern.permute.xlu0 0
        %2722 = vperm.xlu0 %2721, %v2546
        %v2723 = vpop.permute.xlu0 %2722
        %2724 = vset.pattern.permute.xlu0 0
        %2725 = vperm.xlu0 %2724, %v2547
        %v2726 = vpop.permute.xlu0 %2725
        %2727 = vset.pattern.permute.xlu0 0
        %2728 = vperm.xlu0 %2727, %v2548
        %v2729 = vpop.permute.xlu0 %2728
        %2730 = vset.pattern.permute.xlu0 0
        %2731 = vperm.xlu0 %2730, %v2549
        %v2732 = vpop.permute.xlu0 %2731
        %2733 = vset.pattern.permute.xlu0 0
        %2734 = vperm.xlu0 %2733, %v2550
        %v2735 = vpop.permute.xlu0 %2734
        %2736 = vset.pattern.permute.xlu0 0
        %2737 = vperm.xlu0 %2736, %v2551
        %v2738 = vpop.permute.xlu0 %2737
        %2739 = vset.pattern.permute.xlu0 0
        %2740 = vperm.xlu0 %2739, %v2552
        %v2741 = vpop.permute.xlu0 %2740
        %2742 = vset.pattern.permute.xlu0 0
        %2743 = vperm.xlu0 %2742, %v2553
        %v2744 = vpop.permute.xlu0 %2743
        %2745 = vset.pattern.permute.xlu0 0
        %2746 = vperm.xlu0 %2745, %v2554
        %v2747 = vpop.permute.xlu0 %2746
        %v2748 = vperm.slane %v2555, 0
        %v2749 = vperm.slane %v2555, 1
        %vm2750 = vcmp.eq.s32.totalorder %v2558, %v2748
        %vm2751 = vcmp.eq.s32.totalorder %v2558, %v2749
        %vm2752 = vcmp.eq.s32.totalorder %v2561, %v2748
        %vm2753 = vcmp.eq.s32.totalorder %v2561, %v2749
        %vm2754 = vcmp.eq.s32.totalorder %v2564, %v2748
        %vm2755 = vcmp.eq.s32.totalorder %v2564, %v2749
        %vm2756 = vcmp.eq.s32.totalorder %v2567, %v2748
        %vm2757 = vcmp.eq.s32.totalorder %v2567, %v2749
        %vm2758 = vcmp.eq.s32.totalorder %v2570, %v2748
        %vm2759 = vcmp.eq.s32.totalorder %v2570, %v2749
        %vm2760 = vcmp.eq.s32.totalorder %v2573, %v2748
        %vm2761 = vcmp.eq.s32.totalorder %v2573, %v2749
        %vm2762 = vcmp.eq.s32.totalorder %v2576, %v2748
        %vm2763 = vcmp.eq.s32.totalorder %v2576, %v2749
        %vm2764 = vcmp.eq.s32.totalorder %v2579, %v2748
        %vm2765 = vcmp.eq.s32.totalorder %v2579, %v2749
        %vm2766 = vcmp.eq.s32.totalorder %v2582, %v2748
        %vm2767 = vcmp.eq.s32.totalorder %v2582, %v2749
        %vm2768 = vcmp.eq.s32.totalorder %v2585, %v2748
        %vm2769 = vcmp.eq.s32.totalorder %v2585, %v2749
        %vm2770 = vcmp.eq.s32.totalorder %v2588, %v2748
        %vm2771 = vcmp.eq.s32.totalorder %v2588, %v2749
        %vm2772 = vcmp.eq.s32.totalorder %v2591, %v2748
        %vm2773 = vcmp.eq.s32.totalorder %v2591, %v2749
        %vm2774 = vcmp.eq.s32.totalorder %v2594, %v2748
        %vm2775 = vcmp.eq.s32.totalorder %v2594, %v2749
        %vm2776 = vcmp.eq.s32.totalorder %v2597, %v2748
        %vm2777 = vcmp.eq.s32.totalorder %v2597, %v2749
        %vm2778 = vcmp.eq.s32.totalorder %v2600, %v2748
        %vm2779 = vcmp.eq.s32.totalorder %v2600, %v2749
        %vm2780 = vcmp.eq.s32.totalorder %v2603, %v2748
        %vm2781 = vcmp.eq.s32.totalorder %v2603, %v2749
        %vm2782 = vcmp.eq.s32.totalorder %v2606, %v2748
        %vm2783 = vcmp.eq.s32.totalorder %v2606, %v2749
        %vm2784 = vcmp.eq.s32.totalorder %v2609, %v2748
        %vm2785 = vcmp.eq.s32.totalorder %v2609, %v2749
        %vm2786 = vcmp.eq.s32.totalorder %v2612, %v2748
        %vm2787 = vcmp.eq.s32.totalorder %v2612, %v2749
        %vm2788 = vcmp.eq.s32.totalorder %v2615, %v2748
        %vm2789 = vcmp.eq.s32.totalorder %v2615, %v2749
        %vm2790 = vcmp.eq.s32.totalorder %v2618, %v2748
        %vm2791 = vcmp.eq.s32.totalorder %v2618, %v2749
        %vm2792 = vcmp.eq.s32.totalorder %v2621, %v2748
        %vm2793 = vcmp.eq.s32.totalorder %v2621, %v2749
        %vm2794 = vcmp.eq.s32.totalorder %v2624, %v2748
        %vm2795 = vcmp.eq.s32.totalorder %v2624, %v2749
        %vm2796 = vcmp.eq.s32.totalorder %v2627, %v2748
        %vm2797 = vcmp.eq.s32.totalorder %v2627, %v2749
        %vm2798 = vcmp.eq.s32.totalorder %v2630, %v2748
        %vm2799 = vcmp.eq.s32.totalorder %v2630, %v2749
        %vm2800 = vcmp.eq.s32.totalorder %v2633, %v2748
        %vm2801 = vcmp.eq.s32.totalorder %v2633, %v2749
        %vm2802 = vcmp.eq.s32.totalorder %v2636, %v2748
        %vm2803 = vcmp.eq.s32.totalorder %v2636, %v2749
        %vm2804 = vcmp.eq.s32.totalorder %v2639, %v2748
        %vm2805 = vcmp.eq.s32.totalorder %v2639, %v2749
        %vm2806 = vcmp.eq.s32.totalorder %v2642, %v2748
        %vm2807 = vcmp.eq.s32.totalorder %v2642, %v2749
        %vm2808 = vcmp.eq.s32.totalorder %v2645, %v2748
        %vm2809 = vcmp.eq.s32.totalorder %v2645, %v2749
        %vm2810 = vcmp.eq.s32.totalorder %v2648, %v2748
        %vm2811 = vcmp.eq.s32.totalorder %v2648, %v2749
        %vm2812 = vcmp.eq.s32.totalorder %v2651, %v2748
        %vm2813 = vcmp.eq.s32.totalorder %v2651, %v2749
        %vm2814 = vcmp.eq.s32.totalorder %v2654, %v2748
        %vm2815 = vcmp.eq.s32.totalorder %v2654, %v2749
        %vm2816 = vcmp.eq.s32.totalorder %v2657, %v2748
        %vm2817 = vcmp.eq.s32.totalorder %v2657, %v2749
        %vm2818 = vcmp.eq.s32.totalorder %v2660, %v2748
        %vm2819 = vcmp.eq.s32.totalorder %v2660, %v2749
        %vm2820 = vcmp.eq.s32.totalorder %v2663, %v2748
        %vm2821 = vcmp.eq.s32.totalorder %v2663, %v2749
        %vm2822 = vcmp.eq.s32.totalorder %v2666, %v2748
        %vm2823 = vcmp.eq.s32.totalorder %v2666, %v2749
        %vm2824 = vcmp.eq.s32.totalorder %v2669, %v2748
        %vm2825 = vcmp.eq.s32.totalorder %v2669, %v2749
        %vm2826 = vcmp.eq.s32.totalorder %v2672, %v2748
        %vm2827 = vcmp.eq.s32.totalorder %v2672, %v2749
        %vm2828 = vcmp.eq.s32.totalorder %v2675, %v2748
        %vm2829 = vcmp.eq.s32.totalorder %v2675, %v2749
        %vm2830 = vcmp.eq.s32.totalorder %v2678, %v2748
        %vm2831 = vcmp.eq.s32.totalorder %v2678, %v2749
        %vm2832 = vcmp.eq.s32.totalorder %v2681, %v2748
        %vm2833 = vcmp.eq.s32.totalorder %v2681, %v2749
        %vm2834 = vcmp.eq.s32.totalorder %v2684, %v2748
        %vm2835 = vcmp.eq.s32.totalorder %v2684, %v2749
        %vm2836 = vcmp.eq.s32.totalorder %v2687, %v2748
        %vm2837 = vcmp.eq.s32.totalorder %v2687, %v2749
        %vm2838 = vcmp.eq.s32.totalorder %v2690, %v2748
        %vm2839 = vcmp.eq.s32.totalorder %v2690, %v2749
        %vm2840 = vcmp.eq.s32.totalorder %v2693, %v2748
        %vm2841 = vcmp.eq.s32.totalorder %v2693, %v2749
        %vm2842 = vcmp.eq.s32.totalorder %v2696, %v2748
        %vm2843 = vcmp.eq.s32.totalorder %v2696, %v2749
        %vm2844 = vcmp.eq.s32.totalorder %v2699, %v2748
        %vm2845 = vcmp.eq.s32.totalorder %v2699, %v2749
        %vm2846 = vcmp.eq.s32.totalorder %v2702, %v2748
        %vm2847 = vcmp.eq.s32.totalorder %v2702, %v2749
        %vm2848 = vcmp.eq.s32.totalorder %v2705, %v2748
        %vm2849 = vcmp.eq.s32.totalorder %v2705, %v2749
        %vm2850 = vcmp.eq.s32.totalorder %v2708, %v2748
        %vm2851 = vcmp.eq.s32.totalorder %v2708, %v2749
        %vm2852 = vcmp.eq.s32.totalorder %v2711, %v2748
        %vm2853 = vcmp.eq.s32.totalorder %v2711, %v2749
        %vm2854 = vcmp.eq.s32.totalorder %v2714, %v2748
        %vm2855 = vcmp.eq.s32.totalorder %v2714, %v2749
        %vm2856 = vcmp.eq.s32.totalorder %v2717, %v2748
        %vm2857 = vcmp.eq.s32.totalorder %v2717, %v2749
        %vm2858 = vcmp.eq.s32.totalorder %v2720, %v2748
        %vm2859 = vcmp.eq.s32.totalorder %v2720, %v2749
        %vm2860 = vcmp.eq.s32.totalorder %v2723, %v2748
        %vm2861 = vcmp.eq.s32.totalorder %v2723, %v2749
        %vm2862 = vcmp.eq.s32.totalorder %v2726, %v2748
        %vm2863 = vcmp.eq.s32.totalorder %v2726, %v2749
        %vm2864 = vcmp.eq.s32.totalorder %v2729, %v2748
        %vm2865 = vcmp.eq.s32.totalorder %v2729, %v2749
        %vm2866 = vcmp.eq.s32.totalorder %v2732, %v2748
        %vm2867 = vcmp.eq.s32.totalorder %v2732, %v2749
        %vm2868 = vcmp.eq.s32.totalorder %v2735, %v2748
        %vm2869 = vcmp.eq.s32.totalorder %v2735, %v2749
        %vm2870 = vcmp.eq.s32.totalorder %v2738, %v2748
        %vm2871 = vcmp.eq.s32.totalorder %v2738, %v2749
        %vm2872 = vcmp.eq.s32.totalorder %v2741, %v2748
        %vm2873 = vcmp.eq.s32.totalorder %v2741, %v2749
        %vm2874 = vcmp.eq.s32.totalorder %v2744, %v2748
        %vm2875 = vcmp.eq.s32.totalorder %v2744, %v2749
        %vm2876 = vcmp.eq.s32.totalorder %v2747, %v2748
        %vm2877 = vcmp.eq.s32.totalorder %v2747, %v2749
        %v2878 = vld [vmem:[%s355] sm:$0x3]
        %v2879 = vsel %vm2750, %v2363, 0.0
        %v2880 = vsel %vm2751, %v2364, 0.0
        %v2881 = vsel %vm2752, %v2365, 0.0
        %v2882 = vsel %vm2753, %v2366, 0.0
        %v2883 = vsel %vm2754, %v2367, 0.0
        %v2884 = vsel %vm2755, %v2368, 0.0
        %v2885 = vsel %vm2756, %v2369, 0.0
        %v2886 = vsel %vm2757, %v2370, 0.0
        %v2887 = vsel %vm2758, %v2371, 0.0
        %v2888 = vsel %vm2759, %v2372, 0.0
        %v2889 = vsel %vm2760, %v2373, 0.0
        %v2890 = vsel %vm2761, %v2374, 0.0
        %v2891 = vsel %vm2762, %v2375, 0.0
        %v2892 = vsel %vm2763, %v2376, 0.0
        %v2893 = vsel %vm2764, %v2377, 0.0
        %v2894 = vsel %vm2765, %v2378, 0.0
        %v2895 = vsel %vm2766, %v2379, 0.0
        %v2896 = vsel %vm2767, %v2380, 0.0
        %v2897 = vsel %vm2768, %v2381, 0.0
        %v2898 = vsel %vm2769, %v2382, 0.0
        %v2899 = vsel %vm2770, %v2383, 0.0
        %v2900 = vsel %vm2771, %v2384, 0.0
        %v2901 = vsel %vm2772, %v2385, 0.0
        %v2902 = vsel %vm2773, %v2386, 0.0
        %v2903 = vsel %vm2774, %v2387, 0.0
        %v2904 = vsel %vm2775, %v2388, 0.0
        %v2905 = vsel %vm2776, %v2389, 0.0
        %v2906 = vsel %vm2777, %v2390, 0.0
        %v2907 = vsel %vm2778, %v2391, 0.0
        %v2908 = vsel %vm2779, %v2392, 0.0
        %v2909 = vsel %vm2780, %v2393, 0.0
        %v2910 = vsel %vm2781, %v2394, 0.0
        %v2911 = vsel %vm2782, %v2395, 0.0
        %v2912 = vsel %vm2783, %v2396, 0.0
        %v2913 = vsel %vm2784, %v2397, 0.0
        %v2914 = vsel %vm2785, %v2398, 0.0
        %v2915 = vsel %vm2786, %v2399, 0.0
        %v2916 = vsel %vm2787, %v2400, 0.0
        %v2917 = vsel %vm2788, %v2401, 0.0
        %v2918 = vsel %vm2789, %v2402, 0.0
        %v2919 = vsel %vm2790, %v2403, 0.0
        %v2920 = vsel %vm2791, %v2404, 0.0
        %v2921 = vsel %vm2792, %v2405, 0.0
        %v2922 = vsel %vm2793, %v2406, 0.0
        %v2923 = vsel %vm2794, %v2407, 0.0
        %v2924 = vsel %vm2795, %v2408, 0.0
        %v2925 = vsel %vm2796, %v2409, 0.0
        %v2926 = vsel %vm2797, %v2410, 0.0
        %v2927 = vsel %vm2798, %v2411, 0.0
        %v2928 = vsel %vm2799, %v2412, 0.0
        %v2929 = vsel %vm2800, %v2413, 0.0
        %v2930 = vsel %vm2801, %v2414, 0.0
        %v2931 = vsel %vm2802, %v2415, 0.0
        %v2932 = vsel %vm2803, %v2416, 0.0
        %v2933 = vsel %vm2804, %v2417, 0.0
        %v2934 = vsel %vm2805, %v2418, 0.0
        %v2935 = vsel %vm2806, %v2419, 0.0
        %v2936 = vsel %vm2807, %v2420, 0.0
        %v2937 = vsel %vm2808, %v2421, 0.0
        %v2938 = vsel %vm2809, %v2422, 0.0
        %v2939 = vsel %vm2810, %v2423, 0.0
        %v2940 = vsel %vm2811, %v2424, 0.0
        %v2941 = vsel %vm2812, %v2425, 0.0
        %v2942 = vsel %vm2813, %v2426, 0.0
        %v2943 = vsel %vm2814, %v2427, 0.0
        %v2944 = vsel %vm2815, %v2428, 0.0
        %v2945 = vsel %vm2816, %v2429, 0.0
        %v2946 = vsel %vm2817, %v2430, 0.0
        %v2947 = vsel %vm2818, %v2431, 0.0
        %v2948 = vsel %vm2819, %v2432, 0.0
        %v2949 = vsel %vm2820, %v2433, 0.0
        %v2950 = vsel %vm2821, %v2434, 0.0
        %v2951 = vsel %vm2822, %v2435, 0.0
        %v2952 = vsel %vm2823, %v2436, 0.0
        %v2953 = vsel %vm2824, %v2437, 0.0
        %v2954 = vsel %vm2825, %v2438, 0.0
        %v2955 = vsel %vm2826, %v2439, 0.0
        %v2956 = vsel %vm2827, %v2440, 0.0
        %v2957 = vsel %vm2828, %v2441, 0.0
        %v2958 = vsel %vm2829, %v2442, 0.0
        %v2959 = vsel %vm2830, %v2443, 0.0
        %v2960 = vsel %vm2831, %v2444, 0.0
        %v2961 = vsel %vm2832, %v2445, 0.0
        %v2962 = vsel %vm2833, %v2446, 0.0
        %v2963 = vsel %vm2834, %v2447, 0.0
        %v2964 = vsel %vm2835, %v2448, 0.0
        %v2965 = vsel %vm2836, %v2449, 0.0
        %v2966 = vsel %vm2837, %v2450, 0.0
        %v2967 = vsel %vm2838, %v2451, 0.0
        %v2968 = vsel %vm2839, %v2452, 0.0
        %v2969 = vsel %vm2840, %v2453, 0.0
        %v2970 = vsel %vm2841, %v2454, 0.0
        %v2971 = vsel %vm2842, %v2455, 0.0
        %v2972 = vsel %vm2843, %v2456, 0.0
        %v2973 = vsel %vm2844, %v2457, 0.0
        %v2974 = vsel %vm2845, %v2458, 0.0
        %v2975 = vsel %vm2846, %v2459, 0.0
        %v2976 = vsel %vm2847, %v2460, 0.0
        %v2977 = vsel %vm2848, %v2461, 0.0
        %v2978 = vsel %vm2849, %v2462, 0.0
        %v2979 = vsel %vm2850, %v2463, 0.0
        %v2980 = vsel %vm2851, %v2464, 0.0
        %v2981 = vsel %vm2852, %v2465, 0.0
        %v2982 = vsel %vm2853, %v2466, 0.0
        %v2983 = vsel %vm2854, %v2467, 0.0
        %v2984 = vsel %vm2855, %v2468, 0.0
        %v2985 = vsel %vm2856, %v2469, 0.0
        %v2986 = vsel %vm2857, %v2470, 0.0
        %v2987 = vsel %vm2858, %v2471, 0.0
        %v2988 = vsel %vm2859, %v2472, 0.0
        %v2989 = vsel %vm2860, %v2473, 0.0
        %v2990 = vsel %vm2861, %v2474, 0.0
        %v2991 = vsel %vm2862, %v2475, 0.0
        %v2992 = vsel %vm2863, %v2476, 0.0
        %v2993 = vsel %vm2864, %v2477, 0.0
        %v2994 = vsel %vm2865, %v2478, 0.0
        %v2995 = vsel %vm2866, %v2479, 0.0
        %v2996 = vsel %vm2867, %v2480, 0.0
        %v2997 = vsel %vm2868, %v2481, 0.0
        %v2998 = vsel %vm2869, %v2482, 0.0
        %v2999 = vsel %vm2870, %v2483, 0.0
        %v3000 = vsel %vm2871, %v2484, 0.0
        %v3001 = vsel %vm2872, %v2485, 0.0
        %v3002 = vsel %vm2873, %v2486, 0.0
        %v3003 = vsel %vm2874, %v2487, 0.0
        %v3004 = vsel %vm2875, %v2488, 0.0
        %v3005 = vsel %vm2876, %v2489, 0.0
        %v3006 = vsel %vm2877, %v2490, 0.0
        %v3007 = vadd.f32 %v2879, %v2881
        %v3008 = vadd.f32 %v3007, %v2883
        %v3009 = vadd.f32 %v3008, %v2885
        %v3010 = vadd.f32 %v3009, %v2887
        %v3011 = vadd.f32 %v3010, %v2889
        %v3012 = vadd.f32 %v3011, %v2891
        %v3013 = vadd.f32 %v3012, %v2893
        %v3014 = vadd.f32 %v3013, %v2895
        %v3015 = vadd.f32 %v3014, %v2897
        %v3016 = vadd.f32 %v3015, %v2899
        %v3017 = vadd.f32 %v3016, %v2901
        %v3018 = vadd.f32 %v3017, %v2903
        %v3019 = vadd.f32 %v3018, %v2905
        %v3020 = vadd.f32 %v3019, %v2907
        %v3021 = vadd.f32 %v3020, %v2909
        %v3022 = vadd.f32 %v3021, %v2911
        %v3023 = vadd.f32 %v3022, %v2913
        %v3024 = vadd.f32 %v3023, %v2915
        %v3025 = vadd.f32 %v3024, %v2917
        %v3026 = vadd.f32 %v3025, %v2919
        %v3027 = vadd.f32 %v3026, %v2921
        %v3028 = vadd.f32 %v3027, %v2923
        %v3029 = vadd.f32 %v3028, %v2925
        %v3030 = vadd.f32 %v3029, %v2927
        %v3031 = vadd.f32 %v3030, %v2929
        %v3032 = vadd.f32 %v3031, %v2931
        %v3033 = vadd.f32 %v3032, %v2933
        %v3034 = vadd.f32 %v3033, %v2935
        %v3035 = vadd.f32 %v3034, %v2937
        %v3036 = vadd.f32 %v3035, %v2939
        %v3037 = vadd.f32 %v3036, %v2941
        %v3038 = vadd.f32 %v3037, %v2943
        %v3039 = vadd.f32 %v3038, %v2945
        %v3040 = vadd.f32 %v3039, %v2947
        %v3041 = vadd.f32 %v3040, %v2949
        %v3042 = vadd.f32 %v3041, %v2951
        %v3043 = vadd.f32 %v3042, %v2953
        %v3044 = vadd.f32 %v3043, %v2955
        %v3045 = vadd.f32 %v3044, %v2957
        %v3046 = vadd.f32 %v3045, %v2959
        %v3047 = vadd.f32 %v3046, %v2961
        %v3048 = vadd.f32 %v3047, %v2963
        %v3049 = vadd.f32 %v3048, %v2965
        %v3050 = vadd.f32 %v3049, %v2967
        %v3051 = vadd.f32 %v3050, %v2969
        %v3052 = vadd.f32 %v3051, %v2971
        %v3053 = vadd.f32 %v3052, %v2973
        %v3054 = vadd.f32 %v3053, %v2975
        %v3055 = vadd.f32 %v3054, %v2977
        %v3056 = vadd.f32 %v3055, %v2979
        %v3057 = vadd.f32 %v3056, %v2981
        %v3058 = vadd.f32 %v3057, %v2983
        %v3059 = vadd.f32 %v3058, %v2985
        %v3060 = vadd.f32 %v3059, %v2987
        %v3061 = vadd.f32 %v3060, %v2989
        %v3062 = vadd.f32 %v3061, %v2991
        %v3063 = vadd.f32 %v3062, %v2993
        %v3064 = vadd.f32 %v3063, %v2995
        %v3065 = vadd.f32 %v3064, %v2997
        %v3066 = vadd.f32 %v3065, %v2999
        %v3067 = vadd.f32 %v3066, %v3001
        %v3068 = vadd.f32 %v3067, %v3003
        %v3069 = vadd.f32 %v3068, %v3005
        %v3070 = vrot.slane %v3069, 4
        %v3071 = vadd.f32 %v3069, %v3070
        %v3072 = vrot.slane %v3071, 2
        %v3073 = vadd.f32 %v3071, %v3072
        %v3074 = vrot.slane %v3073, 1
        %v3075 = vadd.f32 %v3073, %v3074
        %v3076 = vadd.f32 %v2880, %v2882
        %v3077 = vadd.f32 %v3076, %v2884
        %v3078 = vadd.f32 %v3077, %v2886
        %v3079 = vadd.f32 %v3078, %v2888
        %v3080 = vadd.f32 %v3079, %v2890
        %v3081 = vadd.f32 %v3080, %v2892
        %v3082 = vadd.f32 %v3081, %v2894
        %v3083 = vadd.f32 %v3082, %v2896
        %v3084 = vadd.f32 %v3083, %v2898
        %v3085 = vadd.f32 %v3084, %v2900
        %v3086 = vadd.f32 %v3085, %v2902
        %v3087 = vadd.f32 %v3086, %v2904
        %v3088 = vadd.f32 %v3087, %v2906
        %v3089 = vadd.f32 %v3088, %v2908
        %v3090 = vadd.f32 %v3089, %v2910
        %v3091 = vadd.f32 %v3090, %v2912
        %v3092 = vadd.f32 %v3091, %v2914
        %v3093 = vadd.f32 %v3092, %v2916
        %v3094 = vadd.f32 %v3093, %v2918
        %v3095 = vadd.f32 %v3094, %v2920
        %v3096 = vadd.f32 %v3095, %v2922
        %v3097 = vadd.f32 %v3096, %v2924
        %v3098 = vadd.f32 %v3097, %v2926
        %v3099 = vadd.f32 %v3098, %v2928
        %v3100 = vadd.f32 %v3099, %v2930
        %v3101 = vadd.f32 %v3100, %v2932
        %v3102 = vadd.f32 %v3101, %v2934
        %v3103 = vadd.f32 %v3102, %v2936
        %v3104 = vadd.f32 %v3103, %v2938
        %v3105 = vadd.f32 %v3104, %v2940
        %v3106 = vadd.f32 %v3105, %v2942
        %v3107 = vadd.f32 %v3106, %v2944
        %v3108 = vadd.f32 %v3107, %v2946
        %v3109 = vadd.f32 %v3108, %v2948
        %v3110 = vadd.f32 %v3109, %v2950
        %v3111 = vadd.f32 %v3110, %v2952
        %v3112 = vadd.f32 %v3111, %v2954
        %v3113 = vadd.f32 %v3112, %v2956
        %v3114 = vadd.f32 %v3113, %v2958
        %v3115 = vadd.f32 %v3114, %v2960
        %v3116 = vadd.f32 %v3115, %v2962
        %v3117 = vadd.f32 %v3116, %v2964
        %v3118 = vadd.f32 %v3117, %v2966
        %v3119 = vadd.f32 %v3118, %v2968
        %v3120 = vadd.f32 %v3119, %v2970
        %v3121 = vadd.f32 %v3120, %v2972
        %v3122 = vadd.f32 %v3121, %v2974
        %v3123 = vadd.f32 %v3122, %v2976
        %v3124 = vadd.f32 %v3123, %v2978
        %v3125 = vadd.f32 %v3124, %v2980
        %v3126 = vadd.f32 %v3125, %v2982
        %v3127 = vadd.f32 %v3126, %v2984
        %v3128 = vadd.f32 %v3127, %v2986
        %v3129 = vadd.f32 %v3128, %v2988
        %v3130 = vadd.f32 %v3129, %v2990
        %v3131 = vadd.f32 %v3130, %v2992
        %v3132 = vadd.f32 %v3131, %v2994
        %v3133 = vadd.f32 %v3132, %v2996
        %v3134 = vadd.f32 %v3133, %v2998
        %v3135 = vadd.f32 %v3134, %v3000
        %v3136 = vadd.f32 %v3135, %v3002
        %v3137 = vadd.f32 %v3136, %v3004
        %v3138 = vadd.f32 %v3137, %v3006
        %v3139 = vrot.slane %v3138, 4
        %v3140 = vadd.f32 %v3138, %v3139
        %v3141 = vrot.slane %v3140, 2
        %v3142 = vadd.f32 %v3140, %v3141
        %v3143 = vrot.slane %v3142, 1
        %v3144 = vadd.f32 %v3142, %v3143
        %v3147 = vrot.slane %v3144, 7
        %vm3148 = vcmask 1040384
        %v3149 = vsel %vm3148, %v3075, %v3147
        %v3151 = vadd.f32 %v2878, %v3149
        %v3152 = vlaneseq
        %vm3153 = vcmp.ge.s32.totalorder %v3152, 0
        %vm3154 = vcmp.lt.s32.totalorder %v3152, 256
        %vm3155 = vmand %vm3153, %vm3154
        %3156 = vst.msk [vmem:[%s355] sm:$0x3] %vm3155, %v3151
        %v3157 = vld [vmem:[%s360] sm:$0x3]
        %v3158 = vadd.f32 %v2363, %v2365
        %v3159 = vadd.f32 %v3158, %v2367
        %v3160 = vadd.f32 %v3159, %v2369
        %v3161 = vadd.f32 %v3160, %v2371
        %v3162 = vadd.f32 %v3161, %v2373
        %v3163 = vadd.f32 %v3162, %v2375
        %v3164 = vadd.f32 %v3163, %v2377
        %v3165 = vadd.f32 %v3164, %v2379
        %v3166 = vadd.f32 %v3165, %v2381
        %v3167 = vadd.f32 %v3166, %v2383
        %v3168 = vadd.f32 %v3167, %v2385
        %v3169 = vadd.f32 %v3168, %v2387
        %v3170 = vadd.f32 %v3169, %v2389
        %v3171 = vadd.f32 %v3170, %v2391
        %v3172 = vadd.f32 %v3171, %v2393
        %v3173 = vadd.f32 %v3172, %v2395
        %v3174 = vadd.f32 %v3173, %v2397
        %v3175 = vadd.f32 %v3174, %v2399
        %v3176 = vadd.f32 %v3175, %v2401
        %v3177 = vadd.f32 %v3176, %v2403
        %v3178 = vadd.f32 %v3177, %v2405
        %v3179 = vadd.f32 %v3178, %v2407
        %v3180 = vadd.f32 %v3179, %v2409
        %v3181 = vadd.f32 %v3180, %v2411
        %v3182 = vadd.f32 %v3181, %v2413
        %v3183 = vadd.f32 %v3182, %v2415
        %v3184 = vadd.f32 %v3183, %v2417
        %v3185 = vadd.f32 %v3184, %v2419
        %v3186 = vadd.f32 %v3185, %v2421
        %v3187 = vadd.f32 %v3186, %v2423
        %v3188 = vadd.f32 %v3187, %v2425
        %v3189 = vadd.f32 %v3188, %v2427
        %v3190 = vadd.f32 %v3189, %v2429
        %v3191 = vadd.f32 %v3190, %v2431
        %v3192 = vadd.f32 %v3191, %v2433
        %v3193 = vadd.f32 %v3192, %v2435
        %v3194 = vadd.f32 %v3193, %v2437
        %v3195 = vadd.f32 %v3194, %v2439
        %v3196 = vadd.f32 %v3195, %v2441
        %v3197 = vadd.f32 %v3196, %v2443
        %v3198 = vadd.f32 %v3197, %v2445
        %v3199 = vadd.f32 %v3198, %v2447
        %v3200 = vadd.f32 %v3199, %v2449
        %v3201 = vadd.f32 %v3200, %v2451
        %v3202 = vadd.f32 %v3201, %v2453
        %v3203 = vadd.f32 %v3202, %v2455
        %v3204 = vadd.f32 %v3203, %v2457
        %v3205 = vadd.f32 %v3204, %v2459
        %v3206 = vadd.f32 %v3205, %v2461
        %v3207 = vadd.f32 %v3206, %v2463
        %v3208 = vadd.f32 %v3207, %v2465
        %v3209 = vadd.f32 %v3208, %v2467
        %v3210 = vadd.f32 %v3209, %v2469
        %v3211 = vadd.f32 %v3210, %v2471
        %v3212 = vadd.f32 %v3211, %v2473
        %v3213 = vadd.f32 %v3212, %v2475
        %v3214 = vadd.f32 %v3213, %v2477
        %v3215 = vadd.f32 %v3214, %v2479
        %v3216 = vadd.f32 %v3215, %v2481
        %v3217 = vadd.f32 %v3216, %v2483
        %v3218 = vadd.f32 %v3217, %v2485
        %v3219 = vadd.f32 %v3218, %v2487
        %v3220 = vadd.f32 %v3219, %v2489
        %v3221 = vrot.slane %v3220, 4
        %v3222 = vadd.f32 %v3220, %v3221
        %v3223 = vrot.slane %v3222, 2
        %v3224 = vadd.f32 %v3222, %v3223
        %v3225 = vrot.slane %v3224, 1
        %v3226 = vadd.f32 %v3224, %v3225
        %v3227 = vadd.f32 %v2364, %v2366
        %v3228 = vadd.f32 %v3227, %v2368
        %v3229 = vadd.f32 %v3228, %v2370
        %v3230 = vadd.f32 %v3229, %v2372
        %v3231 = vadd.f32 %v3230, %v2374
        %v3232 = vadd.f32 %v3231, %v2376
        %v3233 = vadd.f32 %v3232, %v2378
        %v3234 = vadd.f32 %v3233, %v2380
        %v3235 = vadd.f32 %v3234, %v2382
        %v3236 = vadd.f32 %v3235, %v2384
        %v3237 = vadd.f32 %v3236, %v2386
        %v3238 = vadd.f32 %v3237, %v2388
        %v3239 = vadd.f32 %v3238, %v2390
        %v3240 = vadd.f32 %v3239, %v2392
        %v3241 = vadd.f32 %v3240, %v2394
        %v3242 = vadd.f32 %v3241, %v2396
        %v3243 = vadd.f32 %v3242, %v2398
        %v3244 = vadd.f32 %v3243, %v2400
        %v3245 = vadd.f32 %v3244, %v2402
        %v3246 = vadd.f32 %v3245, %v2404
        %v3247 = vadd.f32 %v3246, %v2406
        %v3248 = vadd.f32 %v3247, %v2408
        %v3249 = vadd.f32 %v3248, %v2410
        %v3250 = vadd.f32 %v3249, %v2412
        %v3251 = vadd.f32 %v3250, %v2414
        %v3252 = vadd.f32 %v3251, %v2416
        %v3253 = vadd.f32 %v3252, %v2418
        %v3254 = vadd.f32 %v3253, %v2420
        %v3255 = vadd.f32 %v3254, %v2422
        %v3256 = vadd.f32 %v3255, %v2424
        %v3257 = vadd.f32 %v3256, %v2426
        %v3258 = vadd.f32 %v3257, %v2428
        %v3259 = vadd.f32 %v3258, %v2430
        %v3260 = vadd.f32 %v3259, %v2432
        %v3261 = vadd.f32 %v3260, %v2434
        %v3262 = vadd.f32 %v3261, %v2436
        %v3263 = vadd.f32 %v3262, %v2438
        %v3264 = vadd.f32 %v3263, %v2440
        %v3265 = vadd.f32 %v3264, %v2442
        %v3266 = vadd.f32 %v3265, %v2444
        %v3267 = vadd.f32 %v3266, %v2446
        %v3268 = vadd.f32 %v3267, %v2448
        %v3269 = vadd.f32 %v3268, %v2450
        %v3270 = vadd.f32 %v3269, %v2452
        %v3271 = vadd.f32 %v3270, %v2454
        %v3272 = vadd.f32 %v3271, %v2456
        %v3273 = vadd.f32 %v3272, %v2458
        %v3274 = vadd.f32 %v3273, %v2460
        %v3275 = vadd.f32 %v3274, %v2462
        %v3276 = vadd.f32 %v3275, %v2464
        %v3277 = vadd.f32 %v3276, %v2466
        %v3278 = vadd.f32 %v3277, %v2468
        %v3279 = vadd.f32 %v3278, %v2470
        %v3280 = vadd.f32 %v3279, %v2472
        %v3281 = vadd.f32 %v3280, %v2474
        %v3282 = vadd.f32 %v3281, %v2476
        %v3283 = vadd.f32 %v3282, %v2478
        %v3284 = vadd.f32 %v3283, %v2480
        %v3285 = vadd.f32 %v3284, %v2482
        %v3286 = vadd.f32 %v3285, %v2484
        %v3287 = vadd.f32 %v3286, %v2486
        %v3288 = vadd.f32 %v3287, %v2488
        %v3289 = vadd.f32 %v3288, %v2490
        %v3290 = vrot.slane %v3289, 4
        %v3291 = vadd.f32 %v3289, %v3290
        %v3292 = vrot.slane %v3291, 2
        %v3293 = vadd.f32 %v3291, %v3292
        %v3294 = vrot.slane %v3293, 1
        %v3295 = vadd.f32 %v3293, %v3294
        %v3298 = vrot.slane %v3295, 7
        %v3299 = vsel %vm3148, %v3226, %v3298
        %v3301 = vadd.f32 %v3157, %v3299
        %3302 = vst.msk [vmem:[%s360] sm:$0x3] %vm3155, %v3301
      $region48: #{contrast_loss_point_cloud_intra_batch.1} parent=39 // pred_fallthru
        _
      %p3303 = pneg %p2096
      // Predicated region
      $region49: #{contrast_loss_point_cloud_intra_batch.1} parent=39 // pred_check
        _
      $region50: #{contrast_loss_point_cloud_intra_batch.1} parent=39 // pred_check_branch
        %3305 = sbr.rel (%p2096) target = $region52
      $region51: #{contrast_loss_point_cloud_intra_batch.1} parent=39 // pred_region
        %v3306 = vld [vmem:[%s344] sm:$0xff]
        %v3307 = vld [vmem:[%s344 + $0x8] sm:$0xff]
        %v3308 = vld [vmem:[%s344 + $0x10] sm:$0xff]
        %v3309 = vld [vmem:[%s344 + $0x18] sm:$0xff]
        %v3310 = vld [vmem:[%s344 + $0x20] sm:$0xff]
        %v3311 = vld [vmem:[%s344 + $0x28] sm:$0xff]
        %v3312 = vld [vmem:[%s344 + $0x30] sm:$0xff]
        %v3313 = vld [vmem:[%s344 + $0x38] sm:$0xff]
        %v3314 = vld [vmem:[%s344 + $0x40] sm:$0xff]
        %v3315 = vld [vmem:[%s344 + $0x48] sm:$0xff]
        %v3316 = vld [vmem:[%s344 + $0x50] sm:$0xff]
        %v3317 = vld [vmem:[%s344 + $0x58] sm:$0xff]
        %v3318 = vld [vmem:[%s344 + $0x60] sm:$0xff]
        %v3319 = vld [vmem:[%s344 + $0x68] sm:$0xff]
        %v3320 = vld [vmem:[%s344 + $0x70] sm:$0xff]
        %v3321 = vld [vmem:[%s344 + $0x78] sm:$0xff]
        %v3322 = vld [vmem:[%s344 + $0x80] sm:$0xff]
        %v3323 = vld [vmem:[%s344 + $0x88] sm:$0xff]
        %v3324 = vld [vmem:[%s344 + $0x90] sm:$0xff]
        %v3325 = vld [vmem:[%s344 + $0x98] sm:$0xff]
        %v3326 = vld [vmem:[%s344 + $0xa0] sm:$0xff]
        %v3327 = vld [vmem:[%s344 + $0xa8] sm:$0xff]
        %v3328 = vld [vmem:[%s344 + $0xb0] sm:$0xff]
        %v3329 = vld [vmem:[%s344 + $0xb8] sm:$0xff]
        %v3330 = vld [vmem:[%s344 + $0xc0] sm:$0xff]
        %v3331 = vld [vmem:[%s344 + $0xc8] sm:$0xff]
        %v3332 = vld [vmem:[%s344 + $0xd0] sm:$0xff]
        %v3333 = vld [vmem:[%s344 + $0xd8] sm:$0xff]
        %v3334 = vld [vmem:[%s344 + $0xe0] sm:$0xff]
        %v3335 = vld [vmem:[%s344 + $0xe8] sm:$0xff]
        %v3336 = vld [vmem:[%s344 + $0xf0] sm:$0xff]
        %v3337 = vld [vmem:[%s344 + $0xf8] sm:$0xff]
        %v3338 = vld [vmem:[%s344 + $0x100] sm:$0xff]
        %v3339 = vld [vmem:[%s344 + $0x108] sm:$0xff]
        %v3340 = vld [vmem:[%s344 + $0x110] sm:$0xff]
        %v3341 = vld [vmem:[%s344 + $0x118] sm:$0xff]
        %v3342 = vld [vmem:[%s344 + $0x120] sm:$0xff]
        %v3343 = vld [vmem:[%s344 + $0x128] sm:$0xff]
        %v3344 = vld [vmem:[%s344 + $0x130] sm:$0xff]
        %v3345 = vld [vmem:[%s344 + $0x138] sm:$0xff]
        %v3346 = vld [vmem:[%s344 + $0x140] sm:$0xff]
        %v3347 = vld [vmem:[%s344 + $0x148] sm:$0xff]
        %v3348 = vld [vmem:[%s344 + $0x150] sm:$0xff]
        %v3349 = vld [vmem:[%s344 + $0x158] sm:$0xff]
        %v3350 = vld [vmem:[%s344 + $0x160] sm:$0xff]
        %v3351 = vld [vmem:[%s344 + $0x168] sm:$0xff]
        %v3352 = vld [vmem:[%s344 + $0x170] sm:$0xff]
        %v3353 = vld [vmem:[%s344 + $0x178] sm:$0xff]
        %v3354 = vld [vmem:[%s344 + $0x180] sm:$0xff]
        %v3355 = vld [vmem:[%s344 + $0x188] sm:$0xff]
        %v3356 = vld [vmem:[%s344 + $0x190] sm:$0xff]
        %v3357 = vld [vmem:[%s344 + $0x198] sm:$0xff]
        %v3358 = vld [vmem:[%s344 + $0x1a0] sm:$0xff]
        %v3359 = vld [vmem:[%s344 + $0x1a8] sm:$0xff]
        %v3360 = vld [vmem:[%s344 + $0x1b0] sm:$0xff]
        %v3361 = vld [vmem:[%s344 + $0x1b8] sm:$0xff]
        %v3362 = vld [vmem:[%s344 + $0x1c0] sm:$0xff]
        %v3363 = vld [vmem:[%s344 + $0x1c8] sm:$0xff]
        %v3364 = vld [vmem:[%s344 + $0x1d0] sm:$0xff]
        %v3365 = vld [vmem:[%s344 + $0x1d8] sm:$0xff]
        %v3366 = vld [vmem:[%s344 + $0x1e0] sm:$0xff]
        %v3367 = vld [vmem:[%s344 + $0x1e8] sm:$0xff]
        %v3368 = vld [vmem:[%s344 + $0x1f0] sm:$0xff]
        %v3369 = vld [vmem:[%s344 + $0x1f8] sm:$0xff]
        %v3370 = vld [vmem:[%s338] sm:$0x3]
        %3371 = vset.pattern.permute.xlu0 0
        %3372 = vperm.xlu0 %3371, %v3306
        %v3373 = vpop.permute.xlu0 %3372
        %3374 = vset.pattern.permute.xlu0 0
        %3375 = vperm.xlu0 %3374, %v3307
        %v3376 = vpop.permute.xlu0 %3375
        %3377 = vset.pattern.permute.xlu0 0
        %3378 = vperm.xlu0 %3377, %v3308
        %v3379 = vpop.permute.xlu0 %3378
        %3380 = vset.pattern.permute.xlu0 0
        %3381 = vperm.xlu0 %3380, %v3309
        %v3382 = vpop.permute.xlu0 %3381
        %3383 = vset.pattern.permute.xlu0 0
        %3384 = vperm.xlu0 %3383, %v3310
        %v3385 = vpop.permute.xlu0 %3384
        %3386 = vset.pattern.permute.xlu0 0
        %3387 = vperm.xlu0 %3386, %v3311
        %v3388 = vpop.permute.xlu0 %3387
        %3389 = vset.pattern.permute.xlu0 0
        %3390 = vperm.xlu0 %3389, %v3312
        %v3391 = vpop.permute.xlu0 %3390
        %3392 = vset.pattern.permute.xlu0 0
        %3393 = vperm.xlu0 %3392, %v3313
        %v3394 = vpop.permute.xlu0 %3393
        %3395 = vset.pattern.permute.xlu0 0
        %3396 = vperm.xlu0 %3395, %v3314
        %v3397 = vpop.permute.xlu0 %3396
        %3398 = vset.pattern.permute.xlu0 0
        %3399 = vperm.xlu0 %3398, %v3315
        %v3400 = vpop.permute.xlu0 %3399
        %3401 = vset.pattern.permute.xlu0 0
        %3402 = vperm.xlu0 %3401, %v3316
        %v3403 = vpop.permute.xlu0 %3402
        %3404 = vset.pattern.permute.xlu0 0
        %3405 = vperm.xlu0 %3404, %v3317
        %v3406 = vpop.permute.xlu0 %3405
        %3407 = vset.pattern.permute.xlu0 0
        %3408 = vperm.xlu0 %3407, %v3318
        %v3409 = vpop.permute.xlu0 %3408
        %3410 = vset.pattern.permute.xlu0 0
        %3411 = vperm.xlu0 %3410, %v3319
        %v3412 = vpop.permute.xlu0 %3411
        %3413 = vset.pattern.permute.xlu0 0
        %3414 = vperm.xlu0 %3413, %v3320
        %v3415 = vpop.permute.xlu0 %3414
        %3416 = vset.pattern.permute.xlu0 0
        %3417 = vperm.xlu0 %3416, %v3321
        %v3418 = vpop.permute.xlu0 %3417
        %3419 = vset.pattern.permute.xlu0 0
        %3420 = vperm.xlu0 %3419, %v3322
        %v3421 = vpop.permute.xlu0 %3420
        %3422 = vset.pattern.permute.xlu0 0
        %3423 = vperm.xlu0 %3422, %v3323
        %v3424 = vpop.permute.xlu0 %3423
        %3425 = vset.pattern.permute.xlu0 0
        %3426 = vperm.xlu0 %3425, %v3324
        %v3427 = vpop.permute.xlu0 %3426
        %3428 = vset.pattern.permute.xlu0 0
        %3429 = vperm.xlu0 %3428, %v3325
        %v3430 = vpop.permute.xlu0 %3429
        %3431 = vset.pattern.permute.xlu0 0
        %3432 = vperm.xlu0 %3431, %v3326
        %v3433 = vpop.permute.xlu0 %3432
        %3434 = vset.pattern.permute.xlu0 0
        %3435 = vperm.xlu0 %3434, %v3327
        %v3436 = vpop.permute.xlu0 %3435
        %3437 = vset.pattern.permute.xlu0 0
        %3438 = vperm.xlu0 %3437, %v3328
        %v3439 = vpop.permute.xlu0 %3438
        %3440 = vset.pattern.permute.xlu0 0
        %3441 = vperm.xlu0 %3440, %v3329
        %v3442 = vpop.permute.xlu0 %3441
        %3443 = vset.pattern.permute.xlu0 0
        %3444 = vperm.xlu0 %3443, %v3330
        %v3445 = vpop.permute.xlu0 %3444
        %3446 = vset.pattern.permute.xlu0 0
        %3447 = vperm.xlu0 %3446, %v3331
        %v3448 = vpop.permute.xlu0 %3447
        %3449 = vset.pattern.permute.xlu0 0
        %3450 = vperm.xlu0 %3449, %v3332
        %v3451 = vpop.permute.xlu0 %3450
        %3452 = vset.pattern.permute.xlu0 0
        %3453 = vperm.xlu0 %3452, %v3333
        %v3454 = vpop.permute.xlu0 %3453
        %3455 = vset.pattern.permute.xlu0 0
        %3456 = vperm.xlu0 %3455, %v3334
        %v3457 = vpop.permute.xlu0 %3456
        %3458 = vset.pattern.permute.xlu0 0
        %3459 = vperm.xlu0 %3458, %v3335
        %v3460 = vpop.permute.xlu0 %3459
        %3461 = vset.pattern.permute.xlu0 0
        %3462 = vperm.xlu0 %3461, %v3336
        %v3463 = vpop.permute.xlu0 %3462
        %3464 = vset.pattern.permute.xlu0 0
        %3465 = vperm.xlu0 %3464, %v3337
        %v3466 = vpop.permute.xlu0 %3465
        %3467 = vset.pattern.permute.xlu0 0
        %3468 = vperm.xlu0 %3467, %v3338
        %v3469 = vpop.permute.xlu0 %3468
        %3470 = vset.pattern.permute.xlu0 0
        %3471 = vperm.xlu0 %3470, %v3339
        %v3472 = vpop.permute.xlu0 %3471
        %3473 = vset.pattern.permute.xlu0 0
        %3474 = vperm.xlu0 %3473, %v3340
        %v3475 = vpop.permute.xlu0 %3474
        %3476 = vset.pattern.permute.xlu0 0
        %3477 = vperm.xlu0 %3476, %v3341
        %v3478 = vpop.permute.xlu0 %3477
        %3479 = vset.pattern.permute.xlu0 0
        %3480 = vperm.xlu0 %3479, %v3342
        %v3481 = vpop.permute.xlu0 %3480
        %3482 = vset.pattern.permute.xlu0 0
        %3483 = vperm.xlu0 %3482, %v3343
        %v3484 = vpop.permute.xlu0 %3483
        %3485 = vset.pattern.permute.xlu0 0
        %3486 = vperm.xlu0 %3485, %v3344
        %v3487 = vpop.permute.xlu0 %3486
        %3488 = vset.pattern.permute.xlu0 0
        %3489 = vperm.xlu0 %3488, %v3345
        %v3490 = vpop.permute.xlu0 %3489
        %3491 = vset.pattern.permute.xlu0 0
        %3492 = vperm.xlu0 %3491, %v3346
        %v3493 = vpop.permute.xlu0 %3492
        %3494 = vset.pattern.permute.xlu0 0
        %3495 = vperm.xlu0 %3494, %v3347
        %v3496 = vpop.permute.xlu0 %3495
        %3497 = vset.pattern.permute.xlu0 0
        %3498 = vperm.xlu0 %3497, %v3348
        %v3499 = vpop.permute.xlu0 %3498
        %3500 = vset.pattern.permute.xlu0 0
        %3501 = vperm.xlu0 %3500, %v3349
        %v3502 = vpop.permute.xlu0 %3501
        %3503 = vset.pattern.permute.xlu0 0
        %3504 = vperm.xlu0 %3503, %v3350
        %v3505 = vpop.permute.xlu0 %3504
        %3506 = vset.pattern.permute.xlu0 0
        %3507 = vperm.xlu0 %3506, %v3351
        %v3508 = vpop.permute.xlu0 %3507
        %3509 = vset.pattern.permute.xlu0 0
        %3510 = vperm.xlu0 %3509, %v3352
        %v3511 = vpop.permute.xlu0 %3510
        %3512 = vset.pattern.permute.xlu0 0
        %3513 = vperm.xlu0 %3512, %v3353
        %v3514 = vpop.permute.xlu0 %3513
        %3515 = vset.pattern.permute.xlu0 0
        %3516 = vperm.xlu0 %3515, %v3354
        %v3517 = vpop.permute.xlu0 %3516
        %3518 = vset.pattern.permute.xlu0 0
        %3519 = vperm.xlu0 %3518, %v3355
        %v3520 = vpop.permute.xlu0 %3519
        %3521 = vset.pattern.permute.xlu0 0
        %3522 = vperm.xlu0 %3521, %v3356
        %v3523 = vpop.permute.xlu0 %3522
        %3524 = vset.pattern.permute.xlu0 0
        %3525 = vperm.xlu0 %3524, %v3357
        %v3526 = vpop.permute.xlu0 %3525
        %3527 = vset.pattern.permute.xlu0 0
        %3528 = vperm.xlu0 %3527, %v3358
        %v3529 = vpop.permute.xlu0 %3528
        %3530 = vset.pattern.permute.xlu0 0
        %3531 = vperm.xlu0 %3530, %v3359
        %v3532 = vpop.permute.xlu0 %3531
        %3533 = vset.pattern.permute.xlu0 0
        %3534 = vperm.xlu0 %3533, %v3360
        %v3535 = vpop.permute.xlu0 %3534
        %3536 = vset.pattern.permute.xlu0 0
        %3537 = vperm.xlu0 %3536, %v3361
        %v3538 = vpop.permute.xlu0 %3537
        %3539 = vset.pattern.permute.xlu0 0
        %3540 = vperm.xlu0 %3539, %v3362
        %v3541 = vpop.permute.xlu0 %3540
        %3542 = vset.pattern.permute.xlu0 0
        %3543 = vperm.xlu0 %3542, %v3363
        %v3544 = vpop.permute.xlu0 %3543
        %3545 = vset.pattern.permute.xlu0 0
        %3546 = vperm.xlu0 %3545, %v3364
        %v3547 = vpop.permute.xlu0 %3546
        %3548 = vset.pattern.permute.xlu0 0
        %3549 = vperm.xlu0 %3548, %v3365
        %v3550 = vpop.permute.xlu0 %3549
        %3551 = vset.pattern.permute.xlu0 0
        %3552 = vperm.xlu0 %3551, %v3366
        %v3553 = vpop.permute.xlu0 %3552
        %3554 = vset.pattern.permute.xlu0 0
        %3555 = vperm.xlu0 %3554, %v3367
        %v3556 = vpop.permute.xlu0 %3555
        %3557 = vset.pattern.permute.xlu0 0
        %3558 = vperm.xlu0 %3557, %v3368
        %v3559 = vpop.permute.xlu0 %3558
        %3560 = vset.pattern.permute.xlu0 0
        %3561 = vperm.xlu0 %3560, %v3369
        %v3562 = vpop.permute.xlu0 %3561
        %v3563 = vperm.slane %v3370, 0
        %v3564 = vperm.slane %v3370, 1
        %vm3565 = vcmp.eq.s32.totalorder %v3373, %v3563
        %vm3566 = vcmp.eq.s32.totalorder %v3373, %v3564
        %vm3567 = vcmp.eq.s32.totalorder %v3376, %v3563
        %vm3568 = vcmp.eq.s32.totalorder %v3376, %v3564
        %vm3569 = vcmp.eq.s32.totalorder %v3379, %v3563
        %vm3570 = vcmp.eq.s32.totalorder %v3379, %v3564
        %vm3571 = vcmp.eq.s32.totalorder %v3382, %v3563
        %vm3572 = vcmp.eq.s32.totalorder %v3382, %v3564
        %vm3573 = vcmp.eq.s32.totalorder %v3385, %v3563
        %vm3574 = vcmp.eq.s32.totalorder %v3385, %v3564
        %vm3575 = vcmp.eq.s32.totalorder %v3388, %v3563
        %vm3576 = vcmp.eq.s32.totalorder %v3388, %v3564
        %vm3577 = vcmp.eq.s32.totalorder %v3391, %v3563
        %vm3578 = vcmp.eq.s32.totalorder %v3391, %v3564
        %vm3579 = vcmp.eq.s32.totalorder %v3394, %v3563
        %vm3580 = vcmp.eq.s32.totalorder %v3394, %v3564
        %vm3581 = vcmp.eq.s32.totalorder %v3397, %v3563
        %vm3582 = vcmp.eq.s32.totalorder %v3397, %v3564
        %vm3583 = vcmp.eq.s32.totalorder %v3400, %v3563
        %vm3584 = vcmp.eq.s32.totalorder %v3400, %v3564
        %vm3585 = vcmp.eq.s32.totalorder %v3403, %v3563
        %vm3586 = vcmp.eq.s32.totalorder %v3403, %v3564
        %vm3587 = vcmp.eq.s32.totalorder %v3406, %v3563
        %vm3588 = vcmp.eq.s32.totalorder %v3406, %v3564
        %vm3589 = vcmp.eq.s32.totalorder %v3409, %v3563
        %vm3590 = vcmp.eq.s32.totalorder %v3409, %v3564
        %vm3591 = vcmp.eq.s32.totalorder %v3412, %v3563
        %vm3592 = vcmp.eq.s32.totalorder %v3412, %v3564
        %vm3593 = vcmp.eq.s32.totalorder %v3415, %v3563
        %vm3594 = vcmp.eq.s32.totalorder %v3415, %v3564
        %vm3595 = vcmp.eq.s32.totalorder %v3418, %v3563
        %vm3596 = vcmp.eq.s32.totalorder %v3418, %v3564
        %vm3597 = vcmp.eq.s32.totalorder %v3421, %v3563
        %vm3598 = vcmp.eq.s32.totalorder %v3421, %v3564
        %vm3599 = vcmp.eq.s32.totalorder %v3424, %v3563
        %vm3600 = vcmp.eq.s32.totalorder %v3424, %v3564
        %vm3601 = vcmp.eq.s32.totalorder %v3427, %v3563
        %vm3602 = vcmp.eq.s32.totalorder %v3427, %v3564
        %vm3603 = vcmp.eq.s32.totalorder %v3430, %v3563
        %vm3604 = vcmp.eq.s32.totalorder %v3430, %v3564
        %vm3605 = vcmp.eq.s32.totalorder %v3433, %v3563
        %vm3606 = vcmp.eq.s32.totalorder %v3433, %v3564
        %vm3607 = vcmp.eq.s32.totalorder %v3436, %v3563
        %vm3608 = vcmp.eq.s32.totalorder %v3436, %v3564
        %vm3609 = vcmp.eq.s32.totalorder %v3439, %v3563
        %vm3610 = vcmp.eq.s32.totalorder %v3439, %v3564
        %vm3611 = vcmp.eq.s32.totalorder %v3442, %v3563
        %vm3612 = vcmp.eq.s32.totalorder %v3442, %v3564
        %vm3613 = vcmp.eq.s32.totalorder %v3445, %v3563
        %vm3614 = vcmp.eq.s32.totalorder %v3445, %v3564
        %vm3615 = vcmp.eq.s32.totalorder %v3448, %v3563
        %vm3616 = vcmp.eq.s32.totalorder %v3448, %v3564
        %vm3617 = vcmp.eq.s32.totalorder %v3451, %v3563
        %vm3618 = vcmp.eq.s32.totalorder %v3451, %v3564
        %vm3619 = vcmp.eq.s32.totalorder %v3454, %v3563
        %vm3620 = vcmp.eq.s32.totalorder %v3454, %v3564
        %vm3621 = vcmp.eq.s32.totalorder %v3457, %v3563
        %vm3622 = vcmp.eq.s32.totalorder %v3457, %v3564
        %vm3623 = vcmp.eq.s32.totalorder %v3460, %v3563
        %vm3624 = vcmp.eq.s32.totalorder %v3460, %v3564
        %vm3625 = vcmp.eq.s32.totalorder %v3463, %v3563
        %vm3626 = vcmp.eq.s32.totalorder %v3463, %v3564
        %vm3627 = vcmp.eq.s32.totalorder %v3466, %v3563
        %vm3628 = vcmp.eq.s32.totalorder %v3466, %v3564
        %vm3629 = vcmp.eq.s32.totalorder %v3469, %v3563
        %vm3630 = vcmp.eq.s32.totalorder %v3469, %v3564
        %vm3631 = vcmp.eq.s32.totalorder %v3472, %v3563
        %vm3632 = vcmp.eq.s32.totalorder %v3472, %v3564
        %vm3633 = vcmp.eq.s32.totalorder %v3475, %v3563
        %vm3634 = vcmp.eq.s32.totalorder %v3475, %v3564
        %vm3635 = vcmp.eq.s32.totalorder %v3478, %v3563
        %vm3636 = vcmp.eq.s32.totalorder %v3478, %v3564
        %vm3637 = vcmp.eq.s32.totalorder %v3481, %v3563
        %vm3638 = vcmp.eq.s32.totalorder %v3481, %v3564
        %vm3639 = vcmp.eq.s32.totalorder %v3484, %v3563
        %vm3640 = vcmp.eq.s32.totalorder %v3484, %v3564
        %vm3641 = vcmp.eq.s32.totalorder %v3487, %v3563
        %vm3642 = vcmp.eq.s32.totalorder %v3487, %v3564
        %vm3643 = vcmp.eq.s32.totalorder %v3490, %v3563
        %vm3644 = vcmp.eq.s32.totalorder %v3490, %v3564
        %vm3645 = vcmp.eq.s32.totalorder %v3493, %v3563
        %vm3646 = vcmp.eq.s32.totalorder %v3493, %v3564
        %vm3647 = vcmp.eq.s32.totalorder %v3496, %v3563
        %vm3648 = vcmp.eq.s32.totalorder %v3496, %v3564
        %vm3649 = vcmp.eq.s32.totalorder %v3499, %v3563
        %vm3650 = vcmp.eq.s32.totalorder %v3499, %v3564
        %vm3651 = vcmp.eq.s32.totalorder %v3502, %v3563
        %vm3652 = vcmp.eq.s32.totalorder %v3502, %v3564
        %vm3653 = vcmp.eq.s32.totalorder %v3505, %v3563
        %vm3654 = vcmp.eq.s32.totalorder %v3505, %v3564
        %vm3655 = vcmp.eq.s32.totalorder %v3508, %v3563
        %vm3656 = vcmp.eq.s32.totalorder %v3508, %v3564
        %vm3657 = vcmp.eq.s32.totalorder %v3511, %v3563
        %vm3658 = vcmp.eq.s32.totalorder %v3511, %v3564
        %vm3659 = vcmp.eq.s32.totalorder %v3514, %v3563
        %vm3660 = vcmp.eq.s32.totalorder %v3514, %v3564
        %vm3661 = vcmp.eq.s32.totalorder %v3517, %v3563
        %vm3662 = vcmp.eq.s32.totalorder %v3517, %v3564
        %vm3663 = vcmp.eq.s32.totalorder %v3520, %v3563
        %vm3664 = vcmp.eq.s32.totalorder %v3520, %v3564
        %vm3665 = vcmp.eq.s32.totalorder %v3523, %v3563
        %vm3666 = vcmp.eq.s32.totalorder %v3523, %v3564
        %vm3667 = vcmp.eq.s32.totalorder %v3526, %v3563
        %vm3668 = vcmp.eq.s32.totalorder %v3526, %v3564
        %vm3669 = vcmp.eq.s32.totalorder %v3529, %v3563
        %vm3670 = vcmp.eq.s32.totalorder %v3529, %v3564
        %vm3671 = vcmp.eq.s32.totalorder %v3532, %v3563
        %vm3672 = vcmp.eq.s32.totalorder %v3532, %v3564
        %vm3673 = vcmp.eq.s32.totalorder %v3535, %v3563
        %vm3674 = vcmp.eq.s32.totalorder %v3535, %v3564
        %vm3675 = vcmp.eq.s32.totalorder %v3538, %v3563
        %vm3676 = vcmp.eq.s32.totalorder %v3538, %v3564
        %vm3677 = vcmp.eq.s32.totalorder %v3541, %v3563
        %vm3678 = vcmp.eq.s32.totalorder %v3541, %v3564
        %vm3679 = vcmp.eq.s32.totalorder %v3544, %v3563
        %vm3680 = vcmp.eq.s32.totalorder %v3544, %v3564
        %vm3681 = vcmp.eq.s32.totalorder %v3547, %v3563
        %vm3682 = vcmp.eq.s32.totalorder %v3547, %v3564
        %vm3683 = vcmp.eq.s32.totalorder %v3550, %v3563
        %vm3684 = vcmp.eq.s32.totalorder %v3550, %v3564
        %vm3685 = vcmp.eq.s32.totalorder %v3553, %v3563
        %vm3686 = vcmp.eq.s32.totalorder %v3553, %v3564
        %vm3687 = vcmp.eq.s32.totalorder %v3556, %v3563
        %vm3688 = vcmp.eq.s32.totalorder %v3556, %v3564
        %vm3689 = vcmp.eq.s32.totalorder %v3559, %v3563
        %vm3690 = vcmp.eq.s32.totalorder %v3559, %v3564
        %vm3691 = vcmp.eq.s32.totalorder %v3562, %v3563
        %vm3692 = vcmp.eq.s32.totalorder %v3562, %v3564
        %v3693 = vld [vmem:[%s355] sm:$0x3]
        %v3694 = vsel %vm3565, %v1959, 0.0
        %v3695 = vsel %vm3566, %v1960, 0.0
        %v3696 = vsel %vm3567, %v1961, 0.0
        %v3697 = vsel %vm3568, %v1962, 0.0
        %v3698 = vsel %vm3569, %v1963, 0.0
        %v3699 = vsel %vm3570, %v1964, 0.0
        %v3700 = vsel %vm3571, %v1965, 0.0
        %v3701 = vsel %vm3572, %v1966, 0.0
        %v3702 = vsel %vm3573, %v1967, 0.0
        %v3703 = vsel %vm3574, %v1968, 0.0
        %v3704 = vsel %vm3575, %v1969, 0.0
        %v3705 = vsel %vm3576, %v1970, 0.0
        %v3706 = vsel %vm3577, %v1971, 0.0
        %v3707 = vsel %vm3578, %v1972, 0.0
        %v3708 = vsel %vm3579, %v1973, 0.0
        %v3709 = vsel %vm3580, %v1974, 0.0
        %v3710 = vsel %vm3581, %v1975, 0.0
        %v3711 = vsel %vm3582, %v1976, 0.0
        %v3712 = vsel %vm3583, %v1977, 0.0
        %v3713 = vsel %vm3584, %v1978, 0.0
        %v3714 = vsel %vm3585, %v1979, 0.0
        %v3715 = vsel %vm3586, %v1980, 0.0
        %v3716 = vsel %vm3587, %v1981, 0.0
        %v3717 = vsel %vm3588, %v1982, 0.0
        %v3718 = vsel %vm3589, %v1983, 0.0
        %v3719 = vsel %vm3590, %v1984, 0.0
        %v3720 = vsel %vm3591, %v1985, 0.0
        %v3721 = vsel %vm3592, %v1986, 0.0
        %v3722 = vsel %vm3593, %v1987, 0.0
        %v3723 = vsel %vm3594, %v1988, 0.0
        %v3724 = vsel %vm3595, %v1989, 0.0
        %v3725 = vsel %vm3596, %v1990, 0.0
        %v3726 = vsel %vm3597, %v1991, 0.0
        %v3727 = vsel %vm3598, %v1992, 0.0
        %v3728 = vsel %vm3599, %v1993, 0.0
        %v3729 = vsel %vm3600, %v1994, 0.0
        %v3730 = vsel %vm3601, %v1995, 0.0
        %v3731 = vsel %vm3602, %v1996, 0.0
        %v3732 = vsel %vm3603, %v1997, 0.0
        %v3733 = vsel %vm3604, %v1998, 0.0
        %v3734 = vsel %vm3605, %v1999, 0.0
        %v3735 = vsel %vm3606, %v2000, 0.0
        %v3736 = vsel %vm3607, %v2001, 0.0
        %v3737 = vsel %vm3608, %v2002, 0.0
        %v3738 = vsel %vm3609, %v2003, 0.0
        %v3739 = vsel %vm3610, %v2004, 0.0
        %v3740 = vsel %vm3611, %v2005, 0.0
        %v3741 = vsel %vm3612, %v2006, 0.0
        %v3742 = vsel %vm3613, %v2007, 0.0
        %v3743 = vsel %vm3614, %v2008, 0.0
        %v3744 = vsel %vm3615, %v2009, 0.0
        %v3745 = vsel %vm3616, %v2010, 0.0
        %v3746 = vsel %vm3617, %v2011, 0.0
        %v3747 = vsel %vm3618, %v2012, 0.0
        %v3748 = vsel %vm3619, %v2013, 0.0
        %v3749 = vsel %vm3620, %v2014, 0.0
        %v3750 = vsel %vm3621, %v2015, 0.0
        %v3751 = vsel %vm3622, %v2016, 0.0
        %v3752 = vsel %vm3623, %v2017, 0.0
        %v3753 = vsel %vm3624, %v2018, 0.0
        %v3754 = vsel %vm3625, %v2019, 0.0
        %v3755 = vsel %vm3626, %v2020, 0.0
        %v3756 = vsel %vm3627, %v2021, 0.0
        %v3757 = vsel %vm3628, %v2022, 0.0
        %v3758 = vsel %vm3629, %v2023, 0.0
        %v3759 = vsel %vm3630, %v2024, 0.0
        %v3760 = vsel %vm3631, %v2025, 0.0
        %v3761 = vsel %vm3632, %v2026, 0.0
        %v3762 = vsel %vm3633, %v2027, 0.0
        %v3763 = vsel %vm3634, %v2028, 0.0
        %v3764 = vsel %vm3635, %v2029, 0.0
        %v3765 = vsel %vm3636, %v2030, 0.0
        %v3766 = vsel %vm3637, %v2031, 0.0
        %v3767 = vsel %vm3638, %v2032, 0.0
        %v3768 = vsel %vm3639, %v2033, 0.0
        %v3769 = vsel %vm3640, %v2034, 0.0
        %v3770 = vsel %vm3641, %v2035, 0.0
        %v3771 = vsel %vm3642, %v2036, 0.0
        %v3772 = vsel %vm3643, %v2037, 0.0
        %v3773 = vsel %vm3644, %v2038, 0.0
        %v3774 = vsel %vm3645, %v2039, 0.0
        %v3775 = vsel %vm3646, %v2040, 0.0
        %v3776 = vsel %vm3647, %v2041, 0.0
        %v3777 = vsel %vm3648, %v2042, 0.0
        %v3778 = vsel %vm3649, %v2043, 0.0
        %v3779 = vsel %vm3650, %v2044, 0.0
        %v3780 = vsel %vm3651, %v2045, 0.0
        %v3781 = vsel %vm3652, %v2046, 0.0
        %v3782 = vsel %vm3653, %v2047, 0.0
        %v3783 = vsel %vm3654, %v2048, 0.0
        %v3784 = vsel %vm3655, %v2049, 0.0
        %v3785 = vsel %vm3656, %v2050, 0.0
        %v3786 = vsel %vm3657, %v2051, 0.0
        %v3787 = vsel %vm3658, %v2052, 0.0
        %v3788 = vsel %vm3659, %v2053, 0.0
        %v3789 = vsel %vm3660, %v2054, 0.0
        %v3790 = vsel %vm3661, %v2055, 0.0
        %v3791 = vsel %vm3662, %v2056, 0.0
        %v3792 = vsel %vm3663, %v2057, 0.0
        %v3793 = vsel %vm3664, %v2058, 0.0
        %v3794 = vsel %vm3665, %v2059, 0.0
        %v3795 = vsel %vm3666, %v2060, 0.0
        %v3796 = vsel %vm3667, %v2061, 0.0
        %v3797 = vsel %vm3668, %v2062, 0.0
        %v3798 = vsel %vm3669, %v2063, 0.0
        %v3799 = vsel %vm3670, %v2064, 0.0
        %v3800 = vsel %vm3671, %v2065, 0.0
        %v3801 = vsel %vm3672, %v2066, 0.0
        %v3802 = vsel %vm3673, %v2067, 0.0
        %v3803 = vsel %vm3674, %v2068, 0.0
        %v3804 = vsel %vm3675, %v2069, 0.0
        %v3805 = vsel %vm3676, %v2070, 0.0
        %v3806 = vsel %vm3677, %v2071, 0.0
        %v3807 = vsel %vm3678, %v2072, 0.0
        %v3808 = vsel %vm3679, %v2073, 0.0
        %v3809 = vsel %vm3680, %v2074, 0.0
        %v3810 = vsel %vm3681, %v2075, 0.0
        %v3811 = vsel %vm3682, %v2076, 0.0
        %v3812 = vsel %vm3683, %v2077, 0.0
        %v3813 = vsel %vm3684, %v2078, 0.0
        %v3814 = vsel %vm3685, %v2079, 0.0
        %v3815 = vsel %vm3686, %v2080, 0.0
        %v3816 = vsel %vm3687, %v2081, 0.0
        %v3817 = vsel %vm3688, %v2082, 0.0
        %v3818 = vsel %vm3689, %v2083, 0.0
        %v3819 = vsel %vm3690, %v2084, 0.0
        %v3820 = vsel %vm3691, %v2085, 0.0
        %v3821 = vsel %vm3692, %v2086, 0.0
        %v3822 = vadd.f32 %v3694, %v3696
        %v3823 = vadd.f32 %v3822, %v3698
        %v3824 = vadd.f32 %v3823, %v3700
        %v3825 = vadd.f32 %v3824, %v3702
        %v3826 = vadd.f32 %v3825, %v3704
        %v3827 = vadd.f32 %v3826, %v3706
        %v3828 = vadd.f32 %v3827, %v3708
        %v3829 = vadd.f32 %v3828, %v3710
        %v3830 = vadd.f32 %v3829, %v3712
        %v3831 = vadd.f32 %v3830, %v3714
        %v3832 = vadd.f32 %v3831, %v3716
        %v3833 = vadd.f32 %v3832, %v3718
        %v3834 = vadd.f32 %v3833, %v3720
        %v3835 = vadd.f32 %v3834, %v3722
        %v3836 = vadd.f32 %v3835, %v3724
        %v3837 = vadd.f32 %v3836, %v3726
        %v3838 = vadd.f32 %v3837, %v3728
        %v3839 = vadd.f32 %v3838, %v3730
        %v3840 = vadd.f32 %v3839, %v3732
        %v3841 = vadd.f32 %v3840, %v3734
        %v3842 = vadd.f32 %v3841, %v3736
        %v3843 = vadd.f32 %v3842, %v3738
        %v3844 = vadd.f32 %v3843, %v3740
        %v3845 = vadd.f32 %v3844, %v3742
        %v3846 = vadd.f32 %v3845, %v3744
        %v3847 = vadd.f32 %v3846, %v3746
        %v3848 = vadd.f32 %v3847, %v3748
        %v3849 = vadd.f32 %v3848, %v3750
        %v3850 = vadd.f32 %v3849, %v3752
        %v3851 = vadd.f32 %v3850, %v3754
        %v3852 = vadd.f32 %v3851, %v3756
        %v3853 = vadd.f32 %v3852, %v3758
        %v3854 = vadd.f32 %v3853, %v3760
        %v3855 = vadd.f32 %v3854, %v3762
        %v3856 = vadd.f32 %v3855, %v3764
        %v3857 = vadd.f32 %v3856, %v3766
        %v3858 = vadd.f32 %v3857, %v3768
        %v3859 = vadd.f32 %v3858, %v3770
        %v3860 = vadd.f32 %v3859, %v3772
        %v3861 = vadd.f32 %v3860, %v3774
        %v3862 = vadd.f32 %v3861, %v3776
        %v3863 = vadd.f32 %v3862, %v3778
        %v3864 = vadd.f32 %v3863, %v3780
        %v3865 = vadd.f32 %v3864, %v3782
        %v3866 = vadd.f32 %v3865, %v3784
        %v3867 = vadd.f32 %v3866, %v3786
        %v3868 = vadd.f32 %v3867, %v3788
        %v3869 = vadd.f32 %v3868, %v3790
        %v3870 = vadd.f32 %v3869, %v3792
        %v3871 = vadd.f32 %v3870, %v3794
        %v3872 = vadd.f32 %v3871, %v3796
        %v3873 = vadd.f32 %v3872, %v3798
        %v3874 = vadd.f32 %v3873, %v3800
        %v3875 = vadd.f32 %v3874, %v3802
        %v3876 = vadd.f32 %v3875, %v3804
        %v3877 = vadd.f32 %v3876, %v3806
        %v3878 = vadd.f32 %v3877, %v3808
        %v3879 = vadd.f32 %v3878, %v3810
        %v3880 = vadd.f32 %v3879, %v3812
        %v3881 = vadd.f32 %v3880, %v3814
        %v3882 = vadd.f32 %v3881, %v3816
        %v3883 = vadd.f32 %v3882, %v3818
        %v3884 = vadd.f32 %v3883, %v3820
        %v3885 = vrot.slane %v3884, 4
        %v3886 = vadd.f32 %v3884, %v3885
        %v3887 = vrot.slane %v3886, 2
        %v3888 = vadd.f32 %v3886, %v3887
        %v3889 = vrot.slane %v3888, 1
        %v3890 = vadd.f32 %v3888, %v3889
        %v3891 = vadd.f32 %v3695, %v3697
        %v3892 = vadd.f32 %v3891, %v3699
        %v3893 = vadd.f32 %v3892, %v3701
        %v3894 = vadd.f32 %v3893, %v3703
        %v3895 = vadd.f32 %v3894, %v3705
        %v3896 = vadd.f32 %v3895, %v3707
        %v3897 = vadd.f32 %v3896, %v3709
        %v3898 = vadd.f32 %v3897, %v3711
        %v3899 = vadd.f32 %v3898, %v3713
        %v3900 = vadd.f32 %v3899, %v3715
        %v3901 = vadd.f32 %v3900, %v3717
        %v3902 = vadd.f32 %v3901, %v3719
        %v3903 = vadd.f32 %v3902, %v3721
        %v3904 = vadd.f32 %v3903, %v3723
        %v3905 = vadd.f32 %v3904, %v3725
        %v3906 = vadd.f32 %v3905, %v3727
        %v3907 = vadd.f32 %v3906, %v3729
        %v3908 = vadd.f32 %v3907, %v3731
        %v3909 = vadd.f32 %v3908, %v3733
        %v3910 = vadd.f32 %v3909, %v3735
        %v3911 = vadd.f32 %v3910, %v3737
        %v3912 = vadd.f32 %v3911, %v3739
        %v3913 = vadd.f32 %v3912, %v3741
        %v3914 = vadd.f32 %v3913, %v3743
        %v3915 = vadd.f32 %v3914, %v3745
        %v3916 = vadd.f32 %v3915, %v3747
        %v3917 = vadd.f32 %v3916, %v3749
        %v3918 = vadd.f32 %v3917, %v3751
        %v3919 = vadd.f32 %v3918, %v3753
        %v3920 = vadd.f32 %v3919, %v3755
        %v3921 = vadd.f32 %v3920, %v3757
        %v3922 = vadd.f32 %v3921, %v3759
        %v3923 = vadd.f32 %v3922, %v3761
        %v3924 = vadd.f32 %v3923, %v3763
        %v3925 = vadd.f32 %v3924, %v3765
        %v3926 = vadd.f32 %v3925, %v3767
        %v3927 = vadd.f32 %v3926, %v3769
        %v3928 = vadd.f32 %v3927, %v3771
        %v3929 = vadd.f32 %v3928, %v3773
        %v3930 = vadd.f32 %v3929, %v3775
        %v3931 = vadd.f32 %v3930, %v3777
        %v3932 = vadd.f32 %v3931, %v3779
        %v3933 = vadd.f32 %v3932, %v3781
        %v3934 = vadd.f32 %v3933, %v3783
        %v3935 = vadd.f32 %v3934, %v3785
        %v3936 = vadd.f32 %v3935, %v3787
        %v3937 = vadd.f32 %v3936, %v3789
        %v3938 = vadd.f32 %v3937, %v3791
        %v3939 = vadd.f32 %v3938, %v3793
        %v3940 = vadd.f32 %v3939, %v3795
        %v3941 = vadd.f32 %v3940, %v3797
        %v3942 = vadd.f32 %v3941, %v3799
        %v3943 = vadd.f32 %v3942, %v3801
        %v3944 = vadd.f32 %v3943, %v3803
        %v3945 = vadd.f32 %v3944, %v3805
        %v3946 = vadd.f32 %v3945, %v3807
        %v3947 = vadd.f32 %v3946, %v3809
        %v3948 = vadd.f32 %v3947, %v3811
        %v3949 = vadd.f32 %v3948, %v3813
        %v3950 = vadd.f32 %v3949, %v3815
        %v3951 = vadd.f32 %v3950, %v3817
        %v3952 = vadd.f32 %v3951, %v3819
        %v3953 = vadd.f32 %v3952, %v3821
        %v3954 = vrot.slane %v3953, 4
        %v3955 = vadd.f32 %v3953, %v3954
        %v3956 = vrot.slane %v3955, 2
        %v3957 = vadd.f32 %v3955, %v3956
        %v3958 = vrot.slane %v3957, 1
        %v3959 = vadd.f32 %v3957, %v3958
        %v3962 = vrot.slane %v3959, 7
        %vm3963 = vcmask 1040384
        %v3964 = vsel %vm3963, %v3890, %v3962
        %v3966 = vadd.f32 %v3693, %v3964
        %v3967 = vlaneseq
        %vm3968 = vcmp.ge.s32.totalorder %v3967, 0
        %vm3969 = vcmp.lt.s32.totalorder %v3967, 256
        %vm3970 = vmand %vm3968, %vm3969
        %3971 = vst.msk [vmem:[%s355] sm:$0x3] %vm3970, %v3966
        %v3972 = vld [vmem:[%s360] sm:$0x3]
        %v3973 = vadd.f32 %v1959, %v1961
        %v3974 = vadd.f32 %v3973, %v1963
        %v3975 = vadd.f32 %v3974, %v1965
        %v3976 = vadd.f32 %v3975, %v1967
        %v3977 = vadd.f32 %v3976, %v1969
        %v3978 = vadd.f32 %v3977, %v1971
        %v3979 = vadd.f32 %v3978, %v1973
        %v3980 = vadd.f32 %v3979, %v1975
        %v3981 = vadd.f32 %v3980, %v1977
        %v3982 = vadd.f32 %v3981, %v1979
        %v3983 = vadd.f32 %v3982, %v1981
        %v3984 = vadd.f32 %v3983, %v1983
        %v3985 = vadd.f32 %v3984, %v1985
        %v3986 = vadd.f32 %v3985, %v1987
        %v3987 = vadd.f32 %v3986, %v1989
        %v3988 = vadd.f32 %v3987, %v1991
        %v3989 = vadd.f32 %v3988, %v1993
        %v3990 = vadd.f32 %v3989, %v1995
        %v3991 = vadd.f32 %v3990, %v1997
        %v3992 = vadd.f32 %v3991, %v1999
        %v3993 = vadd.f32 %v3992, %v2001
        %v3994 = vadd.f32 %v3993, %v2003
        %v3995 = vadd.f32 %v3994, %v2005
        %v3996 = vadd.f32 %v3995, %v2007
        %v3997 = vadd.f32 %v3996, %v2009
        %v3998 = vadd.f32 %v3997, %v2011
        %v3999 = vadd.f32 %v3998, %v2013
        %v4000 = vadd.f32 %v3999, %v2015
        %v4001 = vadd.f32 %v4000, %v2017
        %v4002 = vadd.f32 %v4001, %v2019
        %v4003 = vadd.f32 %v4002, %v2021
        %v4004 = vadd.f32 %v4003, %v2023
        %v4005 = vadd.f32 %v4004, %v2025
        %v4006 = vadd.f32 %v4005, %v2027
        %v4007 = vadd.f32 %v4006, %v2029
        %v4008 = vadd.f32 %v4007, %v2031
        %v4009 = vadd.f32 %v4008, %v2033
        %v4010 = vadd.f32 %v4009, %v2035
        %v4011 = vadd.f32 %v4010, %v2037
        %v4012 = vadd.f32 %v4011, %v2039
        %v4013 = vadd.f32 %v4012, %v2041
        %v4014 = vadd.f32 %v4013, %v2043
        %v4015 = vadd.f32 %v4014, %v2045
        %v4016 = vadd.f32 %v4015, %v2047
        %v4017 = vadd.f32 %v4016, %v2049
        %v4018 = vadd.f32 %v4017, %v2051
        %v4019 = vadd.f32 %v4018, %v2053
        %v4020 = vadd.f32 %v4019, %v2055
        %v4021 = vadd.f32 %v4020, %v2057
        %v4022 = vadd.f32 %v4021, %v2059
        %v4023 = vadd.f32 %v4022, %v2061
        %v4024 = vadd.f32 %v4023, %v2063
        %v4025 = vadd.f32 %v4024, %v2065
        %v4026 = vadd.f32 %v4025, %v2067
        %v4027 = vadd.f32 %v4026, %v2069
        %v4028 = vadd.f32 %v4027, %v2071
        %v4029 = vadd.f32 %v4028, %v2073
        %v4030 = vadd.f32 %v4029, %v2075
        %v4031 = vadd.f32 %v4030, %v2077
        %v4032 = vadd.f32 %v4031, %v2079
        %v4033 = vadd.f32 %v4032, %v2081
        %v4034 = vadd.f32 %v4033, %v2083
        %v4035 = vadd.f32 %v4034, %v2085
        %v4036 = vrot.slane %v4035, 4
        %v4037 = vadd.f32 %v4035, %v4036
        %v4038 = vrot.slane %v4037, 2
        %v4039 = vadd.f32 %v4037, %v4038
        %v4040 = vrot.slane %v4039, 1
        %v4041 = vadd.f32 %v4039, %v4040
        %v4042 = vadd.f32 %v1960, %v1962
        %v4043 = vadd.f32 %v4042, %v1964
        %v4044 = vadd.f32 %v4043, %v1966
        %v4045 = vadd.f32 %v4044, %v1968
        %v4046 = vadd.f32 %v4045, %v1970
        %v4047 = vadd.f32 %v4046, %v1972
        %v4048 = vadd.f32 %v4047, %v1974
        %v4049 = vadd.f32 %v4048, %v1976
        %v4050 = vadd.f32 %v4049, %v1978
        %v4051 = vadd.f32 %v4050, %v1980
        %v4052 = vadd.f32 %v4051, %v1982
        %v4053 = vadd.f32 %v4052, %v1984
        %v4054 = vadd.f32 %v4053, %v1986
        %v4055 = vadd.f32 %v4054, %v1988
        %v4056 = vadd.f32 %v4055, %v1990
        %v4057 = vadd.f32 %v4056, %v1992
        %v4058 = vadd.f32 %v4057, %v1994
        %v4059 = vadd.f32 %v4058, %v1996
        %v4060 = vadd.f32 %v4059, %v1998
        %v4061 = vadd.f32 %v4060, %v2000
        %v4062 = vadd.f32 %v4061, %v2002
        %v4063 = vadd.f32 %v4062, %v2004
        %v4064 = vadd.f32 %v4063, %v2006
        %v4065 = vadd.f32 %v4064, %v2008
        %v4066 = vadd.f32 %v4065, %v2010
        %v4067 = vadd.f32 %v4066, %v2012
        %v4068 = vadd.f32 %v4067, %v2014
        %v4069 = vadd.f32 %v4068, %v2016
        %v4070 = vadd.f32 %v4069, %v2018
        %v4071 = vadd.f32 %v4070, %v2020
        %v4072 = vadd.f32 %v4071, %v2022
        %v4073 = vadd.f32 %v4072, %v2024
        %v4074 = vadd.f32 %v4073, %v2026
        %v4075 = vadd.f32 %v4074, %v2028
        %v4076 = vadd.f32 %v4075, %v2030
        %v4077 = vadd.f32 %v4076, %v2032
        %v4078 = vadd.f32 %v4077, %v2034
        %v4079 = vadd.f32 %v4078, %v2036
        %v4080 = vadd.f32 %v4079, %v2038
        %v4081 = vadd.f32 %v4080, %v2040
        %v4082 = vadd.f32 %v4081, %v2042
        %v4083 = vadd.f32 %v4082, %v2044
        %v4084 = vadd.f32 %v4083, %v2046
        %v4085 = vadd.f32 %v4084, %v2048
        %v4086 = vadd.f32 %v4085, %v2050
        %v4087 = vadd.f32 %v4086, %v2052
        %v4088 = vadd.f32 %v4087, %v2054
        %v4089 = vadd.f32 %v4088, %v2056
        %v4090 = vadd.f32 %v4089, %v2058
        %v4091 = vadd.f32 %v4090, %v2060
        %v4092 = vadd.f32 %v4091, %v2062
        %v4093 = vadd.f32 %v4092, %v2064
        %v4094 = vadd.f32 %v4093, %v2066
        %v4095 = vadd.f32 %v4094, %v2068
        %v4096 = vadd.f32 %v4095, %v2070
        %v4097 = vadd.f32 %v4096, %v2072
        %v4098 = vadd.f32 %v4097, %v2074
        %v4099 = vadd.f32 %v4098, %v2076
        %v4100 = vadd.f32 %v4099, %v2078
        %v4101 = vadd.f32 %v4100, %v2080
        %v4102 = vadd.f32 %v4101, %v2082
        %v4103 = vadd.f32 %v4102, %v2084
        %v4104 = vadd.f32 %v4103, %v2086
        %v4105 = vrot.slane %v4104, 4
        %v4106 = vadd.f32 %v4104, %v4105
        %v4107 = vrot.slane %v4106, 2
        %v4108 = vadd.f32 %v4106, %v4107
        %v4109 = vrot.slane %v4108, 1
        %v4110 = vadd.f32 %v4108, %v4109
        %v4113 = vrot.slane %v4110, 7
        %v4114 = vsel %vm3963, %v4041, %v4113
        %v4116 = vadd.f32 %v3972, %v4114
        %4117 = vst.msk [vmem:[%s360] sm:$0x3] %vm3970, %v4116
      $region52: #{contrast_loss_point_cloud_intra_batch.1} parent=39 // pred_fallthru
        _
      %s4118 = smul.u32 2, %s22
      %p4119 = scmp.lt.s32.totalorder %s4118, 3
      %s4120 = scalar_select %p4119, %s4118, 3
      %s4121 = scalar_lea.vmem %s5, %s4120
      %s4122 = smul.u32 2, %s22
      %p4123 = scmp.lt.s32.totalorder %s4122, 3
      %s4124 = scalar_select %p4123, %s4122, 3
      %s4125 = scalar_lea.vmem %s6, %s4124
      // Predicated region
      $region53: #{contrast_loss_point_cloud_intra_batch.1} parent=39 // pred_check
        %p4126 = pneg %p178
      $region54: #{contrast_loss_point_cloud_intra_batch.1} parent=39 // pred_check_branch
        %4128 = sbr.rel (%p4126) target = $region56
      $region55: #{contrast_loss_point_cloud_intra_batch.1} parent=39 // pred_region
        %s4129 = smul.u32 2, %s22
      $region56: #{contrast_loss_point_cloud_intra_batch.1} parent=39 // pred_fallthru
        _
      // Predicated region
      $region57: #{contrast_loss_point_cloud_intra_batch.1} parent=39 // pred_check
        %p4130 = pneg %p204
      $region58: #{contrast_loss_point_cloud_intra_batch.1} parent=39 // pred_check_branch
        %4132 = sbr.rel (%p4130) target = $region60
      $region59: #{contrast_loss_point_cloud_intra_batch.1} parent=39 // pred_region
        %s4133 = smul.u32 2, %s22
      $region60: #{contrast_loss_point_cloud_intra_batch.1} parent=39 // pred_fallthru
        _
    $region40: #{contrast_loss_point_cloud_intra_batch.1} parent=5 // pred_fallthru
      _
    %p4134 = scmp.le.s32.totalorder 2, %s13
    // Predicated region
    $region61: #{contrast_loss_point_cloud_intra_batch.1} parent=5 // pred_check
      %p4135 = pneg %p4134
    $region62: #{contrast_loss_point_cloud_intra_batch.1} parent=5 // pred_check_branch
      %4137 = sbr.rel (%p4135) target = $region64
    $region63: #{contrast_loss_point_cloud_intra_batch.1} parent=5 // pred_region
      %s4138 = ssub.s32 %s13, 2
      // Predicated region
      $region65: #{contrast_loss_point_cloud_intra_batch.1} parent=63 // pred_check
        %p4139 = pneg %p184
      $region66: #{contrast_loss_point_cloud_intra_batch.1} parent=63 // pred_check_branch
        %4141 = sbr.rel (%p4139) target = $region68
      $region67: #{contrast_loss_point_cloud_intra_batch.1} parent=63 // pred_region
        %s4142 = smul.u32 2, %s24
        %p4143 = scmp.lt.s32.totalorder %s4142, 3
        %s4144 = scalar_select %p4143, %s4142, 3
        %s4145 = scalar_lea.vmem %s5, %s4144
      $region68: #{contrast_loss_point_cloud_intra_batch.1} parent=63 // pred_fallthru
        _
      // Predicated region
      $region69: #{contrast_loss_point_cloud_intra_batch.1} parent=63 // pred_check
        %p4146 = pneg %p210
      $region70: #{contrast_loss_point_cloud_intra_batch.1} parent=63 // pred_check_branch
        %4148 = sbr.rel (%p4146) target = $region72
      $region71: #{contrast_loss_point_cloud_intra_batch.1} parent=63 // pred_region
        %s4149 = smul.u32 2, %s24
        %p4150 = scmp.lt.s32.totalorder %s4149, 3
        %s4151 = scalar_select %p4150, %s4149, 3
        %s4152 = scalar_lea.vmem %s6, %s4151
      $region72: #{contrast_loss_point_cloud_intra_batch.1} parent=63 // pred_fallthru
        _
    $region64: #{contrast_loss_point_cloud_intra_batch.1} parent=5 // pred_fallthru
      _
  $region6: #{contrast_loss_point_cloud_intra_batch.1} parent=0 // loop_footer
    %s17 = sadd.s32 1, %s13
  $region7: #{contrast_loss_point_cloud_intra_batch.1} parent=0 // loop_footer_branch
    %12 = sbr.rel target = $region3
  $region8: #{contrast_loss_point_cloud_intra_batch.1} parent=0 // loop_exit
    _

</llo_original>
